<compile_context>
chip_gen: v7x
topology: tpu7x:2x2x1
jax: 0.10.0
libtpu: 0.0.40
codegen_flags: <defaults>
</compile_context>

<pallas_src>
import functools

import jax
import jax.numpy as jnp
from jax.experimental import pallas as pl
from jax.experimental.pallas import tpu as pltpu

_EPS = 1e-5
_VMEM_LIMIT = 32 * 1024 * 1024


# ----------------------------------------------------------------------------
# Kernel A: 3x3 conv, arbitrary stride (phase-decomposed padded input),
# NCHW-native, plus per-(batch, channel) sum / sum-of-squares for BN stats.
# ----------------------------------------------------------------------------
def _conv3x3_stats_kernel(xph_ref, w_ref, b_ref,
                          y_ref, sum_ref, ssq_ref,
                          *, s, Ho, Wo, Cin, Cout):
    # xph_ref: (1, s*s*Cin, Hph, Wph)  phase-split, zero-padded input
    # w_ref  : (3, 3, Cout, Cin)
    # b_ref  : (Cout, 1)
    # y_ref  : (1, Cout, Ho*Wo)   raw (pre-BN) conv output
    # sum_ref/ssq_ref: (1, Cout, 1)
    xv = xph_ref[0]                                     # (s*s*Cin, Hph, Wph)
    acc = jnp.zeros((Cout, Ho * Wo), jnp.float32)
    # Straight accumulation chain, no interleaved elementwise ops on acc.
    for kh in range(3):
        for kw in range(3):
            base = ((kh % s) * s + (kw % s)) * Cin      # phase plane
            dh, dw = kh // s, kw // s                   # shift inside phase
            patch = xv[base:base + Cin, dh:dh + Ho, dw:dw + Wo]
            patch = patch.reshape(Cin, Ho * Wo)
            acc = acc + jnp.dot(w_ref[kh, kw], patch,
                                preferred_element_type=jnp.float32)
    y = acc + b_ref[...]                                # (Cout, Ho*Wo)
    y_ref[0] = y
    sum_ref[0] = jnp.sum(y, axis=1, keepdims=True)
    ssq_ref[0] = jnp.sum(y * y, axis=1, keepdims=True)


def conv1_with_stats(x_nchw, w_hwio, b, stride):
    """3x3 conv, stride s, pad 1. Returns (y (N,Cout,Ho*Wo), sum, sumsq, (Ho,Wo))."""
    N, Cin, H, W = x_nchw.shape
    Cout = w_hwio.shape[-1]
    s = int(stride)
    Ho = (H - 1) // s + 1
    Wo = (W - 1) // s + 1
    # zero-pad by 1, then round spatial dims up to a multiple of s
    Hp = H + 2 + (-(H + 2)) % s
    Wp = W + 2 + (-(W + 2)) % s
    xp = jnp.pad(x_nchw, ((0, 0), (0, 0), (1, Hp - H - 1), (1, Wp - W - 1)))
    if s == 1:
        xph = xp                                        # (N, Cin, Hp, Wp)
    else:
        # phase (p, q) plane: xp[:, :, p::s, q::s], stacked on the channel dim
        xph = xp.reshape(N, Cin, Hp // s, s, Wp // s, s)
        xph = jnp.transpose(xph, (0, 3, 5, 1, 2, 4))
        xph = xph.reshape(N, s * s * Cin, Hp // s, Wp // s)
    # TODO(synk): the pad + phase split is a small wrapper-side XLA gather over
    # the (narrow-Cin) input; it could be folded in-kernel with strided ref loads.
    Hph, Wph = int(xph.shape[2]), int(xph.shape[3])
    w_taps = jnp.transpose(w_hwio, (0, 1, 3, 2))        # (3, 3, Cout, Cin)

    kernel = functools.partial(_conv3x3_stats_kernel,
                               s=s, Ho=Ho, Wo=Wo, Cin=Cin, Cout=Cout)
    y, ssum, ssq = pl.pallas_call(
        kernel,
        out_shape=(jax.ShapeDtypeStruct((N, Cout, Ho * Wo), jnp.float32),
                   jax.ShapeDtypeStruct((N, Cout, 1), jnp.float32),
                   jax.ShapeDtypeStruct((N, Cout, 1), jnp.float32)),
        grid=(N,),
        in_specs=[
            pl.BlockSpec((1, s * s * Cin, Hph, Wph), lambda n: (n, 0, 0, 0)),
            pl.BlockSpec((3, 3, Cout, Cin), lambda n: (0, 0, 0, 0)),
            pl.BlockSpec((Cout, 1), lambda n: (0, 0)),
        ],
        out_specs=(
            pl.BlockSpec((1, Cout, Ho * Wo), lambda n: (n, 0, 0)),
            pl.BlockSpec((1, Cout, 1), lambda n: (n, 0, 0)),
            pl.BlockSpec((1, Cout, 1), lambda n: (n, 0, 0)),
        ),
        compiler_params=pltpu.CompilerParams(
            dimension_semantics=("parallel",),
            vmem_limit_bytes=_VMEM_LIMIT),
    )(xph, w_taps, b.reshape(Cout, 1).astype(jnp.float32))
    return y, ssum, ssq, (Ho, Wo)


# ----------------------------------------------------------------------------
# Kernel B: fused [BN1-affine + ReLU] prologue -> in-kernel zero pad ->
# 3x3 stride-1 conv -> raw conv2 output + BN2 statistics.
# ----------------------------------------------------------------------------
def _bnrelu_conv3x3_stats_kernel(y1_ref, sc_ref, sh_ref, w_ref, b_ref,
                                 y_ref, sum_ref, ssq_ref, zpad_ref,
                                 *, Ho, Wo, C):
    # y1_ref : (1, C, Ho*Wo)  raw conv1 output
    # sc/sh  : (C, 1)         folded BN1 affine
    # w_ref  : (3, 3, C, C);  b_ref: (C, 1)
    # y_ref  : (1, C, Ho*Wo); sum_ref/ssq_ref: (1, C, 1)
    # zpad_ref: VMEM scratch (C, Ho+2, Wo+2)
    z = jnp.maximum(y1_ref[0] * sc_ref[...] + sh_ref[...], 0.0)   # (C, Ho*Wo)
    zpad_ref[...] = jnp.zeros(zpad_ref.shape, zpad_ref.dtype)
    zpad_ref[:, 1:1 + Ho, 1:1 + Wo] = z.reshape(C, Ho, Wo)
    zp = zpad_ref[...]                                  # (C, Ho+2, Wo+2)
    acc = jnp.zeros((C, Ho * Wo), jnp.float32)
    for kh in range(3):
        for kw in range(3):
            patch = zp[:, kh:kh + Ho, kw:kw + Wo].reshape(C, Ho * Wo)
            acc = acc + jnp.dot(w_ref[kh, kw], patch,
                                preferred_element_type=jnp.float32)
    y = acc + b_ref[...]
    y_ref[0] = y
    sum_ref[0] = jnp.sum(y, axis=1, keepdims=True)
    ssq_ref[0] = jnp.sum(y * y, axis=1, keepdims=True)


def bnrelu_conv2_with_stats(y1, scale1, shift1, w_hwio, b, Ho, Wo):
    N, C, L = y1.shape
    w_taps = jnp.transpose(w_hwio, (0, 1, 3, 2))        # (3, 3, Cout, Cin)
    kernel = functools.partial(_bnrelu_conv3x3_stats_kernel, Ho=Ho, Wo=Wo, C=C)
    y, ssum, ssq = pl.pallas_call(
        kernel,
        out_shape=(jax.ShapeDtypeStruct((N, C, L), jnp.float32),
                   jax.ShapeDtypeStruct((N, C, 1), jnp.float32),
                   jax.ShapeDtypeStruct((N, C, 1), jnp.float32)),
        grid=(N,),
        in_specs=[
            pl.BlockSpec((1, C, L), lambda n: (n, 0, 0)),
            pl.BlockSpec((C, 1), lambda n: (0, 0)),
            pl.BlockSpec((C, 1), lambda n: (0, 0)),
            pl.BlockSpec((3, 3, C, C), lambda n: (0, 0, 0, 0)),
            pl.BlockSpec((C, 1), lambda n: (0, 0)),
        ],
        out_specs=(
            pl.BlockSpec((1, C, L), lambda n: (n, 0, 0)),
            pl.BlockSpec((1, C, 1), lambda n: (n, 0, 0)),
            pl.BlockSpec((1, C, 1), lambda n: (n, 0, 0)),
        ),
        scratch_shapes=[pltpu.VMEM((C, Ho + 2, Wo + 2), jnp.float32)],
        compiler_params=pltpu.CompilerParams(
            dimension_semantics=("parallel",),
            vmem_limit_bytes=_VMEM_LIMIT),
    )(y1, scale1.reshape(C, 1).astype(jnp.float32),
      shift1.reshape(C, 1).astype(jnp.float32), w_taps,
      b.reshape(C, 1).astype(jnp.float32))
    return y, ssum, ssq


# ----------------------------------------------------------------------------
# Kernel C: final BN2-affine + ReLU (inherently a second pass over y2).
# ----------------------------------------------------------------------------
def _bnrelu_kernel(y_ref, sc_ref, sh_ref, o_ref):
    o_ref[0] = jnp.maximum(y_ref[0] * sc_ref[...] + sh_ref[...], 0.0)


def bn_relu(y, scale, shift):
    N, C, L = y.shape
    return pl.pallas_call(
        _bnrelu_kernel,
        out_shape=jax.ShapeDtypeStruct((N, C, L), jnp.float32),
        grid=(N,),
        in_specs=[
            pl.BlockSpec((1, C, L), lambda n: (n, 0, 0)),
            pl.BlockSpec((C, 1), lambda n: (0, 0)),
            pl.BlockSpec((C, 1), lambda n: (0, 0)),
        ],
        out_specs=pl.BlockSpec((1, C, L), lambda n: (n, 0, 0)),
        compiler_params=pltpu.CompilerParams(
            dimension_semantics=("parallel",),
            vmem_limit_bytes=_VMEM_LIMIT),
    )(y, scale.reshape(C, 1).astype(jnp.float32),
      shift.reshape(C, 1).astype(jnp.float32))


# ----------------------------------------------------------------------------
# BN fold (tiny per-channel math on the in-kernel-computed sums)
# ----------------------------------------------------------------------------
def _bn_scale_shift(ssum, ssq, gamma, beta, count):
    total = jnp.sum(ssum, axis=(0, 2))                  # (C,)
    total_sq = jnp.sum(ssq, axis=(0, 2))                # (C,)
    mean = total / count
    var = jnp.maximum(total_sq / count - mean * mean, 0.0)   # biased variance
    scale = gamma / jnp.sqrt(var + _EPS)
    shift = beta - mean * scale
    return scale, shift


# ----------------------------------------------------------------------------
# plainEncoderBlock forward (NCHW in / NCHW out)
# ----------------------------------------------------------------------------
def plain_encoder_block(x_nchw, params, stride):
    x = x_nchw.astype(jnp.float32)
    N = x.shape[0]

    y1, s1, q1, (Ho, Wo) = conv1_with_stats(x, params["w1"], params["b1"], stride)
    cnt = N * Ho * Wo
    sc1, sh1 = _bn_scale_shift(s1, q1, params["g1"], params["be1"], cnt)

    y2, s2, q2 = bnrelu_conv2_with_stats(y1, sc1, sh1,
                                         params["w2"], params["b2"], Ho, Wo)
    sc2, sh2 = _bn_scale_shift(s2, q2, params["g2"], params["be2"], cnt)

    out = bn_relu(y2, sc2, sh2)                         # (N, Cout, Ho*Wo)
    Cout = out.shape[1]
    return out.reshape(N, Cout, Ho, Wo)                 # contiguous reshape only


# TODO(synk): BatchNorm running_mean/running_var buffer updates (module state
# mutation) are not replicated; only the training-mode forward is computed.


# ----------------------------------------------------------------------------
# Pure-JAX reference
# ----------------------------------------------------------------------------
def _ref_block(x_nchw, params, stride):
    def conv(x, w, b, s):
        out = jax.lax.conv_general_dilated(
            x, w, window_strides=(s, s), padding=((1, 1), (1, 1)),
            dimension_numbers=("NCHW", "HWIO", "NCHW"))
        return out + b.reshape(1, -1, 1, 1)

    def bn_relu_ref(x, g, be):
        mean = jnp.mean(x, axis=(0, 2, 3), keepdims=True)
        var = jnp.var(x, axis=(0, 2, 3), keepdims=True)
        xn = (x - mean) / jnp.sqrt(var + _EPS)
        return jnp.maximum(xn * g.reshape(1, -1, 1, 1) + be.reshape(1, -1, 1, 1), 0.0)

    y = bn_relu_ref(conv(x_nchw, params["w1"], params["b1"], stride),
                    params["g1"], params["be1"])
    y = bn_relu_ref(conv(y, params["w2"], params["b2"], 1),
                    params["g2"], params["be2"])
    return y


if __name__ == "__main__":
    key = jax.random.PRNGKey(0)
    N, Cin, Hs, Ws = 2, 4, 16, 16
    Cout, stride = 8, 2

    ks = jax.random.split(key, 8)
    params = {
        # conv weights stored HWIO: (kh, kw, Cin, Cout)
        "w1": jax.random.normal(ks[0], (3, 3, Cin, Cout), jnp.float32) * 0.1,
        "b1": jax.random.normal(ks[1], (Cout,), jnp.float32) * 0.1,
        "g1": 1.0 + 0.1 * jax.random.normal(ks[2], (Cout,), jnp.float32),
        "be1": 0.1 * jax.random.normal(ks[3], (Cout,), jnp.float32),
        "w2": jax.random.normal(ks[4], (3, 3, Cout, Cout), jnp.float32) * 0.1,
        "b2": jax.random.normal(ks[5], (Cout,), jnp.float32) * 0.1,
        "g2": 1.0 + 0.1 * jax.random.normal(ks[6], (Cout,), jnp.float32),
        "be2": 0.1 * jax.random.normal(ks[7], (Cout,), jnp.float32),
    }
    x = jax.random.normal(jax.random.PRNGKey(42), (N, Cin, Hs, Ws), jnp.float32)

    fwd = jax.jit(plain_encoder_block, static_argnums=2)

    # stride = 2 (main test)
    out = jax.block_until_ready(fwd(x, params, stride))
    ref = jax.block_until_ready(_ref_block(x, params, stride))
    assert out.shape == ref.shape == (N, Cout, Hs // stride, Ws // stride)
    assert jnp.allclose(out, ref, rtol=1e-3, atol=1e-3)

    # stride = 1 path
    out1 = jax.block_until_ready(fwd(x, params, 1))
    ref1 = jax.block_until_ready(_ref_block(x, params, 1))
    assert out1.shape == ref1.shape == (N, Cout, Hs, Ws)
    assert jnp.allclose(out1, ref1, rtol=1e-3, atol=1e-3)

    print("KERNEL_OK")
</pallas_src>

<mosaic_0001>
module attributes {stable_mosaic.version = 11 : i64} {
  func.func @_conv3x3_stats_kernel(%arg0: i32, %arg1: memref<1x16x9x9xf32, #tpu.memory_space<vmem>>, %arg2: memref<3x3x8x4xf32, #tpu.memory_space<vmem>>, %arg3: memref<8x1xf32, #tpu.memory_space<vmem>>, %arg4: memref<1x8x64xf32, #tpu.memory_space<vmem>>, %arg5: memref<1x8x1xf32, #tpu.memory_space<vmem>>, %arg6: memref<1x8x1xf32, #tpu.memory_space<vmem>>) attributes {dimension_semantics = [#tpu.dimension_semantics<parallel>], iteration_bounds = array<i64: 2>, scalar_prefetch = 0 : i64, scratch_operands = 0 : i64, tpu.core_type = #tpu.core_type<tc>, window_params = [{transform_indices = @transform_0, window_bounds = array<i64: 1, 16, 9, 9>}, {pipeline_mode = #tpu.pipeline_mode<synchronous>, transform_indices = @transform_1, window_bounds = array<i64: 3, 3, 8, 4>}, {pipeline_mode = #tpu.pipeline_mode<synchronous>, transform_indices = @transform_2, window_bounds = array<i64: 8, 1>}, {transform_indices = @transform_3, window_bounds = array<i64: 1, 8, 64>}, {transform_indices = @transform_4, window_bounds = array<i64: 1, 8, 1>}, {transform_indices = @transform_5, window_bounds = array<i64: 1, 8, 1>}]} {
    %c0 = arith.constant 0 : index
    %c0_0 = arith.constant 0 : index
    %c0_1 = arith.constant 0 : index
    %c0_2 = arith.constant 0 : index
    %0 = vector.load %arg1[%c0, %c0_0, %c0_1, %c0_2] : memref<1x16x9x9xf32, #tpu.memory_space<vmem>>, vector<1x16x9x9xf32>
    %1 = vector.shape_cast %0 : vector<1x16x9x9xf32> to vector<16x9x9xf32>
    %cst = arith.constant 0.000000e+00 : f32
    %2 = vector.broadcast %cst : f32 to vector<8x64xf32>
    %3 = vector.extract_strided_slice %1 {offsets = [0, 0, 0], sizes = [4, 8, 8], strides = [1, 1, 1]} : vector<16x9x9xf32> to vector<4x8x8xf32>
    %4 = vector.shape_cast %3 : vector<4x8x8xf32> to vector<4x64xf32>
    %c0_3 = arith.constant 0 : index
    %c0_4 = arith.constant 0 : index
    %c0_5 = arith.constant 0 : index
    %c0_6 = arith.constant 0 : index
    %5 = vector.load %arg2[%c0_3, %c0_4, %c0_5, %c0_6] : memref<3x3x8x4xf32, #tpu.memory_space<vmem>>, vector<1x1x8x4xf32>
    %6 = vector.shape_cast %5 : vector<1x1x8x4xf32> to vector<8x4xf32>
    %cst_7 = arith.constant dense<0.000000e+00> : vector<8x64xf32>
    %7 = tpu.matmul %6, %4, %cst_7 {dimension_numbers = #tpu.dot_dimension_numbers<[1], [0], [0], [1], [0, 0, 1, 1], [], []>} : vector<8x4xf32>, vector<4x64xf32>, vector<8x64xf32> -> vector<8x64xf32>
    %8 = arith.addf %2, %7 : vector<8x64xf32>
    %9 = vector.extract_strided_slice %1 {offsets = [4, 0, 0], sizes = [4, 8, 8], strides = [1, 1, 1]} : vector<16x9x9xf32> to vector<4x8x8xf32>
    %10 = vector.shape_cast %9 : vector<4x8x8xf32> to vector<4x64xf32>
    %c0_8 = arith.constant 0 : index
    %c1 = arith.constant 1 : index
    %c0_9 = arith.constant 0 : index
    %c0_10 = arith.constant 0 : index
    %11 = vector.load %arg2[%c0_8, %c1, %c0_9, %c0_10] : memref<3x3x8x4xf32, #tpu.memory_space<vmem>>, vector<1x1x8x4xf32>
    %12 = vector.shape_cast %11 : vector<1x1x8x4xf32> to vector<8x4xf32>
    %cst_11 = arith.constant dense<0.000000e+00> : vector<8x64xf32>
    %13 = tpu.matmul %12, %10, %cst_11 {dimension_numbers = #tpu.dot_dimension_numbers<[1], [0], [0], [1], [0, 0, 1, 1], [], []>} : vector<8x4xf32>, vector<4x64xf32>, vector<8x64xf32> -> vector<8x64xf32>
    %14 = arith.addf %8, %13 : vector<8x64xf32>
    %15 = vector.extract_strided_slice %1 {offsets = [0, 0, 1], sizes = [4, 8, 8], strides = [1, 1, 1]} : vector<16x9x9xf32> to vector<4x8x8xf32>
    %16 = vector.shape_cast %15 : vector<4x8x8xf32> to vector<4x64xf32>
    %c0_12 = arith.constant 0 : index
    %c2 = arith.constant 2 : index
    %c0_13 = arith.constant 0 : index
    %c0_14 = arith.constant 0 : index
    %17 = vector.load %arg2[%c0_12, %c2, %c0_13, %c0_14] : memref<3x3x8x4xf32, #tpu.memory_space<vmem>>, vector<1x1x8x4xf32>
    %18 = vector.shape_cast %17 : vector<1x1x8x4xf32> to vector<8x4xf32>
    %cst_15 = arith.constant dense<0.000000e+00> : vector<8x64xf32>
    %19 = tpu.matmul %18, %16, %cst_15 {dimension_numbers = #tpu.dot_dimension_numbers<[1], [0], [0], [1], [0, 0, 1, 1], [], []>} : vector<8x4xf32>, vector<4x64xf32>, vector<8x64xf32> -> vector<8x64xf32>
    %20 = arith.addf %14, %19 : vector<8x64xf32>
    %21 = vector.extract_strided_slice %1 {offsets = [8, 0, 0], sizes = [4, 8, 8], strides = [1, 1, 1]} : vector<16x9x9xf32> to vector<4x8x8xf32>
    %22 = vector.shape_cast %21 : vector<4x8x8xf32> to vector<4x64xf32>
    %c1_16 = arith.constant 1 : index
    %c0_17 = arith.constant 0 : index
    %c0_18 = arith.constant 0 : index
    %c0_19 = arith.constant 0 : index
    %23 = vector.load %arg2[%c1_16, %c0_17, %c0_18, %c0_19] : memref<3x3x8x4xf32, #tpu.memory_space<vmem>>, vector<1x1x8x4xf32>
    %24 = vector.shape_cast %23 : vector<1x1x8x4xf32> to vector<8x4xf32>
    %cst_20 = arith.constant dense<0.000000e+00> : vector<8x64xf32>
    %25 = tpu.matmul %24, %22, %cst_20 {dimension_numbers = #tpu.dot_dimension_numbers<[1], [0], [0], [1], [0, 0, 1, 1], [], []>} : vector<8x4xf32>, vector<4x64xf32>, vector<8x64xf32> -> vector<8x64xf32>
    %26 = arith.addf %20, %25 : vector<8x64xf32>
    %27 = vector.extract_strided_slice %1 {offsets = [12, 0, 0], sizes = [4, 8, 8], strides = [1, 1, 1]} : vector<16x9x9xf32> to vector<4x8x8xf32>
    %28 = vector.shape_cast %27 : vector<4x8x8xf32> to vector<4x64xf32>
    %c1_21 = arith.constant 1 : index
    %c1_22 = arith.constant 1 : index
    %c0_23 = arith.constant 0 : index
    %c0_24 = arith.constant 0 : index
    %29 = vector.load %arg2[%c1_21, %c1_22, %c0_23, %c0_24] : memref<3x3x8x4xf32, #tpu.memory_space<vmem>>, vector<1x1x8x4xf32>
    %30 = vector.shape_cast %29 : vector<1x1x8x4xf32> to vector<8x4xf32>
    %cst_25 = arith.constant dense<0.000000e+00> : vector<8x64xf32>
    %31 = tpu.matmul %30, %28, %cst_25 {dimension_numbers = #tpu.dot_dimension_numbers<[1], [0], [0], [1], [0, 0, 1, 1], [], []>} : vector<8x4xf32>, vector<4x64xf32>, vector<8x64xf32> -> vector<8x64xf32>
    %32 = arith.addf %26, %31 : vector<8x64xf32>
    %33 = vector.extract_strided_slice %1 {offsets = [8, 0, 1], sizes = [4, 8, 8], strides = [1, 1, 1]} : vector<16x9x9xf32> to vector<4x8x8xf32>
    %34 = vector.shape_cast %33 : vector<4x8x8xf32> to vector<4x64xf32>
    %c1_26 = arith.constant 1 : index
    %c2_27 = arith.constant 2 : index
    %c0_28 = arith.constant 0 : index
    %c0_29 = arith.constant 0 : index
    %35 = vector.load %arg2[%c1_26, %c2_27, %c0_28, %c0_29] : memref<3x3x8x4xf32, #tpu.memory_space<vmem>>, vector<1x1x8x4xf32>
    %36 = vector.shape_cast %35 : vector<1x1x8x4xf32> to vector<8x4xf32>
    %cst_30 = arith.constant dense<0.000000e+00> : vector<8x64xf32>
    %37 = tpu.matmul %36, %34, %cst_30 {dimension_numbers = #tpu.dot_dimension_numbers<[1], [0], [0], [1], [0, 0, 1, 1], [], []>} : vector<8x4xf32>, vector<4x64xf32>, vector<8x64xf32> -> vector<8x64xf32>
    %38 = arith.addf %32, %37 : vector<8x64xf32>
    %39 = vector.extract_strided_slice %1 {offsets = [0, 1, 0], sizes = [4, 8, 8], strides = [1, 1, 1]} : vector<16x9x9xf32> to vector<4x8x8xf32>
    %40 = vector.shape_cast %39 : vector<4x8x8xf32> to vector<4x64xf32>
    %c2_31 = arith.constant 2 : index
    %c0_32 = arith.constant 0 : index
    %c0_33 = arith.constant 0 : index
    %c0_34 = arith.constant 0 : index
    %41 = vector.load %arg2[%c2_31, %c0_32, %c0_33, %c0_34] : memref<3x3x8x4xf32, #tpu.memory_space<vmem>>, vector<1x1x8x4xf32>
    %42 = vector.shape_cast %41 : vector<1x1x8x4xf32> to vector<8x4xf32>
    %cst_35 = arith.constant dense<0.000000e+00> : vector<8x64xf32>
    %43 = tpu.matmul %42, %40, %cst_35 {dimension_numbers = #tpu.dot_dimension_numbers<[1], [0], [0], [1], [0, 0, 1, 1], [], []>} : vector<8x4xf32>, vector<4x64xf32>, vector<8x64xf32> -> vector<8x64xf32>
    %44 = arith.addf %38, %43 : vector<8x64xf32>
    %45 = vector.extract_strided_slice %1 {offsets = [4, 1, 0], sizes = [4, 8, 8], strides = [1, 1, 1]} : vector<16x9x9xf32> to vector<4x8x8xf32>
    %46 = vector.shape_cast %45 : vector<4x8x8xf32> to vector<4x64xf32>
    %c2_36 = arith.constant 2 : index
    %c1_37 = arith.constant 1 : index
    %c0_38 = arith.constant 0 : index
    %c0_39 = arith.constant 0 : index
    %47 = vector.load %arg2[%c2_36, %c1_37, %c0_38, %c0_39] : memref<3x3x8x4xf32, #tpu.memory_space<vmem>>, vector<1x1x8x4xf32>
    %48 = vector.shape_cast %47 : vector<1x1x8x4xf32> to vector<8x4xf32>
    %cst_40 = arith.constant dense<0.000000e+00> : vector<8x64xf32>
    %49 = tpu.matmul %48, %46, %cst_40 {dimension_numbers = #tpu.dot_dimension_numbers<[1], [0], [0], [1], [0, 0, 1, 1], [], []>} : vector<8x4xf32>, vector<4x64xf32>, vector<8x64xf32> -> vector<8x64xf32>
    %50 = arith.addf %44, %49 : vector<8x64xf32>
    %51 = vector.extract_strided_slice %1 {offsets = [0, 1, 1], sizes = [4, 8, 8], strides = [1, 1, 1]} : vector<16x9x9xf32> to vector<4x8x8xf32>
    %52 = vector.shape_cast %51 : vector<4x8x8xf32> to vector<4x64xf32>
    %c2_41 = arith.constant 2 : index
    %c2_42 = arith.constant 2 : index
    %c0_43 = arith.constant 0 : index
    %c0_44 = arith.constant 0 : index
    %53 = vector.load %arg2[%c2_41, %c2_42, %c0_43, %c0_44] : memref<3x3x8x4xf32, #tpu.memory_space<vmem>>, vector<1x1x8x4xf32>
    %54 = vector.shape_cast %53 : vector<1x1x8x4xf32> to vector<8x4xf32>
    %cst_45 = arith.constant dense<0.000000e+00> : vector<8x64xf32>
    %55 = tpu.matmul %54, %52, %cst_45 {dimension_numbers = #tpu.dot_dimension_numbers<[1], [0], [0], [1], [0, 0, 1, 1], [], []>} : vector<8x4xf32>, vector<4x64xf32>, vector<8x64xf32> -> vector<8x64xf32>
    %56 = arith.addf %50, %55 : vector<8x64xf32>
    %c0_46 = arith.constant 0 : index
    %c0_47 = arith.constant 0 : index
    %57 = vector.load %arg3[%c0_46, %c0_47] : memref<8x1xf32, #tpu.memory_space<vmem>>, vector<8x1xf32>
    %58 = vector.broadcast %57 : vector<8x1xf32> to vector<8x64xf32>
    %59 = arith.addf %56, %58 : vector<8x64xf32>
    %c0_48 = arith.constant 0 : index
    %c0_49 = arith.constant 0 : index
    %c0_50 = arith.constant 0 : index
    %60 = vector.load %arg4[%c0_48, %c0_49, %c0_50] : memref<1x8x64xf32, #tpu.memory_space<vmem>>, vector<1x8x64xf32>
    %61 = vector.shape_cast %60 : vector<1x8x64xf32> to vector<8x64xf32>
    %62 = vector.shape_cast %59 : vector<8x64xf32> to vector<1x8x64xf32>
    tpu.vector_store %arg4[%c0_48, %c0_49, %c0_50], %62 {strides = array<i32>} : memref<1x8x64xf32, #tpu.memory_space<vmem>>, vector<1x8x64xf32>,
    %cst_51 = arith.constant dense<0.000000e+00> : vector<8xf32>
    %63 = vector.multi_reduction <add>, %59, %cst_51 [1] : vector<8x64xf32> to vector<8xf32>
    %64 = vector.shape_cast %63 : vector<8xf32> to vector<8x1xf32>
    %c0_52 = arith.constant 0 : index
    %c0_53 = arith.constant 0 : index
    %c0_54 = arith.constant 0 : index
    %65 = vector.load %arg5[%c0_52, %c0_53, %c0_54] : memref<1x8x1xf32, #tpu.memory_space<vmem>>, vector<1x8x1xf32>
    %66 = vector.shape_cast %65 : vector<1x8x1xf32> to vector<8x1xf32>
    %67 = vector.shape_cast %64 : vector<8x1xf32> to vector<1x8x1xf32>
    tpu.vector_store %arg5[%c0_52, %c0_53, %c0_54], %67 {strides = array<i32>} : memref<1x8x1xf32, #tpu.memory_space<vmem>>, vector<1x8x1xf32>,
    %68 = arith.mulf %59, %59 : vector<8x64xf32>
    %cst_55 = arith.constant dense<0.000000e+00> : vector<8xf32>
    %69 = vector.multi_reduction <add>, %68, %cst_55 [1] : vector<8x64xf32> to vector<8xf32>
    %70 = vector.shape_cast %69 : vector<8xf32> to vector<8x1xf32>
    %c0_56 = arith.constant 0 : index
    %c0_57 = arith.constant 0 : index
    %c0_58 = arith.constant 0 : index
    %71 = vector.load %arg6[%c0_56, %c0_57, %c0_58] : memref<1x8x1xf32, #tpu.memory_space<vmem>>, vector<1x8x1xf32>
    %72 = vector.shape_cast %71 : vector<1x8x1xf32> to vector<8x1xf32>
    %73 = vector.shape_cast %70 : vector<8x1xf32> to vector<1x8x1xf32>
    tpu.vector_store %arg6[%c0_56, %c0_57, %c0_58], %73 {strides = array<i32>} : memref<1x8x1xf32, #tpu.memory_space<vmem>>, vector<1x8x1xf32>,
    return
  }
  func.func @transform_0(%arg0: i32) -> (i32, i32, i32, i32) {
    %c0_i32 = arith.constant 0 : i32
    %c0_i32_0 = arith.constant 0 : i32
    %c0_i32_1 = arith.constant 0 : i32
    %c0_i32_2 = arith.constant 0 : i32
    return %arg0, %c0_i32, %c0_i32_0, %c0_i32_1 : i32, i32, i32, i32
  }
  func.func @transform_1(%arg0: i32) -> (i32, i32, i32, i32) {
    %c0_i32 = arith.constant 0 : i32
    %c0_i32_0 = arith.constant 0 : i32
    %c0_i32_1 = arith.constant 0 : i32
    %c0_i32_2 = arith.constant 0 : i32
    %c0_i32_3 = arith.constant 0 : i32
    return %c0_i32, %c0_i32_0, %c0_i32_1, %c0_i32_2 : i32, i32, i32, i32
  }
  func.func @transform_2(%arg0: i32) -> (i32, i32) {
    %c0_i32 = arith.constant 0 : i32
    %c0_i32_0 = arith.constant 0 : i32
    %c0_i32_1 = arith.constant 0 : i32
    return %c0_i32, %c0_i32_0 : i32, i32
  }
  func.func @transform_3(%arg0: i32) -> (i32, i32, i32) {
    %c0_i32 = arith.constant 0 : i32
    %c0_i32_0 = arith.constant 0 : i32
    %c0_i32_1 = arith.constant 0 : i32
    return %arg0, %c0_i32, %c0_i32_0 : i32, i32, i32
  }
  func.func @transform_4(%arg0: i32) -> (i32, i32, i32) {
    %c0_i32 = arith.constant 0 : i32
    %c0_i32_0 = arith.constant 0 : i32
    %c0_i32_1 = arith.constant 0 : i32
    return %arg0, %c0_i32, %c0_i32_0 : i32, i32, i32
  }
  func.func @transform_5(%arg0: i32) -> (i32, i32, i32) {
    %c0_i32 = arith.constant 0 : i32
    %c0_i32_0 = arith.constant 0 : i32
    %c0_i32_1 = arith.constant 0 : i32
    return %arg0, %c0_i32, %c0_i32_0 : i32, i32, i32
  }
}

module attributes {stable_mosaic.version = 11 : i64} {
  func.func @_bnrelu_conv3x3_stats_kernel(%arg0: i32, %arg1: memref<1x8x64xf32, #tpu.memory_space<vmem>>, %arg2: memref<8x1xf32, #tpu.memory_space<vmem>>, %arg3: memref<8x1xf32, #tpu.memory_space<vmem>>, %arg4: memref<3x3x8x8xf32, #tpu.memory_space<vmem>>, %arg5: memref<8x1xf32, #tpu.memory_space<vmem>>, %arg6: memref<1x8x64xf32, #tpu.memory_space<vmem>>, %arg7: memref<1x8x1xf32, #tpu.memory_space<vmem>>, %arg8: memref<1x8x1xf32, #tpu.memory_space<vmem>>, %arg9: memref<8x10x10xf32, #tpu.memory_space<vmem>>) attributes {dimension_semantics = [#tpu.dimension_semantics<parallel>], iteration_bounds = array<i64: 2>, scalar_prefetch = 0 : i64, scratch_operands = 1 : i64, tpu.core_type = #tpu.core_type<tc>, window_params = [{transform_indices = @transform_0, window_bounds = array<i64: 1, 8, 64>}, {pipeline_mode = #tpu.pipeline_mode<synchronous>, transform_indices = @transform_1, window_bounds = array<i64: 8, 1>}, {pipeline_mode = #tpu.pipeline_mode<synchronous>, transform_indices = @transform_2, window_bounds = array<i64: 8, 1>}, {pipeline_mode = #tpu.pipeline_mode<synchronous>, transform_indices = @transform_3, window_bounds = array<i64: 3, 3, 8, 8>}, {pipeline_mode = #tpu.pipeline_mode<synchronous>, transform_indices = @transform_4, window_bounds = array<i64: 8, 1>}, {transform_indices = @transform_5, window_bounds = array<i64: 1, 8, 64>}, {transform_indices = @transform_6, window_bounds = array<i64: 1, 8, 1>}, {transform_indices = @transform_7, window_bounds = array<i64: 1, 8, 1>}]} {
    %c0 = arith.constant 0 : index
    %c0_0 = arith.constant 0 : index
    %c0_1 = arith.constant 0 : index
    %0 = vector.load %arg1[%c0, %c0_0, %c0_1] : memref<1x8x64xf32, #tpu.memory_space<vmem>>, vector<1x8x64xf32>
    %1 = vector.shape_cast %0 : vector<1x8x64xf32> to vector<8x64xf32>
    %c0_2 = arith.constant 0 : index
    %c0_3 = arith.constant 0 : index
    %2 = vector.load %arg2[%c0_2, %c0_3] : memref<8x1xf32, #tpu.memory_space<vmem>>, vector<8x1xf32>
    %3 = vector.broadcast %2 : vector<8x1xf32> to vector<8x64xf32>
    %4 = arith.mulf %1, %3 : vector<8x64xf32>
    %c0_4 = arith.constant 0 : index
    %c0_5 = arith.constant 0 : index
    %5 = vector.load %arg3[%c0_4, %c0_5] : memref<8x1xf32, #tpu.memory_space<vmem>>, vector<8x1xf32>
    %6 = vector.broadcast %5 : vector<8x1xf32> to vector<8x64xf32>
    %7 = arith.addf %4, %6 : vector<8x64xf32>
    %cst = arith.constant 0.000000e+00 : f32
    %8 = vector.broadcast %cst : f32 to vector<8x64xf32>
    %9 = arith.maximumf %7, %8 : vector<8x64xf32>
    %cst_6 = arith.constant 0.000000e+00 : f32
    %10 = vector.broadcast %cst_6 : f32 to vector<8x10x10xf32>
    %c0_7 = arith.constant 0 : index
    %c0_8 = arith.constant 0 : index
    %c0_9 = arith.constant 0 : index
    %11 = vector.load %arg9[%c0_7, %c0_8, %c0_9] : memref<8x10x10xf32, #tpu.memory_space<vmem>>, vector<8x10x10xf32>
    tpu.vector_store %arg9[%c0_7, %c0_8, %c0_9], %10 {strides = array<i32>} : memref<8x10x10xf32, #tpu.memory_space<vmem>>, vector<8x10x10xf32>,
    %12 = vector.shape_cast %9 : vector<8x64xf32> to vector<8x8x8xf32>
    %c0_10 = arith.constant 0 : index
    %c1 = arith.constant 1 : index
    %c1_11 = arith.constant 1 : index
    %13 = vector.load %arg9[%c0_10, %c1, %c1_11] : memref<8x10x10xf32, #tpu.memory_space<vmem>>, vector<8x8x8xf32>
    tpu.vector_store %arg9[%c0_10, %c1, %c1_11], %12 {strides = array<i32>} : memref<8x10x10xf32, #tpu.memory_space<vmem>>, vector<8x8x8xf32>,
    %c0_12 = arith.constant 0 : index
    %c0_13 = arith.constant 0 : index
    %c0_14 = arith.constant 0 : index
    %14 = vector.load %arg9[%c0_12, %c0_13, %c0_14] : memref<8x10x10xf32, #tpu.memory_space<vmem>>, vector<8x10x10xf32>
    %cst_15 = arith.constant 0.000000e+00 : f32
    %15 = vector.broadcast %cst_15 : f32 to vector<8x64xf32>
    %16 = vector.extract_strided_slice %14 {offsets = [0, 0, 0], sizes = [8, 8, 8], strides = [1, 1, 1]} : vector<8x10x10xf32> to vector<8x8x8xf32>
    %17 = vector.shape_cast %16 : vector<8x8x8xf32> to vector<8x64xf32>
    %c0_16 = arith.constant 0 : index
    %c0_17 = arith.constant 0 : index
    %c0_18 = arith.constant 0 : index
    %c0_19 = arith.constant 0 : index
    %18 = vector.load %arg4[%c0_16, %c0_17, %c0_18, %c0_19] : memref<3x3x8x8xf32, #tpu.memory_space<vmem>>, vector<1x1x8x8xf32>
    %19 = vector.shape_cast %18 : vector<1x1x8x8xf32> to vector<8x8xf32>
    %cst_20 = arith.constant dense<0.000000e+00> : vector<8x64xf32>
    %20 = tpu.matmul %19, %17, %cst_20 {dimension_numbers = #tpu.dot_dimension_numbers<[1], [0], [0], [1], [0, 0, 1, 1], [], []>} : vector<8x8xf32>, vector<8x64xf32>, vector<8x64xf32> -> vector<8x64xf32>
    %21 = arith.addf %15, %20 : vector<8x64xf32>
    %22 = vector.extract_strided_slice %14 {offsets = [0, 0, 1], sizes = [8, 8, 8], strides = [1, 1, 1]} : vector<8x10x10xf32> to vector<8x8x8xf32>
    %23 = vector.shape_cast %22 : vector<8x8x8xf32> to vector<8x64xf32>
    %c0_21 = arith.constant 0 : index
    %c1_22 = arith.constant 1 : index
    %c0_23 = arith.constant 0 : index
    %c0_24 = arith.constant 0 : index
    %24 = vector.load %arg4[%c0_21, %c1_22, %c0_23, %c0_24] : memref<3x3x8x8xf32, #tpu.memory_space<vmem>>, vector<1x1x8x8xf32>
    %25 = vector.shape_cast %24 : vector<1x1x8x8xf32> to vector<8x8xf32>
    %cst_25 = arith.constant dense<0.000000e+00> : vector<8x64xf32>
    %26 = tpu.matmul %25, %23, %cst_25 {dimension_numbers = #tpu.dot_dimension_numbers<[1], [0], [0], [1], [0, 0, 1, 1], [], []>} : vector<8x8xf32>, vector<8x64xf32>, vector<8x64xf32> -> vector<8x64xf32>
    %27 = arith.addf %21, %26 : vector<8x64xf32>
    %28 = vector.extract_strided_slice %14 {offsets = [0, 0, 2], sizes = [8, 8, 8], strides = [1, 1, 1]} : vector<8x10x10xf32> to vector<8x8x8xf32>
    %29 = vector.shape_cast %28 : vector<8x8x8xf32> to vector<8x64xf32>
    %c0_26 = arith.constant 0 : index
    %c2 = arith.constant 2 : index
    %c0_27 = arith.constant 0 : index
    %c0_28 = arith.constant 0 : index
    %30 = vector.load %arg4[%c0_26, %c2, %c0_27, %c0_28] : memref<3x3x8x8xf32, #tpu.memory_space<vmem>>, vector<1x1x8x8xf32>
    %31 = vector.shape_cast %30 : vector<1x1x8x8xf32> to vector<8x8xf32>
    %cst_29 = arith.constant dense<0.000000e+00> : vector<8x64xf32>
    %32 = tpu.matmul %31, %29, %cst_29 {dimension_numbers = #tpu.dot_dimension_numbers<[1], [0], [0], [1], [0, 0, 1, 1], [], []>} : vector<8x8xf32>, vector<8x64xf32>, vector<8x64xf32> -> vector<8x64xf32>
    %33 = arith.addf %27, %32 : vector<8x64xf32>
    %34 = vector.extract_strided_slice %14 {offsets = [0, 1, 0], sizes = [8, 8, 8], strides = [1, 1, 1]} : vector<8x10x10xf32> to vector<8x8x8xf32>
    %35 = vector.shape_cast %34 : vector<8x8x8xf32> to vector<8x64xf32>
    %c1_30 = arith.constant 1 : index
    %c0_31 = arith.constant 0 : index
    %c0_32 = arith.constant 0 : index
    %c0_33 = arith.constant 0 : index
    %36 = vector.load %arg4[%c1_30, %c0_31, %c0_32, %c0_33] : memref<3x3x8x8xf32, #tpu.memory_space<vmem>>, vector<1x1x8x8xf32>
    %37 = vector.shape_cast %36 : vector<1x1x8x8xf32> to vector<8x8xf32>
    %cst_34 = arith.constant dense<0.000000e+00> : vector<8x64xf32>
    %38 = tpu.matmul %37, %35, %cst_34 {dimension_numbers = #tpu.dot_dimension_numbers<[1], [0], [0], [1], [0, 0, 1, 1], [], []>} : vector<8x8xf32>, vector<8x64xf32>, vector<8x64xf32> -> vector<8x64xf32>
    %39 = arith.addf %33, %38 : vector<8x64xf32>
    %40 = vector.extract_strided_slice %14 {offsets = [0, 1, 1], sizes = [8, 8, 8], strides = [1, 1, 1]} : vector<8x10x10xf32> to vector<8x8x8xf32>
    %41 = vector.shape_cast %40 : vector<8x8x8xf32> to vector<8x64xf32>
    %c1_35 = arith.constant 1 : index
    %c1_36 = arith.constant 1 : index
    %c0_37 = arith.constant 0 : index
    %c0_38 = arith.constant 0 : index
    %42 = vector.load %arg4[%c1_35, %c1_36, %c0_37, %c0_38] : memref<3x3x8x8xf32, #tpu.memory_space<vmem>>, vector<1x1x8x8xf32>
    %43 = vector.shape_cast %42 : vector<1x1x8x8xf32> to vector<8x8xf32>
    %cst_39 = arith.constant dense<0.000000e+00> : vector<8x64xf32>
    %44 = tpu.matmul %43, %41, %cst_39 {dimension_numbers = #tpu.dot_dimension_numbers<[1], [0], [0], [1], [0, 0, 1, 1], [], []>} : vector<8x8xf32>, vector<8x64xf32>, vector<8x64xf32> -> vector<8x64xf32>
    %45 = arith.addf %39, %44 : vector<8x64xf32>
    %46 = vector.extract_strided_slice %14 {offsets = [0, 1, 2], sizes = [8, 8, 8], strides = [1, 1, 1]} : vector<8x10x10xf32> to vector<8x8x8xf32>
    %47 = vector.shape_cast %46 : vector<8x8x8xf32> to vector<8x64xf32>
    %c1_40 = arith.constant 1 : index
    %c2_41 = arith.constant 2 : index
    %c0_42 = arith.constant 0 : index
    %c0_43 = arith.constant 0 : index
    %48 = vector.load %arg4[%c1_40, %c2_41, %c0_42, %c0_43] : memref<3x3x8x8xf32, #tpu.memory_space<vmem>>, vector<1x1x8x8xf32>
    %49 = vector.shape_cast %48 : vector<1x1x8x8xf32> to vector<8x8xf32>
    %cst_44 = arith.constant dense<0.000000e+00> : vector<8x64xf32>
    %50 = tpu.matmul %49, %47, %cst_44 {dimension_numbers = #tpu.dot_dimension_numbers<[1], [0], [0], [1], [0, 0, 1, 1], [], []>} : vector<8x8xf32>, vector<8x64xf32>, vector<8x64xf32> -> vector<8x64xf32>
    %51 = arith.addf %45, %50 : vector<8x64xf32>
    %52 = vector.extract_strided_slice %14 {offsets = [0, 2, 0], sizes = [8, 8, 8], strides = [1, 1, 1]} : vector<8x10x10xf32> to vector<8x8x8xf32>
    %53 = vector.shape_cast %52 : vector<8x8x8xf32> to vector<8x64xf32>
    %c2_45 = arith.constant 2 : index
    %c0_46 = arith.constant 0 : index
    %c0_47 = arith.constant 0 : index
    %c0_48 = arith.constant 0 : index
    %54 = vector.load %arg4[%c2_45, %c0_46, %c0_47, %c0_48] : memref<3x3x8x8xf32, #tpu.memory_space<vmem>>, vector<1x1x8x8xf32>
    %55 = vector.shape_cast %54 : vector<1x1x8x8xf32> to vector<8x8xf32>
    %cst_49 = arith.constant dense<0.000000e+00> : vector<8x64xf32>
    %56 = tpu.matmul %55, %53, %cst_49 {dimension_numbers = #tpu.dot_dimension_numbers<[1], [0], [0], [1], [0, 0, 1, 1], [], []>} : vector<8x8xf32>, vector<8x64xf32>, vector<8x64xf32> -> vector<8x64xf32>
    %57 = arith.addf %51, %56 : vector<8x64xf32>
    %58 = vector.extract_strided_slice %14 {offsets = [0, 2, 1], sizes = [8, 8, 8], strides = [1, 1, 1]} : vector<8x10x10xf32> to vector<8x8x8xf32>
    %59 = vector.shape_cast %58 : vector<8x8x8xf32> to vector<8x64xf32>
    %c2_50 = arith.constant 2 : index
    %c1_51 = arith.constant 1 : index
    %c0_52 = arith.constant 0 : index
    %c0_53 = arith.constant 0 : index
    %60 = vector.load %arg4[%c2_50, %c1_51, %c0_52, %c0_53] : memref<3x3x8x8xf32, #tpu.memory_space<vmem>>, vector<1x1x8x8xf32>
    %61 = vector.shape_cast %60 : vector<1x1x8x8xf32> to vector<8x8xf32>
    %cst_54 = arith.constant dense<0.000000e+00> : vector<8x64xf32>
    %62 = tpu.matmul %61, %59, %cst_54 {dimension_numbers = #tpu.dot_dimension_numbers<[1], [0], [0], [1], [0, 0, 1, 1], [], []>} : vector<8x8xf32>, vector<8x64xf32>, vector<8x64xf32> -> vector<8x64xf32>
    %63 = arith.addf %57, %62 : vector<8x64xf32>
    %64 = vector.extract_strided_slice %14 {offsets = [0, 2, 2], sizes = [8, 8, 8], strides = [1, 1, 1]} : vector<8x10x10xf32> to vector<8x8x8xf32>
    %65 = vector.shape_cast %64 : vector<8x8x8xf32> to vector<8x64xf32>
    %c2_55 = arith.constant 2 : index
    %c2_56 = arith.constant 2 : index
    %c0_57 = arith.constant 0 : index
    %c0_58 = arith.constant 0 : index
    %66 = vector.load %arg4[%c2_55, %c2_56, %c0_57, %c0_58] : memref<3x3x8x8xf32, #tpu.memory_space<vmem>>, vector<1x1x8x8xf32>
    %67 = vector.shape_cast %66 : vector<1x1x8x8xf32> to vector<8x8xf32>
    %cst_59 = arith.constant dense<0.000000e+00> : vector<8x64xf32>
    %68 = tpu.matmul %67, %65, %cst_59 {dimension_numbers = #tpu.dot_dimension_numbers<[1], [0], [0], [1], [0, 0, 1, 1], [], []>} : vector<8x8xf32>, vector<8x64xf32>, vector<8x64xf32> -> vector<8x64xf32>
    %69 = arith.addf %63, %68 : vector<8x64xf32>
    %c0_60 = arith.constant 0 : index
    %c0_61 = arith.constant 0 : index
    %70 = vector.load %arg5[%c0_60, %c0_61] : memref<8x1xf32, #tpu.memory_space<vmem>>, vector<8x1xf32>
    %71 = vector.broadcast %70 : vector<8x1xf32> to vector<8x64xf32>
    %72 = arith.addf %69, %71 : vector<8x64xf32>
    %c0_62 = arith.constant 0 : index
    %c0_63 = arith.constant 0 : index
    %c0_64 = arith.constant 0 : index
    %73 = vector.load %arg6[%c0_62, %c0_63, %c0_64] : memref<1x8x64xf32, #tpu.memory_space<vmem>>, vector<1x8x64xf32>
    %74 = vector.shape_cast %73 : vector<1x8x64xf32> to vector<8x64xf32>
    %75 = vector.shape_cast %72 : vector<8x64xf32> to vector<1x8x64xf32>
    tpu.vector_store %arg6[%c0_62, %c0_63, %c0_64], %75 {strides = array<i32>} : memref<1x8x64xf32, #tpu.memory_space<vmem>>, vector<1x8x64xf32>,
    %cst_65 = arith.constant dense<0.000000e+00> : vector<8xf32>
    %76 = vector.multi_reduction <add>, %72, %cst_65 [1] : vector<8x64xf32> to vector<8xf32>
    %77 = vector.shape_cast %76 : vector<8xf32> to vector<8x1xf32>
    %c0_66 = arith.constant 0 : index
    %c0_67 = arith.constant 0 : index
    %c0_68 = arith.constant 0 : index
    %78 = vector.load %arg7[%c0_66, %c0_67, %c0_68] : memref<1x8x1xf32, #tpu.memory_space<vmem>>, vector<1x8x1xf32>
    %79 = vector.shape_cast %78 : vector<1x8x1xf32> to vector<8x1xf32>
    %80 = vector.shape_cast %77 : vector<8x1xf32> to vector<1x8x1xf32>
    tpu.vector_store %arg7[%c0_66, %c0_67, %c0_68], %80 {strides = array<i32>} : memref<1x8x1xf32, #tpu.memory_space<vmem>>, vector<1x8x1xf32>,
    %81 = arith.mulf %72, %72 : vector<8x64xf32>
    %cst_69 = arith.constant dense<0.000000e+00> : vector<8xf32>
    %82 = vector.multi_reduction <add>, %81, %cst_69 [1] : vector<8x64xf32> to vector<8xf32>
    %83 = vector.shape_cast %82 : vector<8xf32> to vector<8x1xf32>
    %c0_70 = arith.constant 0 : index
    %c0_71 = arith.constant 0 : index
    %c0_72 = arith.constant 0 : index
    %84 = vector.load %arg8[%c0_70, %c0_71, %c0_72] : memref<1x8x1xf32, #tpu.memory_space<vmem>>, vector<1x8x1xf32>
    %85 = vector.shape_cast %84 : vector<1x8x1xf32> to vector<8x1xf32>
    %86 = vector.shape_cast %83 : vector<8x1xf32> to vector<1x8x1xf32>
    tpu.vector_store %arg8[%c0_70, %c0_71, %c0_72], %86 {strides = array<i32>} : memref<1x8x1xf32, #tpu.memory_space<vmem>>, vector<1x8x1xf32>,
    return
  }
  func.func @transform_0(%arg0: i32) -> (i32, i32, i32) {
    %c0_i32 = arith.constant 0 : i32
    %c0_i32_0 = arith.constant 0 : i32
    %c0_i32_1 = arith.constant 0 : i32
    return %arg0, %c0_i32, %c0_i32_0 : i32, i32, i32
  }
  func.func @transform_1(%arg0: i32) -> (i32, i32) {
    %c0_i32 = arith.constant 0 : i32
    %c0_i32_0 = arith.constant 0 : i32
    %c0_i32_1 = arith.constant 0 : i32
    return %c0_i32, %c0_i32_0 : i32, i32
  }
  func.func @transform_2(%arg0: i32) -> (i32, i32) {
    %c0_i32 = arith.constant 0 : i32
    %c0_i32_0 = arith.constant 0 : i32
    %c0_i32_1 = arith.constant 0 : i32
    return %c0_i32, %c0_i32_0 : i32, i32
  }
  func.func @transform_3(%arg0: i32) -> (i32, i32, i32, i32) {
    %c0_i32 = arith.constant 0 : i32
    %c0_i32_0 = arith.constant 0 : i32
    %c0_i32_1 = arith.constant 0 : i32
    %c0_i32_2 = arith.constant 0 : i32
    %c0_i32_3 = arith.constant 0 : i32
    return %c0_i32, %c0_i32_0, %c0_i32_1, %c0_i32_2 : i32, i32, i32, i32
  }
  func.func @transform_4(%arg0: i32) -> (i32, i32) {
    %c0_i32 = arith.constant 0 : i32
    %c0_i32_0 = arith.constant 0 : i32
    %c0_i32_1 = arith.constant 0 : i32
    return %c0_i32, %c0_i32_0 : i32, i32
  }
  func.func @transform_5(%arg0: i32) -> (i32, i32, i32) {
    %c0_i32 = arith.constant 0 : i32
    %c0_i32_0 = arith.constant 0 : i32
    %c0_i32_1 = arith.constant 0 : i32
    return %arg0, %c0_i32, %c0_i32_0 : i32, i32, i32
  }
  func.func @transform_6(%arg0: i32) -> (i32, i32, i32) {
    %c0_i32 = arith.constant 0 : i32
    %c0_i32_0 = arith.constant 0 : i32
    %c0_i32_1 = arith.constant 0 : i32
    return %arg0, %c0_i32, %c0_i32_0 : i32, i32, i32
  }
  func.func @transform_7(%arg0: i32) -> (i32, i32, i32) {
    %c0_i32 = arith.constant 0 : i32
    %c0_i32_0 = arith.constant 0 : i32
    %c0_i32_1 = arith.constant 0 : i32
    return %arg0, %c0_i32, %c0_i32_0 : i32, i32, i32
  }
}

module attributes {stable_mosaic.version = 11 : i64} {
  func.func @_bnrelu_kernel(%arg0: i32, %arg1: memref<1x8x64xf32, #tpu.memory_space<vmem>>, %arg2: memref<8x1xf32, #tpu.memory_space<vmem>>, %arg3: memref<8x1xf32, #tpu.memory_space<vmem>>, %arg4: memref<1x8x64xf32, #tpu.memory_space<vmem>>) attributes {dimension_semantics = [#tpu.dimension_semantics<parallel>], iteration_bounds = array<i64: 2>, scalar_prefetch = 0 : i64, scratch_operands = 0 : i64, tpu.core_type = #tpu.core_type<tc>, window_params = [{transform_indices = @transform_0, window_bounds = array<i64: 1, 8, 64>}, {pipeline_mode = #tpu.pipeline_mode<synchronous>, transform_indices = @transform_1, window_bounds = array<i64: 8, 1>}, {pipeline_mode = #tpu.pipeline_mode<synchronous>, transform_indices = @transform_2, window_bounds = array<i64: 8, 1>}, {transform_indices = @transform_3, window_bounds = array<i64: 1, 8, 64>}]} {
    %c0 = arith.constant 0 : index
    %c0_0 = arith.constant 0 : index
    %c0_1 = arith.constant 0 : index
    %0 = vector.load %arg1[%c0, %c0_0, %c0_1] : memref<1x8x64xf32, #tpu.memory_space<vmem>>, vector<1x8x64xf32>
    %1 = vector.shape_cast %0 : vector<1x8x64xf32> to vector<8x64xf32>
    %c0_2 = arith.constant 0 : index
    %c0_3 = arith.constant 0 : index
    %2 = vector.load %arg2[%c0_2, %c0_3] : memref<8x1xf32, #tpu.memory_space<vmem>>, vector<8x1xf32>
    %3 = vector.broadcast %2 : vector<8x1xf32> to vector<8x64xf32>
    %4 = arith.mulf %1, %3 : vector<8x64xf32>
    %c0_4 = arith.constant 0 : index
    %c0_5 = arith.constant 0 : index
    %5 = vector.load %arg3[%c0_4, %c0_5] : memref<8x1xf32, #tpu.memory_space<vmem>>, vector<8x1xf32>
    %6 = vector.broadcast %5 : vector<8x1xf32> to vector<8x64xf32>
    %7 = arith.addf %4, %6 : vector<8x64xf32>
    %cst = arith.constant 0.000000e+00 : f32
    %8 = vector.broadcast %cst : f32 to vector<8x64xf32>
    %9 = arith.maximumf %7, %8 : vector<8x64xf32>
    %c0_6 = arith.constant 0 : index
    %c0_7 = arith.constant 0 : index
    %c0_8 = arith.constant 0 : index
    %10 = vector.load %arg4[%c0_6, %c0_7, %c0_8] : memref<1x8x64xf32, #tpu.memory_space<vmem>>, vector<1x8x64xf32>
    %11 = vector.shape_cast %10 : vector<1x8x64xf32> to vector<8x64xf32>
    %12 = vector.shape_cast %9 : vector<8x64xf32> to vector<1x8x64xf32>
    tpu.vector_store %arg4[%c0_6, %c0_7, %c0_8], %12 {strides = array<i32>} : memref<1x8x64xf32, #tpu.memory_space<vmem>>, vector<1x8x64xf32>,
    return
  }
  func.func @transform_0(%arg0: i32) -> (i32, i32, i32) {
    %c0_i32 = arith.constant 0 : i32
    %c0_i32_0 = arith.constant 0 : i32
    %c0_i32_1 = arith.constant 0 : i32
    return %arg0, %c0_i32, %c0_i32_0 : i32, i32, i32
  }
  func.func @transform_1(%arg0: i32) -> (i32, i32) {
    %c0_i32 = arith.constant 0 : i32
    %c0_i32_0 = arith.constant 0 : i32
    %c0_i32_1 = arith.constant 0 : i32
    return %c0_i32, %c0_i32_0 : i32, i32
  }
  func.func @transform_2(%arg0: i32) -> (i32, i32) {
    %c0_i32 = arith.constant 0 : i32
    %c0_i32_0 = arith.constant 0 : i32
    %c0_i32_1 = arith.constant 0 : i32
    return %c0_i32, %c0_i32_0 : i32, i32
  }
  func.func @transform_3(%arg0: i32) -> (i32, i32, i32) {
    %c0_i32 = arith.constant 0 : i32
    %c0_i32_0 = arith.constant 0 : i32
    %c0_i32_1 = arith.constant 0 : i32
    return %arg0, %c0_i32, %c0_i32_0 : i32, i32, i32
  }
}

</mosaic_0001>

<llo_original>
// kernel: plain_encoder_block.5
$region0: #{plain_encoder_block.5}
  #allocation0 [shape = 'u32[]', space=smem, size = 0x4, offset = 0x4, fixed_abs, tag = 'smem constant byte address 0x4 - core index']
  #allocation1 [shape = 'u32[144,128]{1,0:T(1,128)}', space=vmem, size = 0x12000, scoped, tag = 'internal scratch']
  %s0 = inlined_call_operand.vmem [shape: f32[2,8,64], index: 0, kind: input, shape index: {}]
  %s1 = inlined_call_operand.vmem [shape: f32[8,1], index: 1, kind: input, shape index: {}]
  %s2 = inlined_call_operand.vmem [shape: f32[8,1], index: 2, kind: input, shape index: {}]
  %s3 = inlined_call_operand.vmem [shape: f32[2,8,64], index: 3, kind: output, shape index: {}]
  %s4 = sld [smem:[#allocation0]]
  $region45: #{plain_encoder_block.5} parent=0
    _
  %s6 = ssub.s32 1, %s4
  %s7 = scalar_select 0, %s6, %s4
  loop: start=0, step=1, limit=4
  $region2: #{plain_encoder_block.5} parent=0 // loop_pre_header
    _
  $region3: #{plain_encoder_block.5} parent=0 // loop_header
    %s9 = sphi 0, %s13
    %p10 = scmp.ge.s32.totalorder %s9, 4
    %s19 = sphi 0, %s21
    %s22 = sphi 0, %s19
    %s23 = sphi 0, %s22
    %s39 = sphi 0, %s23
    %s43 = sphi 0, %s43
    %s45 = sphi 0, %s43
    %s46 = sphi 0, %s45
    %s60 = sphi 0, %s46
    %s64 = sphi 0, %s64
    %s66 = sphi 0, %s64
    %s67 = sphi 0, %s66
    %s81 = sphi 0, %s67
    %s87 = sphi 0, %s89
    %s90 = sphi 0, %s87
    %s91 = sphi 0, %s90
    %s107 = sphi 0, %s91
  $region4: #{plain_encoder_block.5} parent=0 // loop_header_branch
    %12 = sbr.rel (%p10) target = $region8
  $region5: #{plain_encoder_block.5} parent=0 // loop_body
    %s14 = ssub.s32 %s9, 1
    %s15 = ssub.s32 %s9, 2
    %s16 = sadd.s32 %s9, 1
    %s17 = ssub.s32 %s9, %s16
    %p18 = scmp.eq.s32.totalorder %s17, 0
    %s20 = sadd.s32 %s19, 1
    %s21 = scalar_select %p18, %s19, %s20
    %p24 = pneg %p18
    %p25 = scmp.eq.s32.totalorder %s9, 1
    %p26 = por %p24, %p25
    %p27 = scmp.ne.s32.totalorder %s19, %s22
    %p28 = scmp.eq.s32.totalorder %s9, 0
    %p29 = por %p27, %p28
    %p30 = scmp.ne.s32.totalorder %s19, %s22
    %p31 = scmp.eq.s32.totalorder %s14, 1
    %p32 = por %p30, %p31
    %p33 = scmp.ne.s32.totalorder %s22, %s23
    %p34 = scmp.eq.s32.totalorder %s14, 0
    %p35 = por %p33, %p34
    %p36 = scmp.ne.s32.totalorder %s22, %s23
    %p37 = scmp.eq.s32.totalorder %s15, 1
    %p38 = por %p36, %p37
    %p40 = scmp.ne.s32.totalorder %s23, %s39
    %p41 = scmp.eq.s32.totalorder %s15, 0
    %p42 = por %p40, %p41
    %s44 = sadd.s32 %s43, 1
    %p47 = scmp.eq.s32.totalorder %s9, 1
    %p48 = scmp.ne.s32.totalorder %s43, %s45
    %p49 = scmp.eq.s32.totalorder %s9, 0
    %p50 = por %p48, %p49
    %p51 = scmp.ne.s32.totalorder %s43, %s45
    %p52 = scmp.eq.s32.totalorder %s14, 1
    %p53 = por %p51, %p52
    %p54 = scmp.ne.s32.totalorder %s45, %s46
    %p55 = scmp.eq.s32.totalorder %s14, 0
    %p56 = por %p54, %p55
    %p57 = scmp.ne.s32.totalorder %s45, %s46
    %p58 = scmp.eq.s32.totalorder %s15, 1
    %p59 = por %p57, %p58
    %p61 = scmp.ne.s32.totalorder %s46, %s60
    %p62 = scmp.eq.s32.totalorder %s15, 0
    %p63 = por %p61, %p62
    %s65 = sadd.s32 %s64, 1
    %p68 = scmp.eq.s32.totalorder %s9, 1
    %p69 = scmp.ne.s32.totalorder %s64, %s66
    %p70 = scmp.eq.s32.totalorder %s9, 0
    %p71 = por %p69, %p70
    %p72 = scmp.ne.s32.totalorder %s64, %s66
    %p73 = scmp.eq.s32.totalorder %s14, 1
    %p74 = por %p72, %p73
    %p75 = scmp.ne.s32.totalorder %s66, %s67
    %p76 = scmp.eq.s32.totalorder %s14, 0
    %p77 = por %p75, %p76
    %p78 = scmp.ne.s32.totalorder %s66, %s67
    %p79 = scmp.eq.s32.totalorder %s15, 1
    %p80 = por %p78, %p79
    %p82 = scmp.ne.s32.totalorder %s67, %s81
    %p83 = scmp.eq.s32.totalorder %s15, 0
    %p84 = por %p82, %p83
    %s85 = ssub.s32 %s9, %s16
    %p86 = scmp.eq.s32.totalorder %s85, 0
    %s88 = sadd.s32 %s87, 1
    %s89 = scalar_select %p86, %s87, %s88
    %p92 = pneg %p86
    %p93 = scmp.eq.s32.totalorder %s9, 1
    %p94 = por %p92, %p93
    %p95 = scmp.ne.s32.totalorder %s87, %s90
    %p96 = scmp.eq.s32.totalorder %s9, 0
    %p97 = por %p95, %p96
    %p98 = scmp.ne.s32.totalorder %s87, %s90
    %p99 = scmp.eq.s32.totalorder %s14, 1
    %p100 = por %p98, %p99
    %p101 = scmp.ne.s32.totalorder %s90, %s91
    %p102 = scmp.eq.s32.totalorder %s14, 0
    %p103 = por %p101, %p102
    %p104 = scmp.ne.s32.totalorder %s90, %s91
    %p105 = scmp.eq.s32.totalorder %s15, 1
    %p106 = por %p104, %p105
    %p108 = scmp.ne.s32.totalorder %s91, %s107
    %p109 = scmp.eq.s32.totalorder %s15, 0
    %p110 = por %p108, %p109
    %p111 = scmp.le.s32.totalorder 1, %s9
    %p112 = scmp.lt.s32.totalorder %s9, 3
    %p113 = pnand %p111, %p112
    %p114 = pneg %p113
    // Predicated region
    $region9: #{plain_encoder_block.5} parent=5 // pred_check
      _
    $region10: #{plain_encoder_block.5} parent=5 // pred_check_branch
      %116 = sbr.rel (%p113) target = $region12
    $region11: #{plain_encoder_block.5} parent=5 // pred_region
      %s117 = ssub.s32 %s9, 1
      // Predicated region
      $region13: #{plain_encoder_block.5} parent=11 // pred_check
        %p118 = pneg %p56
      $region14: #{plain_encoder_block.5} parent=11 // pred_check_branch
        %120 = sbr.rel (%p118) target = $region16
      $region15: #{plain_encoder_block.5} parent=11 // pred_region
        _
      $region16: #{plain_encoder_block.5} parent=11 // pred_fallthru
        _
      // Predicated region
      $region17: #{plain_encoder_block.5} parent=11 // pred_check
        %p121 = pneg %p77
      $region18: #{plain_encoder_block.5} parent=11 // pred_check_branch
        %123 = sbr.rel (%p121) target = $region20
      $region19: #{plain_encoder_block.5} parent=11 // pred_region
        _
      $region20: #{plain_encoder_block.5} parent=11 // pred_fallthru
        _
    $region12: #{plain_encoder_block.5} parent=5 // pred_fallthru
      _
    %p124 = scmp.lt.s32.totalorder %s9, 2
    // Predicated region
    $region21: #{plain_encoder_block.5} parent=5 // pred_check
      %p125 = pneg %p124
    $region22: #{plain_encoder_block.5} parent=5 // pred_check_branch
      %127 = sbr.rel (%p125) target = $region24
    $region23: #{plain_encoder_block.5} parent=5 // pred_region
      // Predicated region
      $region25: #{plain_encoder_block.5} parent=23 // pred_check
        %p128 = pneg %p29
      $region26: #{plain_encoder_block.5} parent=23 // pred_check_branch
        %130 = sbr.rel (%p128) target = $region28
      $region27: #{plain_encoder_block.5} parent=23 // pred_region
        %p131 = scmp.lt.s32.totalorder %s9, 1
        %s132 = scalar_select %p131, %s9, 1
        %s133 = smul.addr %s132, 8
        %s134 = scalar_lea.vmem %s0, %s133
      $region28: #{plain_encoder_block.5} parent=23 // pred_fallthru
        _
    $region24: #{plain_encoder_block.5} parent=5 // pred_fallthru
      _
    %p135 = scmp.le.s32.totalorder 1, %s9
    %p136 = scmp.lt.s32.totalorder %s9, 3
    %p137 = pnand %p135, %p136
    %p138 = pneg %p137
    // Predicated region
    $region29: #{plain_encoder_block.5} parent=5 // pred_check
      _
    $region30: #{plain_encoder_block.5} parent=5 // pred_check_branch
      %140 = sbr.rel (%p137) target = $region32
    $region31: #{plain_encoder_block.5} parent=5 // pred_region
      %s141 = ssub.s32 %s9, 1
      %p142 = scmp.lt.s32.totalorder %s14, 1
      %s143 = scalar_select %p142, %s14, 1
      %s144 = smul.addr %s143, 8
      %s145 = scalar_lea.vmem %s0, %s144
      %p146 = pneg %p35
      %p147 = pneg %p32
      %p148 = pneg %p56
      %p149 = pneg %p53
      %p150 = pneg %p77
      %p151 = pneg %p74
      %p152 = pneg %p103
      %p153 = pneg %p100
      %p154 = scmp.lt.s32.totalorder %s14, 1
      %s155 = scalar_select %p154, %s14, 1
      %s156 = smul.addr %s155, 8
      %s157 = scalar_lea.vmem %s3, %s156
      %p158 = scmp.lt.s32.totalorder %s14, 1
      %s159 = scalar_select %p158, %s14, 1
      %s160 = smul.addr %s159, 8
      %s161 = scalar_lea.vmem %s0, %s160
      %p162 = scmp.lt.s32.totalorder %s14, 1
      %s163 = scalar_select %p162, %s14, 1
      %s164 = smul.addr %s163, 8
      %s165 = scalar_lea.vmem %s3, %s164
      %v166 = vld [vmem:[%s161] sm:$0xff]
      %v167 = vld [vmem:[%s1] sm:$0xff]
      %169 = vset.pattern.permute.xlu0 0
      %170 = vperm.xlu0 %169, %v167
      %v171 = vpop.permute.xlu0 %170
      %v173 = vmul.f32 %v166, %v171
      %v174 = vld [vmem:[%s2] sm:$0xff]
      %176 = vset.pattern.permute.xlu0 0
      %177 = vperm.xlu0 %176, %v174
      %v178 = vpop.permute.xlu0 %177
      %v180 = vadd.f32 %v173, %v178
      %v181 = vmax.f32 %v180, 0.0
      %vm182 = vcmask 523264
      %183 = vst.msk [vmem:[%s165] sm:$0xff] %vm182, %v181
      %p184 = scmp.lt.s32.totalorder %s14, 1
      %s185 = scalar_select %p184, %s14, 1
      %s186 = smul.addr %s185, 8
      %s187 = scalar_lea.vmem %s3, %s186
      // Predicated region
      $region33: #{plain_encoder_block.5} parent=31 // pred_check
        %p188 = pneg %p100
      $region34: #{plain_encoder_block.5} parent=31 // pred_check_branch
        %190 = sbr.rel (%p188) target = $region36
      $region35: #{plain_encoder_block.5} parent=31 // pred_region
        _
      $region36: #{plain_encoder_block.5} parent=31 // pred_fallthru
        _
    $region32: #{plain_encoder_block.5} parent=5 // pred_fallthru
      _
    %p191 = scmp.le.s32.totalorder 2, %s9
    // Predicated region
    $region37: #{plain_encoder_block.5} parent=5 // pred_check
      %p192 = pneg %p191
    $region38: #{plain_encoder_block.5} parent=5 // pred_check_branch
      %194 = sbr.rel (%p192) target = $region40
    $region39: #{plain_encoder_block.5} parent=5 // pred_region
      %s195 = ssub.s32 %s9, 2
      // Predicated region
      $region41: #{plain_encoder_block.5} parent=39 // pred_check
        %p196 = pneg %p106
      $region42: #{plain_encoder_block.5} parent=39 // pred_check_branch
        %198 = sbr.rel (%p196) target = $region44
      $region43: #{plain_encoder_block.5} parent=39 // pred_region
        %p199 = scmp.lt.s32.totalorder %s15, 1
        %s200 = scalar_select %p199, %s15, 1
        %s201 = smul.addr %s200, 8
        %s202 = scalar_lea.vmem %s3, %s201
      $region44: #{plain_encoder_block.5} parent=39 // pred_fallthru
        _
    $region40: #{plain_encoder_block.5} parent=5 // pred_fallthru
      _
  $region6: #{plain_encoder_block.5} parent=0 // loop_footer
    %s13 = sadd.s32 1, %s9
  $region7: #{plain_encoder_block.5} parent=0 // loop_footer_branch
    %8 = sbr.rel target = $region3
  $region8: #{plain_encoder_block.5} parent=0 // loop_exit
    _

// kernel: plain_encoder_block.3
$region0: #{plain_encoder_block.3}
  #allocation0 [shape = 'u32[]', space=smem, size = 0x4, offset = 0x4, fixed_abs, tag = 'smem constant byte address 0x4 - core index']
  #allocation1 [shape = 'u32[144,128]{1,0:T(1,128)}', space=vmem, size = 0x12000, scoped, tag = 'internal scratch']
  %s0 = inlined_call_operand.vmem [shape: f32[2,16,9,9], index: 0, kind: input, shape index: {}]
  %s1 = inlined_call_operand.vmem [shape: f32[3,3,8,4], index: 1, kind: input, shape index: {}]
  %s2 = inlined_call_operand.vmem [shape: f32[8,1], index: 2, kind: input, shape index: {}]
  %s3 = inlined_call_operand.vmem [shape: f32[2,8,64], index: 3, kind: output, shape index: {0}]
  %s4 = inlined_call_operand.vmem [shape: f32[2,8,1], index: 4, kind: output, shape index: {1}]
  %s5 = inlined_call_operand.vmem [shape: f32[2,8,1], index: 5, kind: output, shape index: {2}]
  %6 = xla_tuple %s3, %s4, %s5
  %s7 = sld [smem:[#allocation0]]
  $region61: #{plain_encoder_block.3} parent=0
    _
  %s9 = ssub.s32 1, %s7
  %s10 = scalar_select 0, %s9, %s7
  loop: start=0, step=1, limit=4
  $region2: #{plain_encoder_block.3} parent=0 // loop_pre_header
    _
  $region3: #{plain_encoder_block.3} parent=0 // loop_header
    %s12 = sphi 0, %s16
    %p13 = scmp.ge.s32.totalorder %s12, 4
    %s22 = sphi 0, %s24
    %s25 = sphi 0, %s22
    %s26 = sphi 0, %s25
    %s42 = sphi 0, %s26
    %s46 = sphi 0, %s46
    %s48 = sphi 0, %s46
    %s49 = sphi 0, %s48
    %s63 = sphi 0, %s49
    %s67 = sphi 0, %s67
    %s69 = sphi 0, %s67
    %s70 = sphi 0, %s69
    %s84 = sphi 0, %s70
    %s90 = sphi 0, %s92
    %s93 = sphi 0, %s90
    %s94 = sphi 0, %s93
    %s110 = sphi 0, %s94
    %s116 = sphi 0, %s118
    %s119 = sphi 0, %s116
    %s120 = sphi 0, %s119
    %s136 = sphi 0, %s120
    %s142 = sphi 0, %s144
    %s145 = sphi 0, %s142
    %s146 = sphi 0, %s145
    %s162 = sphi 0, %s146
  $region4: #{plain_encoder_block.3} parent=0 // loop_header_branch
    %15 = sbr.rel (%p13) target = $region8
  $region5: #{plain_encoder_block.3} parent=0 // loop_body
    %s17 = ssub.s32 %s12, 1
    %s18 = ssub.s32 %s12, 2
    %s19 = sadd.s32 %s12, 1
    %s20 = ssub.s32 %s12, %s19
    %p21 = scmp.eq.s32.totalorder %s20, 0
    %s23 = sadd.s32 %s22, 1
    %s24 = scalar_select %p21, %s22, %s23
    %p27 = pneg %p21
    %p28 = scmp.eq.s32.totalorder %s12, 1
    %p29 = por %p27, %p28
    %p30 = scmp.ne.s32.totalorder %s22, %s25
    %p31 = scmp.eq.s32.totalorder %s12, 0
    %p32 = por %p30, %p31
    %p33 = scmp.ne.s32.totalorder %s22, %s25
    %p34 = scmp.eq.s32.totalorder %s17, 1
    %p35 = por %p33, %p34
    %p36 = scmp.ne.s32.totalorder %s25, %s26
    %p37 = scmp.eq.s32.totalorder %s17, 0
    %p38 = por %p36, %p37
    %p39 = scmp.ne.s32.totalorder %s25, %s26
    %p40 = scmp.eq.s32.totalorder %s18, 1
    %p41 = por %p39, %p40
    %p43 = scmp.ne.s32.totalorder %s26, %s42
    %p44 = scmp.eq.s32.totalorder %s18, 0
    %p45 = por %p43, %p44
    %s47 = sadd.s32 %s46, 1
    %p50 = scmp.eq.s32.totalorder %s12, 1
    %p51 = scmp.ne.s32.totalorder %s46, %s48
    %p52 = scmp.eq.s32.totalorder %s12, 0
    %p53 = por %p51, %p52
    %p54 = scmp.ne.s32.totalorder %s46, %s48
    %p55 = scmp.eq.s32.totalorder %s17, 1
    %p56 = por %p54, %p55
    %p57 = scmp.ne.s32.totalorder %s48, %s49
    %p58 = scmp.eq.s32.totalorder %s17, 0
    %p59 = por %p57, %p58
    %p60 = scmp.ne.s32.totalorder %s48, %s49
    %p61 = scmp.eq.s32.totalorder %s18, 1
    %p62 = por %p60, %p61
    %p64 = scmp.ne.s32.totalorder %s49, %s63
    %p65 = scmp.eq.s32.totalorder %s18, 0
    %p66 = por %p64, %p65
    %s68 = sadd.s32 %s67, 1
    %p71 = scmp.eq.s32.totalorder %s12, 1
    %p72 = scmp.ne.s32.totalorder %s67, %s69
    %p73 = scmp.eq.s32.totalorder %s12, 0
    %p74 = por %p72, %p73
    %p75 = scmp.ne.s32.totalorder %s67, %s69
    %p76 = scmp.eq.s32.totalorder %s17, 1
    %p77 = por %p75, %p76
    %p78 = scmp.ne.s32.totalorder %s69, %s70
    %p79 = scmp.eq.s32.totalorder %s17, 0
    %p80 = por %p78, %p79
    %p81 = scmp.ne.s32.totalorder %s69, %s70
    %p82 = scmp.eq.s32.totalorder %s18, 1
    %p83 = por %p81, %p82
    %p85 = scmp.ne.s32.totalorder %s70, %s84
    %p86 = scmp.eq.s32.totalorder %s18, 0
    %p87 = por %p85, %p86
    %s88 = ssub.s32 %s12, %s19
    %p89 = scmp.eq.s32.totalorder %s88, 0
    %s91 = sadd.s32 %s90, 1
    %s92 = scalar_select %p89, %s90, %s91
    %p95 = pneg %p89
    %p96 = scmp.eq.s32.totalorder %s12, 1
    %p97 = por %p95, %p96
    %p98 = scmp.ne.s32.totalorder %s90, %s93
    %p99 = scmp.eq.s32.totalorder %s12, 0
    %p100 = por %p98, %p99
    %p101 = scmp.ne.s32.totalorder %s90, %s93
    %p102 = scmp.eq.s32.totalorder %s17, 1
    %p103 = por %p101, %p102
    %p104 = scmp.ne.s32.totalorder %s93, %s94
    %p105 = scmp.eq.s32.totalorder %s17, 0
    %p106 = por %p104, %p105
    %p107 = scmp.ne.s32.totalorder %s93, %s94
    %p108 = scmp.eq.s32.totalorder %s18, 1
    %p109 = por %p107, %p108
    %p111 = scmp.ne.s32.totalorder %s94, %s110
    %p112 = scmp.eq.s32.totalorder %s18, 0
    %p113 = por %p111, %p112
    %s114 = ssub.s32 %s12, %s19
    %p115 = scmp.eq.s32.totalorder %s114, 0
    %s117 = sadd.s32 %s116, 1
    %s118 = scalar_select %p115, %s116, %s117
    %p121 = pneg %p115
    %p122 = scmp.eq.s32.totalorder %s12, 1
    %p123 = por %p121, %p122
    %p124 = scmp.ne.s32.totalorder %s116, %s119
    %p125 = scmp.eq.s32.totalorder %s12, 0
    %p126 = por %p124, %p125
    %p127 = scmp.ne.s32.totalorder %s116, %s119
    %p128 = scmp.eq.s32.totalorder %s17, 1
    %p129 = por %p127, %p128
    %p130 = scmp.ne.s32.totalorder %s119, %s120
    %p131 = scmp.eq.s32.totalorder %s17, 0
    %p132 = por %p130, %p131
    %p133 = scmp.ne.s32.totalorder %s119, %s120
    %p134 = scmp.eq.s32.totalorder %s18, 1
    %p135 = por %p133, %p134
    %p137 = scmp.ne.s32.totalorder %s120, %s136
    %p138 = scmp.eq.s32.totalorder %s18, 0
    %p139 = por %p137, %p138
    %s140 = ssub.s32 %s12, %s19
    %p141 = scmp.eq.s32.totalorder %s140, 0
    %s143 = sadd.s32 %s142, 1
    %s144 = scalar_select %p141, %s142, %s143
    %p147 = pneg %p141
    %p148 = scmp.eq.s32.totalorder %s12, 1
    %p149 = por %p147, %p148
    %p150 = scmp.ne.s32.totalorder %s142, %s145
    %p151 = scmp.eq.s32.totalorder %s12, 0
    %p152 = por %p150, %p151
    %p153 = scmp.ne.s32.totalorder %s142, %s145
    %p154 = scmp.eq.s32.totalorder %s17, 1
    %p155 = por %p153, %p154
    %p156 = scmp.ne.s32.totalorder %s145, %s146
    %p157 = scmp.eq.s32.totalorder %s17, 0
    %p158 = por %p156, %p157
    %p159 = scmp.ne.s32.totalorder %s145, %s146
    %p160 = scmp.eq.s32.totalorder %s18, 1
    %p161 = por %p159, %p160
    %p163 = scmp.ne.s32.totalorder %s146, %s162
    %p164 = scmp.eq.s32.totalorder %s18, 0
    %p165 = por %p163, %p164
    %p166 = scmp.le.s32.totalorder 1, %s12
    %p167 = scmp.lt.s32.totalorder %s12, 3
    %p168 = pnand %p166, %p167
    %p169 = pneg %p168
    // Predicated region
    $region9: #{plain_encoder_block.3} parent=5 // pred_check
      _
    $region10: #{plain_encoder_block.3} parent=5 // pred_check_branch
      %171 = sbr.rel (%p168) target = $region12
    $region11: #{plain_encoder_block.3} parent=5 // pred_region
      %s172 = ssub.s32 %s12, 1
      // Predicated region
      $region13: #{plain_encoder_block.3} parent=11 // pred_check
        %p173 = pneg %p59
      $region14: #{plain_encoder_block.3} parent=11 // pred_check_branch
        %175 = sbr.rel (%p173) target = $region16
      $region15: #{plain_encoder_block.3} parent=11 // pred_region
        _
      $region16: #{plain_encoder_block.3} parent=11 // pred_fallthru
        _
      // Predicated region
      $region17: #{plain_encoder_block.3} parent=11 // pred_check
        %p176 = pneg %p80
      $region18: #{plain_encoder_block.3} parent=11 // pred_check_branch
        %178 = sbr.rel (%p176) target = $region20
      $region19: #{plain_encoder_block.3} parent=11 // pred_region
        _
      $region20: #{plain_encoder_block.3} parent=11 // pred_fallthru
        _
    $region12: #{plain_encoder_block.3} parent=5 // pred_fallthru
      _
    %p179 = scmp.lt.s32.totalorder %s12, 2
    // Predicated region
    $region21: #{plain_encoder_block.3} parent=5 // pred_check
      %p180 = pneg %p179
    $region22: #{plain_encoder_block.3} parent=5 // pred_check_branch
      %182 = sbr.rel (%p180) target = $region24
    $region23: #{plain_encoder_block.3} parent=5 // pred_region
      // Predicated region
      $region25: #{plain_encoder_block.3} parent=23 // pred_check
        %p183 = pneg %p32
      $region26: #{plain_encoder_block.3} parent=23 // pred_check_branch
        %185 = sbr.rel (%p183) target = $region28
      $region27: #{plain_encoder_block.3} parent=23 // pred_region
        %p186 = scmp.lt.s32.totalorder %s12, 1
        %s187 = scalar_select %p186, %s12, 1
        %s188 = smul.addr %s187, 32
        %s189 = smul.addr %s188, 8
        %s190 = scalar_lea.vmem %s0, %s189
      $region28: #{plain_encoder_block.3} parent=23 // pred_fallthru
        _
    $region24: #{plain_encoder_block.3} parent=5 // pred_fallthru
      _
    %p191 = scmp.le.s32.totalorder 1, %s12
    %p192 = scmp.lt.s32.totalorder %s12, 3
    %p193 = pnand %p191, %p192
    %p194 = pneg %p193
    // Predicated region
    $region29: #{plain_encoder_block.3} parent=5 // pred_check
      _
    $region30: #{plain_encoder_block.3} parent=5 // pred_check_branch
      %196 = sbr.rel (%p193) target = $region32
    $region31: #{plain_encoder_block.3} parent=5 // pred_region
      %s197 = ssub.s32 %s12, 1
      %p198 = scmp.lt.s32.totalorder %s17, 1
      %s199 = scalar_select %p198, %s17, 1
      %s200 = smul.addr %s199, 32
      %s201 = smul.addr %s200, 8
      %s202 = scalar_lea.vmem %s0, %s201
      %p203 = pneg %p38
      %p204 = pneg %p35
      %p205 = pneg %p59
      %p206 = pneg %p56
      %p207 = pneg %p80
      %p208 = pneg %p77
      %p209 = pneg %p106
      %p210 = pneg %p103
      %p211 = scmp.lt.s32.totalorder %s17, 1
      %s212 = scalar_select %p211, %s17, 1
      %s213 = smul.addr %s212, 8
      %s214 = scalar_lea.vmem %s3, %s213
      %p215 = pneg %p132
      %p216 = pneg %p129
      %p217 = scmp.lt.s32.totalorder %s17, 1
      %s218 = scalar_select %p217, %s17, 1
      %s219 = smul.addr %s218, 8
      %s220 = scalar_lea.vmem %s4, %s219
      %p221 = pneg %p158
      %p222 = pneg %p155
      %p223 = scmp.lt.s32.totalorder %s17, 1
      %s224 = scalar_select %p223, %s17, 1
      %s225 = smul.addr %s224, 8
      %s226 = scalar_lea.vmem %s5, %s225
      %p227 = scmp.lt.s32.totalorder %s17, 1
      %s228 = scalar_select %p227, %s17, 1
      %s229 = smul.addr %s228, 32
      %s230 = smul.addr %s229, 8
      %s231 = scalar_lea.vmem %s0, %s230
      %p232 = scmp.lt.s32.totalorder %s17, 1
      %s233 = scalar_select %p232, %s17, 1
      %s234 = smul.addr %s233, 8
      %s235 = scalar_lea.vmem %s3, %s234
      %p236 = scmp.lt.s32.totalorder %s17, 1
      %s237 = scalar_select %p236, %s17, 1
      %s238 = smul.addr %s237, 8
      %s239 = scalar_lea.vmem %s4, %s238
      %p240 = scmp.lt.s32.totalorder %s17, 1
      %s241 = scalar_select %p240, %s17, 1
      %s242 = smul.addr %s241, 8
      %s243 = scalar_lea.vmem %s5, %s242
      %v244 = vld [vmem:[%s231] sm:$0xff]
      %v245 = vld [vmem:[%s231 + $0x8] sm:$0x1]
      %v246 = vld [vmem:[%s231 + $0x10] sm:$0xff]
      %v247 = vld [vmem:[%s231 + $0x18] sm:$0x1]
      %v248 = vld [vmem:[%s231 + $0x20] sm:$0xff]
      %v249 = vld [vmem:[%s231 + $0x28] sm:$0x1]
      %v250 = vld [vmem:[%s231 + $0x30] sm:$0xff]
      %v251 = vld [vmem:[%s231 + $0x38] sm:$0x1]
      %v252 = vld [vmem:[%s231 + $0x40] sm:$0xff]
      %v253 = vld [vmem:[%s231 + $0x48] sm:$0x1]
      %v254 = vld [vmem:[%s231 + $0x50] sm:$0xff]
      %v255 = vld [vmem:[%s231 + $0x58] sm:$0x1]
      %v256 = vld [vmem:[%s231 + $0x60] sm:$0xff]
      %v257 = vld [vmem:[%s231 + $0x68] sm:$0x1]
      %v258 = vld [vmem:[%s231 + $0x70] sm:$0xff]
      %v259 = vld [vmem:[%s231 + $0x78] sm:$0x1]
      %v260 = vld [vmem:[%s231 + $0x80] sm:$0xff]
      %v261 = vld [vmem:[%s231 + $0x90] sm:$0xff]
      %v262 = vld [vmem:[%s231 + $0xa0] sm:$0xff]
      %v263 = vld [vmem:[%s231 + $0xb0] sm:$0xff]
      %v264 = vld [vmem:[%s231 + $0xc0] sm:$0xff]
      %v265 = vld [vmem:[%s231 + $0xd0] sm:$0xff]
      %v266 = vld [vmem:[%s231 + $0xe0] sm:$0xff]
      %v267 = vld [vmem:[%s231 + $0xf0] sm:$0xff]
      %v268 = vcombine.low %v244, %v248
      %v269 = vcombine.high %v244, %v248
      %v271 = vunpack.c.l.s4 1983009808
      %v272 = vunpack.c.0.s8 %v271
      %v273 = vlaneseq
      %v274 = vshrl.u32 %v273, 7
      %v275 = vsub.s32 %v272, %v274
      %v276 = vrot.slane %v268, %v275
      %v278 = vunpack.c.l.s4 1983009808
      %v279 = vunpack.c.0.s8 %v278
      %v280 = vlaneseq
      %v281 = vshrl.u32 %v280, 7
      %v282 = vsub.s32 %v279, %v281
      %v283 = vrot.slane %v269, %v282
      %v284 = vcombine.low %v246, %v250
      %v285 = vcombine.high %v246, %v250
      %v287 = vunpack.c.l.s4 1983009808
      %v288 = vunpack.c.0.s8 %v287
      %v289 = vlaneseq
      %v290 = vshrl.u32 %v289, 7
      %v291 = vsub.s32 %v288, %v290
      %v292 = vrot.slane %v284, %v291
      %v294 = vunpack.c.l.s4 1983009808
      %v295 = vunpack.c.0.s8 %v294
      %v296 = vlaneseq
      %v297 = vshrl.u32 %v296, 7
      %v298 = vsub.s32 %v295, %v297
      %v299 = vrot.slane %v285, %v298
      %v300 = vcombine.low %v276, %v292
      %v301 = vcombine.high %v276, %v292
      %v303 = vunpack.c.l.s4 1934713408
      %v304 = vunpack.c.0.s8 %v303
      %v305 = vlaneseq
      %v306 = vshrl.u32 %v305, 7
      %v307 = vsub.s32 %v304, %v306
      %v308 = vrot.slane %v300, %v307
      %v310 = vunpack.c.l.s4 1934713408
      %v311 = vunpack.c.0.s8 %v310
      %v312 = vlaneseq
      %v313 = vshrl.u32 %v312, 7
      %v314 = vsub.s32 %v311, %v313
      %v315 = vrot.slane %v301, %v314
      %v316 = vcombine.low %v283, %v299
      %v317 = vcombine.high %v283, %v299
      %v319 = vunpack.c.l.s4 1934713408
      %v320 = vunpack.c.0.s8 %v319
      %v321 = vlaneseq
      %v322 = vshrl.u32 %v321, 7
      %v323 = vsub.s32 %v320, %v322
      %v324 = vrot.slane %v316, %v323
      %v326 = vunpack.c.l.s4 1934713408
      %v327 = vunpack.c.0.s8 %v326
      %v328 = vlaneseq
      %v329 = vshrl.u32 %v328, 7
      %v330 = vsub.s32 %v327, %v329
      %v331 = vrot.slane %v317, %v330
      %v332 = vcombine.high %v308, 0.0
      %v333 = vcombine.high %v315, 0.0
      %v334 = vcombine.high %v324, 0.0
      %v335 = vcombine.high %v331, 0.0
      %337 = vrot.lane.b32.xlu0 %v332, 8
      %v338 = vpop.permute.xlu0 %337
      %341 = vrot.lane.b32.xlu0 %v315, 16
      %v342 = vpop.permute.xlu0 %341
      %345 = vrot.lane.b32.xlu0 %v333, 24
      %v346 = vpop.permute.xlu0 %345
      %349 = vrot.lane.b32.xlu0 %v324, 32
      %v350 = vpop.permute.xlu0 %349
      %353 = vrot.lane.b32.xlu0 %v334, 40
      %v354 = vpop.permute.xlu0 %353
      %357 = vrot.lane.b32.xlu0 %v331, 48
      %v358 = vpop.permute.xlu0 %357
      %361 = vrot.lane.b32.xlu0 %v335, 56
      %v362 = vpop.permute.xlu0 %361
      %vm364 = vcmask 64512
      %v365 = vsel %vm364, %v308, %v338
      %vm366 = vcmask 130048
      %v367 = vsel %vm366, %v365, %v342
      %vm368 = vcmask 195584
      %v369 = vsel %vm368, %v367, %v346
      %vm370 = vcmask 261120
      %v371 = vsel %vm370, %v369, %v350
      %vm372 = vcmask 326656
      %v373 = vsel %vm372, %v371, %v354
      %vm374 = vcmask 392192
      %v375 = vsel %vm374, %v373, %v358
      %vm376 = vcmask 457728
      %v377 = vsel %vm376, %v375, %v362
      %v378 = vld [vmem:[%s1] sm:$0xff]
      %v379 = vcombine.low %v252, %v256
      %v380 = vcombine.high %v252, %v256
      %v382 = vunpack.c.l.s4 1983009808
      %v383 = vunpack.c.0.s8 %v382
      %v384 = vlaneseq
      %v385 = vshrl.u32 %v384, 7
      %v386 = vsub.s32 %v383, %v385
      %v387 = vrot.slane %v379, %v386
      %v389 = vunpack.c.l.s4 1983009808
      %v390 = vunpack.c.0.s8 %v389
      %v391 = vlaneseq
      %v392 = vshrl.u32 %v391, 7
      %v393 = vsub.s32 %v390, %v392
      %v394 = vrot.slane %v380, %v393
      %v395 = vcombine.low %v254, %v258
      %v396 = vcombine.high %v254, %v258
      %v398 = vunpack.c.l.s4 1983009808
      %v399 = vunpack.c.0.s8 %v398
      %v400 = vlaneseq
      %v401 = vshrl.u32 %v400, 7
      %v402 = vsub.s32 %v399, %v401
      %v403 = vrot.slane %v395, %v402
      %v405 = vunpack.c.l.s4 1983009808
      %v406 = vunpack.c.0.s8 %v405
      %v407 = vlaneseq
      %v408 = vshrl.u32 %v407, 7
      %v409 = vsub.s32 %v406, %v408
      %v410 = vrot.slane %v396, %v409
      %v411 = vcombine.low %v387, %v403
      %v412 = vcombine.high %v387, %v403
      %v414 = vunpack.c.l.s4 1934713408
      %v415 = vunpack.c.0.s8 %v414
      %v416 = vlaneseq
      %v417 = vshrl.u32 %v416, 7
      %v418 = vsub.s32 %v415, %v417
      %v419 = vrot.slane %v411, %v418
      %v421 = vunpack.c.l.s4 1934713408
      %v422 = vunpack.c.0.s8 %v421
      %v423 = vlaneseq
      %v424 = vshrl.u32 %v423, 7
      %v425 = vsub.s32 %v422, %v424
      %v426 = vrot.slane %v412, %v425
      %v427 = vcombine.low %v394, %v410
      %v428 = vcombine.high %v394, %v410
      %v430 = vunpack.c.l.s4 1934713408
      %v431 = vunpack.c.0.s8 %v430
      %v432 = vlaneseq
      %v433 = vshrl.u32 %v432, 7
      %v434 = vsub.s32 %v431, %v433
      %v435 = vrot.slane %v427, %v434
      %v437 = vunpack.c.l.s4 1934713408
      %v438 = vunpack.c.0.s8 %v437
      %v439 = vlaneseq
      %v440 = vshrl.u32 %v439, 7
      %v441 = vsub.s32 %v438, %v440
      %v442 = vrot.slane %v428, %v441
      %v443 = vcombine.high %v419, 0.0
      %v444 = vcombine.high %v426, 0.0
      %v445 = vcombine.high %v435, 0.0
      %v446 = vcombine.high %v442, 0.0
      %448 = vrot.lane.b32.xlu0 %v443, 8
      %v449 = vpop.permute.xlu0 %448
      %452 = vrot.lane.b32.xlu0 %v426, 16
      %v453 = vpop.permute.xlu0 %452
      %456 = vrot.lane.b32.xlu0 %v444, 24
      %v457 = vpop.permute.xlu0 %456
      %460 = vrot.lane.b32.xlu0 %v435, 32
      %v461 = vpop.permute.xlu0 %460
      %464 = vrot.lane.b32.xlu0 %v445, 40
      %v465 = vpop.permute.xlu0 %464
      %468 = vrot.lane.b32.xlu0 %v442, 48
      %v469 = vpop.permute.xlu0 %468
      %472 = vrot.lane.b32.xlu0 %v446, 56
      %v473 = vpop.permute.xlu0 %472
      %v475 = vsel %vm364, %v419, %v449
      %v476 = vsel %vm366, %v475, %v453
      %v477 = vsel %vm368, %v476, %v457
      %v478 = vsel %vm370, %v477, %v461
      %v479 = vsel %vm372, %v478, %v465
      %v480 = vsel %vm374, %v479, %v469
      %v481 = vsel %vm376, %v480, %v473
      %s482 = scalar_lea.vmem %s1, 8
      %v483 = vld [vmem:[%s482] sm:$0xff]
      %vm484 = vcmask 31744
      %v486 = vsel %vm484, %v483, 0
      %vm488 = vcmask 1043456
      %v490 = vsel %vm488, %v481, 0
      %492 = vmatprep.subr.mxu0 0.0
      %493 = vmatpush1.msra.mxu0 %v490
      %494 = vmatprep.subr.mxu0 0.0
      %495 = vmatpush1.msra.mxu0 0.0
      %496 = vmatprep.subr.mxu0 0.0
      %497 = vmatpush1.msra.mxu0 0.0
      %498 = vmatprep.subr.mxu0 0.0
      %499 = vmatpush1.msra.mxu0 0.0
      %500 = vmatprep.subr.mxu0 0.0
      %501 = vmatpush1.msra.mxu0 0.0
      %502 = vmatprep.subr.mxu0 0.0
      %503 = vmatpush1.msra.mxu0 0.0
      %504 = vmatprep.subr.mxu0 0.0
      %505 = vmatpush1.msra.mxu0 0.0
      %506 = vmatprep.subr.mxu0 0.0
      %507 = vmatpush1.msra.mxu0 0.0
      %508 = vmatprep.subr.mxu0 0.0
      %509 = vmatpush1.msra.mxu0 0.0
      %510 = vmatprep.subr.mxu0 0.0
      %511 = vmatpush1.msra.mxu0 0.0
      %512 = vmatprep.subr.mxu0 0.0
      %513 = vmatpush1.msra.mxu0 0.0
      %514 = vmatprep.subr.mxu0 0.0
      %515 = vmatpush1.msra.mxu0 0.0
      %516 = vmatprep.subr.mxu0 0.0
      %517 = vmatpush1.msra.mxu0 0.0
      %518 = vmatprep.subr.mxu0 0.0
      %519 = vmatpush1.msra.mxu0 0.0
      %520 = vmatprep.subr.mxu0 0.0
      %521 = vmatpush1.msra.mxu0 0.0
      %522 = vmatprep.subr.mxu0 0.0
      %523 = vmatpush1.msra.mxu0 0.0
      %524 = vmatprep.subr.mxu0 0.0
      %525 = vmatpush1.msra.mxu0 0.0
      %526 = vmatprep.subr.mxu0 0.0
      %527 = vmatpush1.msra.mxu0 0.0
      %528 = vmatprep.subr.mxu0 0.0
      %529 = vmatpush1.msra.mxu0 0.0
      %530 = vmatprep.subr.mxu0 0.0
      %531 = vmatpush1.msra.mxu0 0.0
      %532 = vmatprep.subr.mxu0 0.0
      %533 = vmatpush1.msra.mxu0 0.0
      %534 = vmatprep.subr.mxu0 0.0
      %535 = vmatpush1.msra.mxu0 0.0
      %536 = vmatprep.subr.mxu0 0.0
      %537 = vmatpush1.msra.mxu0 0.0
      %538 = vmatprep.subr.mxu0 0.0
      %539 = vmatpush1.msra.mxu0 0.0
      %540 = vmatprep.subr.mxu0 0.0
      %541 = vmatpush1.msra.mxu0 0.0
      %542 = vmatprep.subr.mxu0 0.0
      %543 = vmatpush1.msra.mxu0 0.0
      %544 = vmatprep.subr.mxu0 0.0
      %545 = vmatpush1.msra.mxu0 0.0
      %546 = vmatprep.subr.mxu0 0.0
      %547 = vmatpush1.msra.mxu0 0.0
      %548 = vmatprep.subr.mxu0 0.0
      %549 = vmatpush1.msra.mxu0 0.0
      %550 = vmatprep.subr.mxu0 0.0
      %551 = vmatpush1.msra.mxu0 0.0
      %552 = vmatprep.subr.mxu0 0.0
      %553 = vmatpush1.msra.mxu0 0.0
      %554 = vmatprep.subr.mxu0 0.0
      %555 = vmatpush1.msra.mxu0 0.0
      %556 = vmatprep.mubr.f32.mxu0 0.0
      %557 = vmatmul.mubr.f32.gmra.mrb[0].mxu0 %v486
      %v558 = vpop.f32.mrb[0].mxu0
      %v559 = vadd.f32 0.0, %v558
      %v560 = vpop.f32.mrb[0].mxu0
      %561 = vdwg.mxu0
      %v563 = vsel %vm484, %v378, 0
      %v566 = vsel %vm488, %v377, 0
      %568 = vmatprep.subr.mxu0 0.0
      %569 = vmatpush1.msra.mxu0 %v566
      %570 = vmatprep.subr.mxu0 0.0
      %571 = vmatpush1.msra.mxu0 0.0
      %572 = vmatprep.subr.mxu0 0.0
      %573 = vmatpush1.msra.mxu0 0.0
      %574 = vmatprep.subr.mxu0 0.0
      %575 = vmatpush1.msra.mxu0 0.0
      %576 = vmatprep.subr.mxu0 0.0
      %577 = vmatpush1.msra.mxu0 0.0
      %578 = vmatprep.subr.mxu0 0.0
      %579 = vmatpush1.msra.mxu0 0.0
      %580 = vmatprep.subr.mxu0 0.0
      %581 = vmatpush1.msra.mxu0 0.0
      %582 = vmatprep.subr.mxu0 0.0
      %583 = vmatpush1.msra.mxu0 0.0
      %584 = vmatprep.subr.mxu0 0.0
      %585 = vmatpush1.msra.mxu0 0.0
      %586 = vmatprep.subr.mxu0 0.0
      %587 = vmatpush1.msra.mxu0 0.0
      %588 = vmatprep.subr.mxu0 0.0
      %589 = vmatpush1.msra.mxu0 0.0
      %590 = vmatprep.subr.mxu0 0.0
      %591 = vmatpush1.msra.mxu0 0.0
      %592 = vmatprep.subr.mxu0 0.0
      %593 = vmatpush1.msra.mxu0 0.0
      %594 = vmatprep.subr.mxu0 0.0
      %595 = vmatpush1.msra.mxu0 0.0
      %596 = vmatprep.subr.mxu0 0.0
      %597 = vmatpush1.msra.mxu0 0.0
      %598 = vmatprep.subr.mxu0 0.0
      %599 = vmatpush1.msra.mxu0 0.0
      %600 = vmatprep.subr.mxu0 0.0
      %601 = vmatpush1.msra.mxu0 0.0
      %602 = vmatprep.subr.mxu0 0.0
      %603 = vmatpush1.msra.mxu0 0.0
      %604 = vmatprep.subr.mxu0 0.0
      %605 = vmatpush1.msra.mxu0 0.0
      %606 = vmatprep.subr.mxu0 0.0
      %607 = vmatpush1.msra.mxu0 0.0
      %608 = vmatprep.subr.mxu0 0.0
      %609 = vmatpush1.msra.mxu0 0.0
      %610 = vmatprep.subr.mxu0 0.0
      %611 = vmatpush1.msra.mxu0 0.0
      %612 = vmatprep.subr.mxu0 0.0
      %613 = vmatpush1.msra.mxu0 0.0
      %614 = vmatprep.subr.mxu0 0.0
      %615 = vmatpush1.msra.mxu0 0.0
      %616 = vmatprep.subr.mxu0 0.0
      %617 = vmatpush1.msra.mxu0 0.0
      %618 = vmatprep.subr.mxu0 0.0
      %619 = vmatpush1.msra.mxu0 0.0
      %620 = vmatprep.subr.mxu0 0.0
      %621 = vmatpush1.msra.mxu0 0.0
      %622 = vmatprep.subr.mxu0 0.0
      %623 = vmatpush1.msra.mxu0 0.0
      %624 = vmatprep.subr.mxu0 0.0
      %625 = vmatpush1.msra.mxu0 0.0
      %626 = vmatprep.subr.mxu0 0.0
      %627 = vmatpush1.msra.mxu0 0.0
      %628 = vmatprep.subr.mxu0 0.0
      %629 = vmatpush1.msra.mxu0 0.0
      %630 = vmatprep.subr.mxu0 0.0
      %631 = vmatpush1.msra.mxu0 0.0
      %632 = vmatprep.mubr.f32.mxu0 0.0
      %633 = vmatmul.mubr.f32.gmra.mrb[0].mxu0 %v563
      %v634 = vpop.f32.mrb[0].mxu0
      %v635 = vadd.f32 %v559, %v634
      %v636 = vpop.f32.mrb[0].mxu0
      %637 = vdwg.mxu0
      %642 = vrot.lane.b32.xlu0 %v244, 127
      %v643 = vpop.permute.xlu0 %642
      %644 = vrot.lane.b32.xlu0 %v246, 127
      %v645 = vpop.permute.xlu0 %644
      %646 = vrot.lane.b32.xlu0 %v248, 127
      %v647 = vpop.permute.xlu0 %646
      %648 = vrot.lane.b32.xlu0 %v250, 127
      %v649 = vpop.permute.xlu0 %648
      %v654 = vcombine.low %v643, %v647
      %v655 = vcombine.high %v643, %v647
      %v657 = vunpack.c.l.s4 1983009808
      %v658 = vunpack.c.0.s8 %v657
      %v659 = vlaneseq
      %v660 = vshrl.u32 %v659, 7
      %v661 = vsub.s32 %v658, %v660
      %v662 = vrot.slane %v654, %v661
      %v664 = vunpack.c.l.s4 1983009808
      %v665 = vunpack.c.0.s8 %v664
      %v666 = vlaneseq
      %v667 = vshrl.u32 %v666, 7
      %v668 = vsub.s32 %v665, %v667
      %v669 = vrot.slane %v655, %v668
      %v670 = vcombine.low %v645, %v649
      %v671 = vcombine.high %v645, %v649
      %v673 = vunpack.c.l.s4 1983009808
      %v674 = vunpack.c.0.s8 %v673
      %v675 = vlaneseq
      %v676 = vshrl.u32 %v675, 7
      %v677 = vsub.s32 %v674, %v676
      %v678 = vrot.slane %v670, %v677
      %v680 = vunpack.c.l.s4 1983009808
      %v681 = vunpack.c.0.s8 %v680
      %v682 = vlaneseq
      %v683 = vshrl.u32 %v682, 7
      %v684 = vsub.s32 %v681, %v683
      %v685 = vrot.slane %v671, %v684
      %v686 = vcombine.low %v662, %v678
      %v687 = vcombine.high %v662, %v678
      %v689 = vunpack.c.l.s4 1934713408
      %v690 = vunpack.c.0.s8 %v689
      %v691 = vlaneseq
      %v692 = vshrl.u32 %v691, 7
      %v693 = vsub.s32 %v690, %v692
      %v694 = vrot.slane %v686, %v693
      %v696 = vunpack.c.l.s4 1934713408
      %v697 = vunpack.c.0.s8 %v696
      %v698 = vlaneseq
      %v699 = vshrl.u32 %v698, 7
      %v700 = vsub.s32 %v697, %v699
      %v701 = vrot.slane %v687, %v700
      %v702 = vcombine.low %v669, %v685
      %v703 = vcombine.high %v669, %v685
      %v705 = vunpack.c.l.s4 1934713408
      %v706 = vunpack.c.0.s8 %v705
      %v707 = vlaneseq
      %v708 = vshrl.u32 %v707, 7
      %v709 = vsub.s32 %v706, %v708
      %v710 = vrot.slane %v702, %v709
      %v712 = vunpack.c.l.s4 1934713408
      %v713 = vunpack.c.0.s8 %v712
      %v714 = vlaneseq
      %v715 = vshrl.u32 %v714, 7
      %v716 = vsub.s32 %v713, %v715
      %v717 = vrot.slane %v703, %v716
      %v718 = vcombine.high %v694, 0.0
      %v719 = vcombine.high %v701, 0.0
      %v720 = vcombine.high %v710, 0.0
      %v721 = vcombine.high %v717, 0.0
      %723 = vrot.lane.b32.xlu0 %v718, 8
      %v724 = vpop.permute.xlu0 %723
      %727 = vrot.lane.b32.xlu0 %v701, 16
      %v728 = vpop.permute.xlu0 %727
      %731 = vrot.lane.b32.xlu0 %v719, 24
      %v732 = vpop.permute.xlu0 %731
      %735 = vrot.lane.b32.xlu0 %v710, 32
      %v736 = vpop.permute.xlu0 %735
      %739 = vrot.lane.b32.xlu0 %v720, 40
      %v740 = vpop.permute.xlu0 %739
      %743 = vrot.lane.b32.xlu0 %v717, 48
      %v744 = vpop.permute.xlu0 %743
      %747 = vrot.lane.b32.xlu0 %v721, 56
      %v748 = vpop.permute.xlu0 %747
      %v750 = vsel %vm364, %v694, %v724
      %v751 = vsel %vm366, %v750, %v728
      %v752 = vsel %vm368, %v751, %v732
      %v753 = vsel %vm370, %v752, %v736
      %v754 = vsel %vm372, %v753, %v740
      %v755 = vsel %vm374, %v754, %v744
      %v756 = vsel %vm376, %v755, %v748
      %s757 = scalar_lea.vmem %s1, 16
      %v758 = vld [vmem:[%s757] sm:$0xff]
      %v760 = vsel %vm484, %v758, 0
      %v763 = vsel %vm488, %v756, 0
      %765 = vmatprep.subr.mxu0 0.0
      %766 = vmatpush1.msra.mxu0 %v763
      %767 = vmatprep.subr.mxu0 0.0
      %768 = vmatpush1.msra.mxu0 0.0
      %769 = vmatprep.subr.mxu0 0.0
      %770 = vmatpush1.msra.mxu0 0.0
      %771 = vmatprep.subr.mxu0 0.0
      %772 = vmatpush1.msra.mxu0 0.0
      %773 = vmatprep.subr.mxu0 0.0
      %774 = vmatpush1.msra.mxu0 0.0
      %775 = vmatprep.subr.mxu0 0.0
      %776 = vmatpush1.msra.mxu0 0.0
      %777 = vmatprep.subr.mxu0 0.0
      %778 = vmatpush1.msra.mxu0 0.0
      %779 = vmatprep.subr.mxu0 0.0
      %780 = vmatpush1.msra.mxu0 0.0
      %781 = vmatprep.subr.mxu0 0.0
      %782 = vmatpush1.msra.mxu0 0.0
      %783 = vmatprep.subr.mxu0 0.0
      %784 = vmatpush1.msra.mxu0 0.0
      %785 = vmatprep.subr.mxu0 0.0
      %786 = vmatpush1.msra.mxu0 0.0
      %787 = vmatprep.subr.mxu0 0.0
      %788 = vmatpush1.msra.mxu0 0.0
      %789 = vmatprep.subr.mxu0 0.0
      %790 = vmatpush1.msra.mxu0 0.0
      %791 = vmatprep.subr.mxu0 0.0
      %792 = vmatpush1.msra.mxu0 0.0
      %793 = vmatprep.subr.mxu0 0.0
      %794 = vmatpush1.msra.mxu0 0.0
      %795 = vmatprep.subr.mxu0 0.0
      %796 = vmatpush1.msra.mxu0 0.0
      %797 = vmatprep.subr.mxu0 0.0
      %798 = vmatpush1.msra.mxu0 0.0
      %799 = vmatprep.subr.mxu0 0.0
      %800 = vmatpush1.msra.mxu0 0.0
      %801 = vmatprep.subr.mxu0 0.0
      %802 = vmatpush1.msra.mxu0 0.0
      %803 = vmatprep.subr.mxu0 0.0
      %804 = vmatpush1.msra.mxu0 0.0
      %805 = vmatprep.subr.mxu0 0.0
      %806 = vmatpush1.msra.mxu0 0.0
      %807 = vmatprep.subr.mxu0 0.0
      %808 = vmatpush1.msra.mxu0 0.0
      %809 = vmatprep.subr.mxu0 0.0
      %810 = vmatpush1.msra.mxu0 0.0
      %811 = vmatprep.subr.mxu0 0.0
      %812 = vmatpush1.msra.mxu0 0.0
      %813 = vmatprep.subr.mxu0 0.0
      %814 = vmatpush1.msra.mxu0 0.0
      %815 = vmatprep.subr.mxu0 0.0
      %816 = vmatpush1.msra.mxu0 0.0
      %817 = vmatprep.subr.mxu0 0.0
      %818 = vmatpush1.msra.mxu0 0.0
      %819 = vmatprep.subr.mxu0 0.0
      %820 = vmatpush1.msra.mxu0 0.0
      %821 = vmatprep.subr.mxu0 0.0
      %822 = vmatpush1.msra.mxu0 0.0
      %823 = vmatprep.subr.mxu0 0.0
      %824 = vmatpush1.msra.mxu0 0.0
      %825 = vmatprep.subr.mxu0 0.0
      %826 = vmatpush1.msra.mxu0 0.0
      %827 = vmatprep.subr.mxu0 0.0
      %828 = vmatpush1.msra.mxu0 0.0
      %829 = vmatprep.mubr.f32.mxu0 0.0
      %830 = vmatmul.mubr.f32.gmra.mrb[0].mxu0 %v760
      %v831 = vpop.f32.mrb[0].mxu0
      %v832 = vadd.f32 0.0, %v831
      %v833 = vpop.f32.mrb[0].mxu0
      %834 = vdwg.mxu0
      %v835 = vadd.f32 %v635, %v832
      %v836 = vcombine.low %v260, %v262
      %v837 = vcombine.high %v260, %v262
      %v839 = vunpack.c.l.s4 1983009808
      %v840 = vunpack.c.0.s8 %v839
      %v841 = vlaneseq
      %v842 = vshrl.u32 %v841, 7
      %v843 = vsub.s32 %v840, %v842
      %v844 = vrot.slane %v836, %v843
      %v846 = vunpack.c.l.s4 1983009808
      %v847 = vunpack.c.0.s8 %v846
      %v848 = vlaneseq
      %v849 = vshrl.u32 %v848, 7
      %v850 = vsub.s32 %v847, %v849
      %v851 = vrot.slane %v837, %v850
      %v852 = vcombine.low %v261, %v263
      %v853 = vcombine.high %v261, %v263
      %v855 = vunpack.c.l.s4 1983009808
      %v856 = vunpack.c.0.s8 %v855
      %v857 = vlaneseq
      %v858 = vshrl.u32 %v857, 7
      %v859 = vsub.s32 %v856, %v858
      %v860 = vrot.slane %v852, %v859
      %v862 = vunpack.c.l.s4 1983009808
      %v863 = vunpack.c.0.s8 %v862
      %v864 = vlaneseq
      %v865 = vshrl.u32 %v864, 7
      %v866 = vsub.s32 %v863, %v865
      %v867 = vrot.slane %v853, %v866
      %v868 = vcombine.low %v844, %v860
      %v869 = vcombine.high %v844, %v860
      %v871 = vunpack.c.l.s4 1934713408
      %v872 = vunpack.c.0.s8 %v871
      %v873 = vlaneseq
      %v874 = vshrl.u32 %v873, 7
      %v875 = vsub.s32 %v872, %v874
      %v876 = vrot.slane %v868, %v875
      %v878 = vunpack.c.l.s4 1934713408
      %v879 = vunpack.c.0.s8 %v878
      %v880 = vlaneseq
      %v881 = vshrl.u32 %v880, 7
      %v882 = vsub.s32 %v879, %v881
      %v883 = vrot.slane %v869, %v882
      %v884 = vcombine.low %v851, %v867
      %v885 = vcombine.high %v851, %v867
      %v887 = vunpack.c.l.s4 1934713408
      %v888 = vunpack.c.0.s8 %v887
      %v889 = vlaneseq
      %v890 = vshrl.u32 %v889, 7
      %v891 = vsub.s32 %v888, %v890
      %v892 = vrot.slane %v884, %v891
      %v894 = vunpack.c.l.s4 1934713408
      %v895 = vunpack.c.0.s8 %v894
      %v896 = vlaneseq
      %v897 = vshrl.u32 %v896, 7
      %v898 = vsub.s32 %v895, %v897
      %v899 = vrot.slane %v885, %v898
      %v900 = vcombine.high %v876, 0.0
      %v901 = vcombine.high %v883, 0.0
      %v902 = vcombine.high %v892, 0.0
      %v903 = vcombine.high %v899, 0.0
      %905 = vrot.lane.b32.xlu0 %v900, 8
      %v906 = vpop.permute.xlu0 %905
      %909 = vrot.lane.b32.xlu0 %v883, 16
      %v910 = vpop.permute.xlu0 %909
      %913 = vrot.lane.b32.xlu0 %v901, 24
      %v914 = vpop.permute.xlu0 %913
      %917 = vrot.lane.b32.xlu0 %v892, 32
      %v918 = vpop.permute.xlu0 %917
      %921 = vrot.lane.b32.xlu0 %v902, 40
      %v922 = vpop.permute.xlu0 %921
      %925 = vrot.lane.b32.xlu0 %v899, 48
      %v926 = vpop.permute.xlu0 %925
      %929 = vrot.lane.b32.xlu0 %v903, 56
      %v930 = vpop.permute.xlu0 %929
      %v932 = vsel %vm364, %v876, %v906
      %v933 = vsel %vm366, %v932, %v910
      %v934 = vsel %vm368, %v933, %v914
      %v935 = vsel %vm370, %v934, %v918
      %v936 = vsel %vm372, %v935, %v922
      %v937 = vsel %vm374, %v936, %v926
      %v938 = vsel %vm376, %v937, %v930
      %s939 = scalar_lea.vmem %s1, 24
      %v940 = vld [vmem:[%s939] sm:$0xff]
      %v942 = vsel %vm484, %v940, 0
      %v945 = vsel %vm488, %v938, 0
      %947 = vmatprep.subr.mxu0 0.0
      %948 = vmatpush1.msra.mxu0 %v945
      %949 = vmatprep.subr.mxu0 0.0
      %950 = vmatpush1.msra.mxu0 0.0
      %951 = vmatprep.subr.mxu0 0.0
      %952 = vmatpush1.msra.mxu0 0.0
      %953 = vmatprep.subr.mxu0 0.0
      %954 = vmatpush1.msra.mxu0 0.0
      %955 = vmatprep.subr.mxu0 0.0
      %956 = vmatpush1.msra.mxu0 0.0
      %957 = vmatprep.subr.mxu0 0.0
      %958 = vmatpush1.msra.mxu0 0.0
      %959 = vmatprep.subr.mxu0 0.0
      %960 = vmatpush1.msra.mxu0 0.0
      %961 = vmatprep.subr.mxu0 0.0
      %962 = vmatpush1.msra.mxu0 0.0
      %963 = vmatprep.subr.mxu0 0.0
      %964 = vmatpush1.msra.mxu0 0.0
      %965 = vmatprep.subr.mxu0 0.0
      %966 = vmatpush1.msra.mxu0 0.0
      %967 = vmatprep.subr.mxu0 0.0
      %968 = vmatpush1.msra.mxu0 0.0
      %969 = vmatprep.subr.mxu0 0.0
      %970 = vmatpush1.msra.mxu0 0.0
      %971 = vmatprep.subr.mxu0 0.0
      %972 = vmatpush1.msra.mxu0 0.0
      %973 = vmatprep.subr.mxu0 0.0
      %974 = vmatpush1.msra.mxu0 0.0
      %975 = vmatprep.subr.mxu0 0.0
      %976 = vmatpush1.msra.mxu0 0.0
      %977 = vmatprep.subr.mxu0 0.0
      %978 = vmatpush1.msra.mxu0 0.0
      %979 = vmatprep.subr.mxu0 0.0
      %980 = vmatpush1.msra.mxu0 0.0
      %981 = vmatprep.subr.mxu0 0.0
      %982 = vmatpush1.msra.mxu0 0.0
      %983 = vmatprep.subr.mxu0 0.0
      %984 = vmatpush1.msra.mxu0 0.0
      %985 = vmatprep.subr.mxu0 0.0
      %986 = vmatpush1.msra.mxu0 0.0
      %987 = vmatprep.subr.mxu0 0.0
      %988 = vmatpush1.msra.mxu0 0.0
      %989 = vmatprep.subr.mxu0 0.0
      %990 = vmatpush1.msra.mxu0 0.0
      %991 = vmatprep.subr.mxu0 0.0
      %992 = vmatpush1.msra.mxu0 0.0
      %993 = vmatprep.subr.mxu0 0.0
      %994 = vmatpush1.msra.mxu0 0.0
      %995 = vmatprep.subr.mxu0 0.0
      %996 = vmatpush1.msra.mxu0 0.0
      %997 = vmatprep.subr.mxu0 0.0
      %998 = vmatpush1.msra.mxu0 0.0
      %999 = vmatprep.subr.mxu0 0.0
      %1000 = vmatpush1.msra.mxu0 0.0
      %1001 = vmatprep.subr.mxu0 0.0
      %1002 = vmatpush1.msra.mxu0 0.0
      %1003 = vmatprep.subr.mxu0 0.0
      %1004 = vmatpush1.msra.mxu0 0.0
      %1005 = vmatprep.subr.mxu0 0.0
      %1006 = vmatpush1.msra.mxu0 0.0
      %1007 = vmatprep.subr.mxu0 0.0
      %1008 = vmatpush1.msra.mxu0 0.0
      %1009 = vmatprep.subr.mxu0 0.0
      %1010 = vmatpush1.msra.mxu0 0.0
      %1011 = vmatprep.mubr.f32.mxu0 0.0
      %1012 = vmatmul.mubr.f32.gmra.mrb[0].mxu0 %v942
      %v1013 = vpop.f32.mrb[0].mxu0
      %v1014 = vadd.f32 0.0, %v1013
      %v1015 = vpop.f32.mrb[0].mxu0
      %1016 = vdwg.mxu0
      %v1017 = vadd.f32 %v835, %v1014
      %v1018 = vcombine.low %v264, %v266
      %v1019 = vcombine.high %v264, %v266
      %v1021 = vunpack.c.l.s4 1983009808
      %v1022 = vunpack.c.0.s8 %v1021
      %v1023 = vlaneseq
      %v1024 = vshrl.u32 %v1023, 7
      %v1025 = vsub.s32 %v1022, %v1024
      %v1026 = vrot.slane %v1018, %v1025
      %v1028 = vunpack.c.l.s4 1983009808
      %v1029 = vunpack.c.0.s8 %v1028
      %v1030 = vlaneseq
      %v1031 = vshrl.u32 %v1030, 7
      %v1032 = vsub.s32 %v1029, %v1031
      %v1033 = vrot.slane %v1019, %v1032
      %v1034 = vcombine.low %v265, %v267
      %v1035 = vcombine.high %v265, %v267
      %v1037 = vunpack.c.l.s4 1983009808
      %v1038 = vunpack.c.0.s8 %v1037
      %v1039 = vlaneseq
      %v1040 = vshrl.u32 %v1039, 7
      %v1041 = vsub.s32 %v1038, %v1040
      %v1042 = vrot.slane %v1034, %v1041
      %v1044 = vunpack.c.l.s4 1983009808
      %v1045 = vunpack.c.0.s8 %v1044
      %v1046 = vlaneseq
      %v1047 = vshrl.u32 %v1046, 7
      %v1048 = vsub.s32 %v1045, %v1047
      %v1049 = vrot.slane %v1035, %v1048
      %v1050 = vcombine.low %v1026, %v1042
      %v1051 = vcombine.high %v1026, %v1042
      %v1053 = vunpack.c.l.s4 1934713408
      %v1054 = vunpack.c.0.s8 %v1053
      %v1055 = vlaneseq
      %v1056 = vshrl.u32 %v1055, 7
      %v1057 = vsub.s32 %v1054, %v1056
      %v1058 = vrot.slane %v1050, %v1057
      %v1060 = vunpack.c.l.s4 1934713408
      %v1061 = vunpack.c.0.s8 %v1060
      %v1062 = vlaneseq
      %v1063 = vshrl.u32 %v1062, 7
      %v1064 = vsub.s32 %v1061, %v1063
      %v1065 = vrot.slane %v1051, %v1064
      %v1066 = vcombine.low %v1033, %v1049
      %v1067 = vcombine.high %v1033, %v1049
      %v1069 = vunpack.c.l.s4 1934713408
      %v1070 = vunpack.c.0.s8 %v1069
      %v1071 = vlaneseq
      %v1072 = vshrl.u32 %v1071, 7
      %v1073 = vsub.s32 %v1070, %v1072
      %v1074 = vrot.slane %v1066, %v1073
      %v1076 = vunpack.c.l.s4 1934713408
      %v1077 = vunpack.c.0.s8 %v1076
      %v1078 = vlaneseq
      %v1079 = vshrl.u32 %v1078, 7
      %v1080 = vsub.s32 %v1077, %v1079
      %v1081 = vrot.slane %v1067, %v1080
      %v1082 = vcombine.high %v1058, 0.0
      %v1083 = vcombine.high %v1065, 0.0
      %v1084 = vcombine.high %v1074, 0.0
      %v1085 = vcombine.high %v1081, 0.0
      %1087 = vrot.lane.b32.xlu0 %v1082, 8
      %v1088 = vpop.permute.xlu0 %1087
      %1091 = vrot.lane.b32.xlu0 %v1065, 16
      %v1092 = vpop.permute.xlu0 %1091
      %1095 = vrot.lane.b32.xlu0 %v1083, 24
      %v1096 = vpop.permute.xlu0 %1095
      %1099 = vrot.lane.b32.xlu0 %v1074, 32
      %v1100 = vpop.permute.xlu0 %1099
      %1103 = vrot.lane.b32.xlu0 %v1084, 40
      %v1104 = vpop.permute.xlu0 %1103
      %1107 = vrot.lane.b32.xlu0 %v1081, 48
      %v1108 = vpop.permute.xlu0 %1107
      %1111 = vrot.lane.b32.xlu0 %v1085, 56
      %v1112 = vpop.permute.xlu0 %1111
      %v1114 = vsel %vm364, %v1058, %v1088
      %v1115 = vsel %vm366, %v1114, %v1092
      %v1116 = vsel %vm368, %v1115, %v1096
      %v1117 = vsel %vm370, %v1116, %v1100
      %v1118 = vsel %vm372, %v1117, %v1104
      %v1119 = vsel %vm374, %v1118, %v1108
      %v1120 = vsel %vm376, %v1119, %v1112
      %s1121 = scalar_lea.vmem %s1, 32
      %v1122 = vld [vmem:[%s1121] sm:$0xff]
      %v1124 = vsel %vm484, %v1122, 0
      %v1127 = vsel %vm488, %v1120, 0
      %1129 = vmatprep.subr.mxu0 0.0
      %1130 = vmatpush1.msra.mxu0 %v1127
      %1131 = vmatprep.subr.mxu0 0.0
      %1132 = vmatpush1.msra.mxu0 0.0
      %1133 = vmatprep.subr.mxu0 0.0
      %1134 = vmatpush1.msra.mxu0 0.0
      %1135 = vmatprep.subr.mxu0 0.0
      %1136 = vmatpush1.msra.mxu0 0.0
      %1137 = vmatprep.subr.mxu0 0.0
      %1138 = vmatpush1.msra.mxu0 0.0
      %1139 = vmatprep.subr.mxu0 0.0
      %1140 = vmatpush1.msra.mxu0 0.0
      %1141 = vmatprep.subr.mxu0 0.0
      %1142 = vmatpush1.msra.mxu0 0.0
      %1143 = vmatprep.subr.mxu0 0.0
      %1144 = vmatpush1.msra.mxu0 0.0
      %1145 = vmatprep.subr.mxu0 0.0
      %1146 = vmatpush1.msra.mxu0 0.0
      %1147 = vmatprep.subr.mxu0 0.0
      %1148 = vmatpush1.msra.mxu0 0.0
      %1149 = vmatprep.subr.mxu0 0.0
      %1150 = vmatpush1.msra.mxu0 0.0
      %1151 = vmatprep.subr.mxu0 0.0
      %1152 = vmatpush1.msra.mxu0 0.0
      %1153 = vmatprep.subr.mxu0 0.0
      %1154 = vmatpush1.msra.mxu0 0.0
      %1155 = vmatprep.subr.mxu0 0.0
      %1156 = vmatpush1.msra.mxu0 0.0
      %1157 = vmatprep.subr.mxu0 0.0
      %1158 = vmatpush1.msra.mxu0 0.0
      %1159 = vmatprep.subr.mxu0 0.0
      %1160 = vmatpush1.msra.mxu0 0.0
      %1161 = vmatprep.subr.mxu0 0.0
      %1162 = vmatpush1.msra.mxu0 0.0
      %1163 = vmatprep.subr.mxu0 0.0
      %1164 = vmatpush1.msra.mxu0 0.0
      %1165 = vmatprep.subr.mxu0 0.0
      %1166 = vmatpush1.msra.mxu0 0.0
      %1167 = vmatprep.subr.mxu0 0.0
      %1168 = vmatpush1.msra.mxu0 0.0
      %1169 = vmatprep.subr.mxu0 0.0
      %1170 = vmatpush1.msra.mxu0 0.0
      %1171 = vmatprep.subr.mxu0 0.0
      %1172 = vmatpush1.msra.mxu0 0.0
      %1173 = vmatprep.subr.mxu0 0.0
      %1174 = vmatpush1.msra.mxu0 0.0
      %1175 = vmatprep.subr.mxu0 0.0
      %1176 = vmatpush1.msra.mxu0 0.0
      %1177 = vmatprep.subr.mxu0 0.0
      %1178 = vmatpush1.msra.mxu0 0.0
      %1179 = vmatprep.subr.mxu0 0.0
      %1180 = vmatpush1.msra.mxu0 0.0
      %1181 = vmatprep.subr.mxu0 0.0
      %1182 = vmatpush1.msra.mxu0 0.0
      %1183 = vmatprep.subr.mxu0 0.0
      %1184 = vmatpush1.msra.mxu0 0.0
      %1185 = vmatprep.subr.mxu0 0.0
      %1186 = vmatpush1.msra.mxu0 0.0
      %1187 = vmatprep.subr.mxu0 0.0
      %1188 = vmatpush1.msra.mxu0 0.0
      %1189 = vmatprep.subr.mxu0 0.0
      %1190 = vmatpush1.msra.mxu0 0.0
      %1191 = vmatprep.subr.mxu0 0.0
      %1192 = vmatpush1.msra.mxu0 0.0
      %1193 = vmatprep.mubr.f32.mxu0 0.0
      %1194 = vmatmul.mubr.f32.gmra.mrb[0].mxu0 %v1124
      %v1195 = vpop.f32.mrb[0].mxu0
      %v1196 = vadd.f32 0.0, %v1195
      %v1197 = vpop.f32.mrb[0].mxu0
      %1198 = vdwg.mxu0
      %v1199 = vadd.f32 %v1017, %v1196
      %1204 = vrot.lane.b32.xlu0 %v260, 127
      %v1205 = vpop.permute.xlu0 %1204
      %1206 = vrot.lane.b32.xlu0 %v261, 127
      %v1207 = vpop.permute.xlu0 %1206
      %1208 = vrot.lane.b32.xlu0 %v262, 127
      %v1209 = vpop.permute.xlu0 %1208
      %1210 = vrot.lane.b32.xlu0 %v263, 127
      %v1211 = vpop.permute.xlu0 %1210
      %v1216 = vcombine.low %v1205, %v1209
      %v1217 = vcombine.high %v1205, %v1209
      %v1219 = vunpack.c.l.s4 1983009808
      %v1220 = vunpack.c.0.s8 %v1219
      %v1221 = vlaneseq
      %v1222 = vshrl.u32 %v1221, 7
      %v1223 = vsub.s32 %v1220, %v1222
      %v1224 = vrot.slane %v1216, %v1223
      %v1226 = vunpack.c.l.s4 1983009808
      %v1227 = vunpack.c.0.s8 %v1226
      %v1228 = vlaneseq
      %v1229 = vshrl.u32 %v1228, 7
      %v1230 = vsub.s32 %v1227, %v1229
      %v1231 = vrot.slane %v1217, %v1230
      %v1232 = vcombine.low %v1207, %v1211
      %v1233 = vcombine.high %v1207, %v1211
      %v1235 = vunpack.c.l.s4 1983009808
      %v1236 = vunpack.c.0.s8 %v1235
      %v1237 = vlaneseq
      %v1238 = vshrl.u32 %v1237, 7
      %v1239 = vsub.s32 %v1236, %v1238
      %v1240 = vrot.slane %v1232, %v1239
      %v1242 = vunpack.c.l.s4 1983009808
      %v1243 = vunpack.c.0.s8 %v1242
      %v1244 = vlaneseq
      %v1245 = vshrl.u32 %v1244, 7
      %v1246 = vsub.s32 %v1243, %v1245
      %v1247 = vrot.slane %v1233, %v1246
      %v1248 = vcombine.low %v1224, %v1240
      %v1249 = vcombine.high %v1224, %v1240
      %v1251 = vunpack.c.l.s4 1934713408
      %v1252 = vunpack.c.0.s8 %v1251
      %v1253 = vlaneseq
      %v1254 = vshrl.u32 %v1253, 7
      %v1255 = vsub.s32 %v1252, %v1254
      %v1256 = vrot.slane %v1248, %v1255
      %v1258 = vunpack.c.l.s4 1934713408
      %v1259 = vunpack.c.0.s8 %v1258
      %v1260 = vlaneseq
      %v1261 = vshrl.u32 %v1260, 7
      %v1262 = vsub.s32 %v1259, %v1261
      %v1263 = vrot.slane %v1249, %v1262
      %v1264 = vcombine.low %v1231, %v1247
      %v1265 = vcombine.high %v1231, %v1247
      %v1267 = vunpack.c.l.s4 1934713408
      %v1268 = vunpack.c.0.s8 %v1267
      %v1269 = vlaneseq
      %v1270 = vshrl.u32 %v1269, 7
      %v1271 = vsub.s32 %v1268, %v1270
      %v1272 = vrot.slane %v1264, %v1271
      %v1274 = vunpack.c.l.s4 1934713408
      %v1275 = vunpack.c.0.s8 %v1274
      %v1276 = vlaneseq
      %v1277 = vshrl.u32 %v1276, 7
      %v1278 = vsub.s32 %v1275, %v1277
      %v1279 = vrot.slane %v1265, %v1278
      %v1280 = vcombine.high %v1256, 0.0
      %v1281 = vcombine.high %v1263, 0.0
      %v1282 = vcombine.high %v1272, 0.0
      %v1283 = vcombine.high %v1279, 0.0
      %1285 = vrot.lane.b32.xlu0 %v1280, 8
      %v1286 = vpop.permute.xlu0 %1285
      %1289 = vrot.lane.b32.xlu0 %v1263, 16
      %v1290 = vpop.permute.xlu0 %1289
      %1293 = vrot.lane.b32.xlu0 %v1281, 24
      %v1294 = vpop.permute.xlu0 %1293
      %1297 = vrot.lane.b32.xlu0 %v1272, 32
      %v1298 = vpop.permute.xlu0 %1297
      %1301 = vrot.lane.b32.xlu0 %v1282, 40
      %v1302 = vpop.permute.xlu0 %1301
      %1305 = vrot.lane.b32.xlu0 %v1279, 48
      %v1306 = vpop.permute.xlu0 %1305
      %1309 = vrot.lane.b32.xlu0 %v1283, 56
      %v1310 = vpop.permute.xlu0 %1309
      %v1312 = vsel %vm364, %v1256, %v1286
      %v1313 = vsel %vm366, %v1312, %v1290
      %v1314 = vsel %vm368, %v1313, %v1294
      %v1315 = vsel %vm370, %v1314, %v1298
      %v1316 = vsel %vm372, %v1315, %v1302
      %v1317 = vsel %vm374, %v1316, %v1306
      %v1318 = vsel %vm376, %v1317, %v1310
      %s1319 = scalar_lea.vmem %s1, 40
      %v1320 = vld [vmem:[%s1319] sm:$0xff]
      %v1322 = vsel %vm484, %v1320, 0
      %v1325 = vsel %vm488, %v1318, 0
      %1327 = vmatprep.subr.mxu0 0.0
      %1328 = vmatpush1.msra.mxu0 %v1325
      %1329 = vmatprep.subr.mxu0 0.0
      %1330 = vmatpush1.msra.mxu0 0.0
      %1331 = vmatprep.subr.mxu0 0.0
      %1332 = vmatpush1.msra.mxu0 0.0
      %1333 = vmatprep.subr.mxu0 0.0
      %1334 = vmatpush1.msra.mxu0 0.0
      %1335 = vmatprep.subr.mxu0 0.0
      %1336 = vmatpush1.msra.mxu0 0.0
      %1337 = vmatprep.subr.mxu0 0.0
      %1338 = vmatpush1.msra.mxu0 0.0
      %1339 = vmatprep.subr.mxu0 0.0
      %1340 = vmatpush1.msra.mxu0 0.0
      %1341 = vmatprep.subr.mxu0 0.0
      %1342 = vmatpush1.msra.mxu0 0.0
      %1343 = vmatprep.subr.mxu0 0.0
      %1344 = vmatpush1.msra.mxu0 0.0
      %1345 = vmatprep.subr.mxu0 0.0
      %1346 = vmatpush1.msra.mxu0 0.0
      %1347 = vmatprep.subr.mxu0 0.0
      %1348 = vmatpush1.msra.mxu0 0.0
      %1349 = vmatprep.subr.mxu0 0.0
      %1350 = vmatpush1.msra.mxu0 0.0
      %1351 = vmatprep.subr.mxu0 0.0
      %1352 = vmatpush1.msra.mxu0 0.0
      %1353 = vmatprep.subr.mxu0 0.0
      %1354 = vmatpush1.msra.mxu0 0.0
      %1355 = vmatprep.subr.mxu0 0.0
      %1356 = vmatpush1.msra.mxu0 0.0
      %1357 = vmatprep.subr.mxu0 0.0
      %1358 = vmatpush1.msra.mxu0 0.0
      %1359 = vmatprep.subr.mxu0 0.0
      %1360 = vmatpush1.msra.mxu0 0.0
      %1361 = vmatprep.subr.mxu0 0.0
      %1362 = vmatpush1.msra.mxu0 0.0
      %1363 = vmatprep.subr.mxu0 0.0
      %1364 = vmatpush1.msra.mxu0 0.0
      %1365 = vmatprep.subr.mxu0 0.0
      %1366 = vmatpush1.msra.mxu0 0.0
      %1367 = vmatprep.subr.mxu0 0.0
      %1368 = vmatpush1.msra.mxu0 0.0
      %1369 = vmatprep.subr.mxu0 0.0
      %1370 = vmatpush1.msra.mxu0 0.0
      %1371 = vmatprep.subr.mxu0 0.0
      %1372 = vmatpush1.msra.mxu0 0.0
      %1373 = vmatprep.subr.mxu0 0.0
      %1374 = vmatpush1.msra.mxu0 0.0
      %1375 = vmatprep.subr.mxu0 0.0
      %1376 = vmatpush1.msra.mxu0 0.0
      %1377 = vmatprep.subr.mxu0 0.0
      %1378 = vmatpush1.msra.mxu0 0.0
      %1379 = vmatprep.subr.mxu0 0.0
      %1380 = vmatpush1.msra.mxu0 0.0
      %1381 = vmatprep.subr.mxu0 0.0
      %1382 = vmatpush1.msra.mxu0 0.0
      %1383 = vmatprep.subr.mxu0 0.0
      %1384 = vmatpush1.msra.mxu0 0.0
      %1385 = vmatprep.subr.mxu0 0.0
      %1386 = vmatpush1.msra.mxu0 0.0
      %1387 = vmatprep.subr.mxu0 0.0
      %1388 = vmatpush1.msra.mxu0 0.0
      %1389 = vmatprep.subr.mxu0 0.0
      %1390 = vmatpush1.msra.mxu0 0.0
      %1391 = vmatprep.mubr.f32.mxu0 0.0
      %1392 = vmatmul.mubr.f32.gmra.mrb[0].mxu0 %v1322
      %v1393 = vpop.f32.mrb[0].mxu0
      %v1394 = vadd.f32 0.0, %v1393
      %v1395 = vpop.f32.mrb[0].mxu0
      %1396 = vdwg.mxu0
      %v1397 = vadd.f32 %v1199, %v1394
      %vm1402 = vcmask 1046528
      %v1403 = vrot.slane %v244, 1
      %v1404 = vrot.slane %v245, 1
      %v1405 = vsel %vm1402, %v1403, %v1404
      %v1406 = vrot.slane %v246, 1
      %v1407 = vrot.slane %v247, 1
      %v1408 = vsel %vm1402, %v1406, %v1407
      %v1409 = vrot.slane %v248, 1
      %v1410 = vrot.slane %v249, 1
      %v1411 = vsel %vm1402, %v1409, %v1410
      %v1412 = vrot.slane %v250, 1
      %v1413 = vrot.slane %v251, 1
      %v1414 = vsel %vm1402, %v1412, %v1413
      %v1419 = vcombine.low %v1405, %v1411
      %v1420 = vcombine.high %v1405, %v1411
      %v1422 = vunpack.c.l.s4 1983009808
      %v1423 = vunpack.c.0.s8 %v1422
      %v1424 = vlaneseq
      %v1425 = vshrl.u32 %v1424, 7
      %v1426 = vsub.s32 %v1423, %v1425
      %v1427 = vrot.slane %v1419, %v1426
      %v1429 = vunpack.c.l.s4 1983009808
      %v1430 = vunpack.c.0.s8 %v1429
      %v1431 = vlaneseq
      %v1432 = vshrl.u32 %v1431, 7
      %v1433 = vsub.s32 %v1430, %v1432
      %v1434 = vrot.slane %v1420, %v1433
      %v1435 = vcombine.low %v1408, %v1414
      %v1436 = vcombine.high %v1408, %v1414
      %v1438 = vunpack.c.l.s4 1983009808
      %v1439 = vunpack.c.0.s8 %v1438
      %v1440 = vlaneseq
      %v1441 = vshrl.u32 %v1440, 7
      %v1442 = vsub.s32 %v1439, %v1441
      %v1443 = vrot.slane %v1435, %v1442
      %v1445 = vunpack.c.l.s4 1983009808
      %v1446 = vunpack.c.0.s8 %v1445
      %v1447 = vlaneseq
      %v1448 = vshrl.u32 %v1447, 7
      %v1449 = vsub.s32 %v1446, %v1448
      %v1450 = vrot.slane %v1436, %v1449
      %v1451 = vcombine.low %v1427, %v1443
      %v1452 = vcombine.high %v1427, %v1443
      %v1454 = vunpack.c.l.s4 1934713408
      %v1455 = vunpack.c.0.s8 %v1454
      %v1456 = vlaneseq
      %v1457 = vshrl.u32 %v1456, 7
      %v1458 = vsub.s32 %v1455, %v1457
      %v1459 = vrot.slane %v1451, %v1458
      %v1461 = vunpack.c.l.s4 1934713408
      %v1462 = vunpack.c.0.s8 %v1461
      %v1463 = vlaneseq
      %v1464 = vshrl.u32 %v1463, 7
      %v1465 = vsub.s32 %v1462, %v1464
      %v1466 = vrot.slane %v1452, %v1465
      %v1467 = vcombine.low %v1434, %v1450
      %v1468 = vcombine.high %v1434, %v1450
      %v1470 = vunpack.c.l.s4 1934713408
      %v1471 = vunpack.c.0.s8 %v1470
      %v1472 = vlaneseq
      %v1473 = vshrl.u32 %v1472, 7
      %v1474 = vsub.s32 %v1471, %v1473
      %v1475 = vrot.slane %v1467, %v1474
      %v1477 = vunpack.c.l.s4 1934713408
      %v1478 = vunpack.c.0.s8 %v1477
      %v1479 = vlaneseq
      %v1480 = vshrl.u32 %v1479, 7
      %v1481 = vsub.s32 %v1478, %v1480
      %v1482 = vrot.slane %v1468, %v1481
      %v1483 = vcombine.high %v1459, 0.0
      %v1484 = vcombine.high %v1466, 0.0
      %v1485 = vcombine.high %v1475, 0.0
      %v1486 = vcombine.high %v1482, 0.0
      %1488 = vrot.lane.b32.xlu0 %v1483, 8
      %v1489 = vpop.permute.xlu0 %1488
      %1492 = vrot.lane.b32.xlu0 %v1466, 16
      %v1493 = vpop.permute.xlu0 %1492
      %1496 = vrot.lane.b32.xlu0 %v1484, 24
      %v1497 = vpop.permute.xlu0 %1496
      %1500 = vrot.lane.b32.xlu0 %v1475, 32
      %v1501 = vpop.permute.xlu0 %1500
      %1504 = vrot.lane.b32.xlu0 %v1485, 40
      %v1505 = vpop.permute.xlu0 %1504
      %1508 = vrot.lane.b32.xlu0 %v1482, 48
      %v1509 = vpop.permute.xlu0 %1508
      %1512 = vrot.lane.b32.xlu0 %v1486, 56
      %v1513 = vpop.permute.xlu0 %1512
      %v1515 = vsel %vm364, %v1459, %v1489
      %v1516 = vsel %vm366, %v1515, %v1493
      %v1517 = vsel %vm368, %v1516, %v1497
      %v1518 = vsel %vm370, %v1517, %v1501
      %v1519 = vsel %vm372, %v1518, %v1505
      %v1520 = vsel %vm374, %v1519, %v1509
      %v1521 = vsel %vm376, %v1520, %v1513
      %s1522 = scalar_lea.vmem %s1, 48
      %v1523 = vld [vmem:[%s1522] sm:$0xff]
      %v1525 = vsel %vm484, %v1523, 0
      %v1528 = vsel %vm488, %v1521, 0
      %1530 = vmatprep.subr.mxu0 0.0
      %1531 = vmatpush1.msra.mxu0 %v1528
      %1532 = vmatprep.subr.mxu0 0.0
      %1533 = vmatpush1.msra.mxu0 0.0
      %1534 = vmatprep.subr.mxu0 0.0
      %1535 = vmatpush1.msra.mxu0 0.0
      %1536 = vmatprep.subr.mxu0 0.0
      %1537 = vmatpush1.msra.mxu0 0.0
      %1538 = vmatprep.subr.mxu0 0.0
      %1539 = vmatpush1.msra.mxu0 0.0
      %1540 = vmatprep.subr.mxu0 0.0
      %1541 = vmatpush1.msra.mxu0 0.0
      %1542 = vmatprep.subr.mxu0 0.0
      %1543 = vmatpush1.msra.mxu0 0.0
      %1544 = vmatprep.subr.mxu0 0.0
      %1545 = vmatpush1.msra.mxu0 0.0
      %1546 = vmatprep.subr.mxu0 0.0
      %1547 = vmatpush1.msra.mxu0 0.0
      %1548 = vmatprep.subr.mxu0 0.0
      %1549 = vmatpush1.msra.mxu0 0.0
      %1550 = vmatprep.subr.mxu0 0.0
      %1551 = vmatpush1.msra.mxu0 0.0
      %1552 = vmatprep.subr.mxu0 0.0
      %1553 = vmatpush1.msra.mxu0 0.0
      %1554 = vmatprep.subr.mxu0 0.0
      %1555 = vmatpush1.msra.mxu0 0.0
      %1556 = vmatprep.subr.mxu0 0.0
      %1557 = vmatpush1.msra.mxu0 0.0
      %1558 = vmatprep.subr.mxu0 0.0
      %1559 = vmatpush1.msra.mxu0 0.0
      %1560 = vmatprep.subr.mxu0 0.0
      %1561 = vmatpush1.msra.mxu0 0.0
      %1562 = vmatprep.subr.mxu0 0.0
      %1563 = vmatpush1.msra.mxu0 0.0
      %1564 = vmatprep.subr.mxu0 0.0
      %1565 = vmatpush1.msra.mxu0 0.0
      %1566 = vmatprep.subr.mxu0 0.0
      %1567 = vmatpush1.msra.mxu0 0.0
      %1568 = vmatprep.subr.mxu0 0.0
      %1569 = vmatpush1.msra.mxu0 0.0
      %1570 = vmatprep.subr.mxu0 0.0
      %1571 = vmatpush1.msra.mxu0 0.0
      %1572 = vmatprep.subr.mxu0 0.0
      %1573 = vmatpush1.msra.mxu0 0.0
      %1574 = vmatprep.subr.mxu0 0.0
      %1575 = vmatpush1.msra.mxu0 0.0
      %1576 = vmatprep.subr.mxu0 0.0
      %1577 = vmatpush1.msra.mxu0 0.0
      %1578 = vmatprep.subr.mxu0 0.0
      %1579 = vmatpush1.msra.mxu0 0.0
      %1580 = vmatprep.subr.mxu0 0.0
      %1581 = vmatpush1.msra.mxu0 0.0
      %1582 = vmatprep.subr.mxu0 0.0
      %1583 = vmatpush1.msra.mxu0 0.0
      %1584 = vmatprep.subr.mxu0 0.0
      %1585 = vmatpush1.msra.mxu0 0.0
      %1586 = vmatprep.subr.mxu0 0.0
      %1587 = vmatpush1.msra.mxu0 0.0
      %1588 = vmatprep.subr.mxu0 0.0
      %1589 = vmatpush1.msra.mxu0 0.0
      %1590 = vmatprep.subr.mxu0 0.0
      %1591 = vmatpush1.msra.mxu0 0.0
      %1592 = vmatprep.subr.mxu0 0.0
      %1593 = vmatpush1.msra.mxu0 0.0
      %1594 = vmatprep.mubr.f32.mxu0 0.0
      %1595 = vmatmul.mubr.f32.gmra.mrb[0].mxu0 %v1525
      %v1596 = vpop.f32.mrb[0].mxu0
      %v1597 = vadd.f32 0.0, %v1596
      %v1598 = vpop.f32.mrb[0].mxu0
      %1599 = vdwg.mxu0
      %v1600 = vadd.f32 %v1397, %v1597
      %v1609 = vrot.slane %v252, 1
      %v1610 = vrot.slane %v253, 1
      %v1611 = vsel %vm1402, %v1609, %v1610
      %v1612 = vrot.slane %v254, 1
      %v1613 = vrot.slane %v255, 1
      %v1614 = vsel %vm1402, %v1612, %v1613
      %v1615 = vrot.slane %v256, 1
      %v1616 = vrot.slane %v257, 1
      %v1617 = vsel %vm1402, %v1615, %v1616
      %v1618 = vrot.slane %v258, 1
      %v1619 = vrot.slane %v259, 1
      %v1620 = vsel %vm1402, %v1618, %v1619
      %v1625 = vcombine.low %v1611, %v1617
      %v1626 = vcombine.high %v1611, %v1617
      %v1628 = vunpack.c.l.s4 1983009808
      %v1629 = vunpack.c.0.s8 %v1628
      %v1630 = vlaneseq
      %v1631 = vshrl.u32 %v1630, 7
      %v1632 = vsub.s32 %v1629, %v1631
      %v1633 = vrot.slane %v1625, %v1632
      %v1635 = vunpack.c.l.s4 1983009808
      %v1636 = vunpack.c.0.s8 %v1635
      %v1637 = vlaneseq
      %v1638 = vshrl.u32 %v1637, 7
      %v1639 = vsub.s32 %v1636, %v1638
      %v1640 = vrot.slane %v1626, %v1639
      %v1641 = vcombine.low %v1614, %v1620
      %v1642 = vcombine.high %v1614, %v1620
      %v1644 = vunpack.c.l.s4 1983009808
      %v1645 = vunpack.c.0.s8 %v1644
      %v1646 = vlaneseq
      %v1647 = vshrl.u32 %v1646, 7
      %v1648 = vsub.s32 %v1645, %v1647
      %v1649 = vrot.slane %v1641, %v1648
      %v1651 = vunpack.c.l.s4 1983009808
      %v1652 = vunpack.c.0.s8 %v1651
      %v1653 = vlaneseq
      %v1654 = vshrl.u32 %v1653, 7
      %v1655 = vsub.s32 %v1652, %v1654
      %v1656 = vrot.slane %v1642, %v1655
      %v1657 = vcombine.low %v1633, %v1649
      %v1658 = vcombine.high %v1633, %v1649
      %v1660 = vunpack.c.l.s4 1934713408
      %v1661 = vunpack.c.0.s8 %v1660
      %v1662 = vlaneseq
      %v1663 = vshrl.u32 %v1662, 7
      %v1664 = vsub.s32 %v1661, %v1663
      %v1665 = vrot.slane %v1657, %v1664
      %v1667 = vunpack.c.l.s4 1934713408
      %v1668 = vunpack.c.0.s8 %v1667
      %v1669 = vlaneseq
      %v1670 = vshrl.u32 %v1669, 7
      %v1671 = vsub.s32 %v1668, %v1670
      %v1672 = vrot.slane %v1658, %v1671
      %v1673 = vcombine.low %v1640, %v1656
      %v1674 = vcombine.high %v1640, %v1656
      %v1676 = vunpack.c.l.s4 1934713408
      %v1677 = vunpack.c.0.s8 %v1676
      %v1678 = vlaneseq
      %v1679 = vshrl.u32 %v1678, 7
      %v1680 = vsub.s32 %v1677, %v1679
      %v1681 = vrot.slane %v1673, %v1680
      %v1683 = vunpack.c.l.s4 1934713408
      %v1684 = vunpack.c.0.s8 %v1683
      %v1685 = vlaneseq
      %v1686 = vshrl.u32 %v1685, 7
      %v1687 = vsub.s32 %v1684, %v1686
      %v1688 = vrot.slane %v1674, %v1687
      %v1689 = vcombine.high %v1665, 0.0
      %v1690 = vcombine.high %v1672, 0.0
      %v1691 = vcombine.high %v1681, 0.0
      %v1692 = vcombine.high %v1688, 0.0
      %1694 = vrot.lane.b32.xlu0 %v1689, 8
      %v1695 = vpop.permute.xlu0 %1694
      %1698 = vrot.lane.b32.xlu0 %v1672, 16
      %v1699 = vpop.permute.xlu0 %1698
      %1702 = vrot.lane.b32.xlu0 %v1690, 24
      %v1703 = vpop.permute.xlu0 %1702
      %1706 = vrot.lane.b32.xlu0 %v1681, 32
      %v1707 = vpop.permute.xlu0 %1706
      %1710 = vrot.lane.b32.xlu0 %v1691, 40
      %v1711 = vpop.permute.xlu0 %1710
      %1714 = vrot.lane.b32.xlu0 %v1688, 48
      %v1715 = vpop.permute.xlu0 %1714
      %1718 = vrot.lane.b32.xlu0 %v1692, 56
      %v1719 = vpop.permute.xlu0 %1718
      %v1721 = vsel %vm364, %v1665, %v1695
      %v1722 = vsel %vm366, %v1721, %v1699
      %v1723 = vsel %vm368, %v1722, %v1703
      %v1724 = vsel %vm370, %v1723, %v1707
      %v1725 = vsel %vm372, %v1724, %v1711
      %v1726 = vsel %vm374, %v1725, %v1715
      %v1727 = vsel %vm376, %v1726, %v1719
      %s1728 = scalar_lea.vmem %s1, 56
      %v1729 = vld [vmem:[%s1728] sm:$0xff]
      %v1731 = vsel %vm484, %v1729, 0
      %v1734 = vsel %vm488, %v1727, 0
      %1736 = vmatprep.subr.mxu0 0.0
      %1737 = vmatpush1.msra.mxu0 %v1734
      %1738 = vmatprep.subr.mxu0 0.0
      %1739 = vmatpush1.msra.mxu0 0.0
      %1740 = vmatprep.subr.mxu0 0.0
      %1741 = vmatpush1.msra.mxu0 0.0
      %1742 = vmatprep.subr.mxu0 0.0
      %1743 = vmatpush1.msra.mxu0 0.0
      %1744 = vmatprep.subr.mxu0 0.0
      %1745 = vmatpush1.msra.mxu0 0.0
      %1746 = vmatprep.subr.mxu0 0.0
      %1747 = vmatpush1.msra.mxu0 0.0
      %1748 = vmatprep.subr.mxu0 0.0
      %1749 = vmatpush1.msra.mxu0 0.0
      %1750 = vmatprep.subr.mxu0 0.0
      %1751 = vmatpush1.msra.mxu0 0.0
      %1752 = vmatprep.subr.mxu0 0.0
      %1753 = vmatpush1.msra.mxu0 0.0
      %1754 = vmatprep.subr.mxu0 0.0
      %1755 = vmatpush1.msra.mxu0 0.0
      %1756 = vmatprep.subr.mxu0 0.0
      %1757 = vmatpush1.msra.mxu0 0.0
      %1758 = vmatprep.subr.mxu0 0.0
      %1759 = vmatpush1.msra.mxu0 0.0
      %1760 = vmatprep.subr.mxu0 0.0
      %1761 = vmatpush1.msra.mxu0 0.0
      %1762 = vmatprep.subr.mxu0 0.0
      %1763 = vmatpush1.msra.mxu0 0.0
      %1764 = vmatprep.subr.mxu0 0.0
      %1765 = vmatpush1.msra.mxu0 0.0
      %1766 = vmatprep.subr.mxu0 0.0
      %1767 = vmatpush1.msra.mxu0 0.0
      %1768 = vmatprep.subr.mxu0 0.0
      %1769 = vmatpush1.msra.mxu0 0.0
      %1770 = vmatprep.subr.mxu0 0.0
      %1771 = vmatpush1.msra.mxu0 0.0
      %1772 = vmatprep.subr.mxu0 0.0
      %1773 = vmatpush1.msra.mxu0 0.0
      %1774 = vmatprep.subr.mxu0 0.0
      %1775 = vmatpush1.msra.mxu0 0.0
      %1776 = vmatprep.subr.mxu0 0.0
      %1777 = vmatpush1.msra.mxu0 0.0
      %1778 = vmatprep.subr.mxu0 0.0
      %1779 = vmatpush1.msra.mxu0 0.0
      %1780 = vmatprep.subr.mxu0 0.0
      %1781 = vmatpush1.msra.mxu0 0.0
      %1782 = vmatprep.subr.mxu0 0.0
      %1783 = vmatpush1.msra.mxu0 0.0
      %1784 = vmatprep.subr.mxu0 0.0
      %1785 = vmatpush1.msra.mxu0 0.0
      %1786 = vmatprep.subr.mxu0 0.0
      %1787 = vmatpush1.msra.mxu0 0.0
      %1788 = vmatprep.subr.mxu0 0.0
      %1789 = vmatpush1.msra.mxu0 0.0
      %1790 = vmatprep.subr.mxu0 0.0
      %1791 = vmatpush1.msra.mxu0 0.0
      %1792 = vmatprep.subr.mxu0 0.0
      %1793 = vmatpush1.msra.mxu0 0.0
      %1794 = vmatprep.subr.mxu0 0.0
      %1795 = vmatpush1.msra.mxu0 0.0
      %1796 = vmatprep.subr.mxu0 0.0
      %1797 = vmatpush1.msra.mxu0 0.0
      %1798 = vmatprep.subr.mxu0 0.0
      %1799 = vmatpush1.msra.mxu0 0.0
      %1800 = vmatprep.mubr.f32.mxu0 0.0
      %1801 = vmatmul.mubr.f32.gmra.mrb[0].mxu0 %v1731
      %v1802 = vpop.f32.mrb[0].mxu0
      %v1803 = vadd.f32 0.0, %v1802
      %v1804 = vpop.f32.mrb[0].mxu0
      %1805 = vdwg.mxu0
      %v1806 = vadd.f32 %v1600, %v1803
      %1807 = vrot.lane.b32.xlu0 %v1405, 127
      %v1808 = vpop.permute.xlu0 %1807
      %1809 = vrot.lane.b32.xlu0 %v1408, 127
      %v1810 = vpop.permute.xlu0 %1809
      %1811 = vrot.lane.b32.xlu0 %v1411, 127
      %v1812 = vpop.permute.xlu0 %1811
      %1813 = vrot.lane.b32.xlu0 %v1414, 127
      %v1814 = vpop.permute.xlu0 %1813
      %v1819 = vcombine.low %v1808, %v1812
      %v1820 = vcombine.high %v1808, %v1812
      %v1822 = vunpack.c.l.s4 1983009808
      %v1823 = vunpack.c.0.s8 %v1822
      %v1824 = vlaneseq
      %v1825 = vshrl.u32 %v1824, 7
      %v1826 = vsub.s32 %v1823, %v1825
      %v1827 = vrot.slane %v1819, %v1826
      %v1829 = vunpack.c.l.s4 1983009808
      %v1830 = vunpack.c.0.s8 %v1829
      %v1831 = vlaneseq
      %v1832 = vshrl.u32 %v1831, 7
      %v1833 = vsub.s32 %v1830, %v1832
      %v1834 = vrot.slane %v1820, %v1833
      %v1835 = vcombine.low %v1810, %v1814
      %v1836 = vcombine.high %v1810, %v1814
      %v1838 = vunpack.c.l.s4 1983009808
      %v1839 = vunpack.c.0.s8 %v1838
      %v1840 = vlaneseq
      %v1841 = vshrl.u32 %v1840, 7
      %v1842 = vsub.s32 %v1839, %v1841
      %v1843 = vrot.slane %v1835, %v1842
      %v1845 = vunpack.c.l.s4 1983009808
      %v1846 = vunpack.c.0.s8 %v1845
      %v1847 = vlaneseq
      %v1848 = vshrl.u32 %v1847, 7
      %v1849 = vsub.s32 %v1846, %v1848
      %v1850 = vrot.slane %v1836, %v1849
      %v1851 = vcombine.low %v1827, %v1843
      %v1852 = vcombine.high %v1827, %v1843
      %v1854 = vunpack.c.l.s4 1934713408
      %v1855 = vunpack.c.0.s8 %v1854
      %v1856 = vlaneseq
      %v1857 = vshrl.u32 %v1856, 7
      %v1858 = vsub.s32 %v1855, %v1857
      %v1859 = vrot.slane %v1851, %v1858
      %v1861 = vunpack.c.l.s4 1934713408
      %v1862 = vunpack.c.0.s8 %v1861
      %v1863 = vlaneseq
      %v1864 = vshrl.u32 %v1863, 7
      %v1865 = vsub.s32 %v1862, %v1864
      %v1866 = vrot.slane %v1852, %v1865
      %v1867 = vcombine.low %v1834, %v1850
      %v1868 = vcombine.high %v1834, %v1850
      %v1870 = vunpack.c.l.s4 1934713408
      %v1871 = vunpack.c.0.s8 %v1870
      %v1872 = vlaneseq
      %v1873 = vshrl.u32 %v1872, 7
      %v1874 = vsub.s32 %v1871, %v1873
      %v1875 = vrot.slane %v1867, %v1874
      %v1877 = vunpack.c.l.s4 1934713408
      %v1878 = vunpack.c.0.s8 %v1877
      %v1879 = vlaneseq
      %v1880 = vshrl.u32 %v1879, 7
      %v1881 = vsub.s32 %v1878, %v1880
      %v1882 = vrot.slane %v1868, %v1881
      %v1883 = vcombine.high %v1859, 0.0
      %v1884 = vcombine.high %v1866, 0.0
      %v1885 = vcombine.high %v1875, 0.0
      %v1886 = vcombine.high %v1882, 0.0
      %1888 = vrot.lane.b32.xlu0 %v1883, 8
      %v1889 = vpop.permute.xlu0 %1888
      %1892 = vrot.lane.b32.xlu0 %v1866, 16
      %v1893 = vpop.permute.xlu0 %1892
      %1896 = vrot.lane.b32.xlu0 %v1884, 24
      %v1897 = vpop.permute.xlu0 %1896
      %1900 = vrot.lane.b32.xlu0 %v1875, 32
      %v1901 = vpop.permute.xlu0 %1900
      %1904 = vrot.lane.b32.xlu0 %v1885, 40
      %v1905 = vpop.permute.xlu0 %1904
      %1908 = vrot.lane.b32.xlu0 %v1882, 48
      %v1909 = vpop.permute.xlu0 %1908
      %1912 = vrot.lane.b32.xlu0 %v1886, 56
      %v1913 = vpop.permute.xlu0 %1912
      %v1915 = vsel %vm364, %v1859, %v1889
      %v1916 = vsel %vm366, %v1915, %v1893
      %v1917 = vsel %vm368, %v1916, %v1897
      %v1918 = vsel %vm370, %v1917, %v1901
      %v1919 = vsel %vm372, %v1918, %v1905
      %v1920 = vsel %vm374, %v1919, %v1909
      %v1921 = vsel %vm376, %v1920, %v1913
      %s1922 = scalar_lea.vmem %s1, 64
      %v1923 = vld [vmem:[%s1922] sm:$0xff]
      %v1925 = vsel %vm484, %v1923, 0
      %v1928 = vsel %vm488, %v1921, 0
      %1930 = vmatprep.subr.mxu0 0.0
      %1931 = vmatpush1.msra.mxu0 %v1928
      %1932 = vmatprep.subr.mxu0 0.0
      %1933 = vmatpush1.msra.mxu0 0.0
      %1934 = vmatprep.subr.mxu0 0.0
      %1935 = vmatpush1.msra.mxu0 0.0
      %1936 = vmatprep.subr.mxu0 0.0
      %1937 = vmatpush1.msra.mxu0 0.0
      %1938 = vmatprep.subr.mxu0 0.0
      %1939 = vmatpush1.msra.mxu0 0.0
      %1940 = vmatprep.subr.mxu0 0.0
      %1941 = vmatpush1.msra.mxu0 0.0
      %1942 = vmatprep.subr.mxu0 0.0
      %1943 = vmatpush1.msra.mxu0 0.0
      %1944 = vmatprep.subr.mxu0 0.0
      %1945 = vmatpush1.msra.mxu0 0.0
      %1946 = vmatprep.subr.mxu0 0.0
      %1947 = vmatpush1.msra.mxu0 0.0
      %1948 = vmatprep.subr.mxu0 0.0
      %1949 = vmatpush1.msra.mxu0 0.0
      %1950 = vmatprep.subr.mxu0 0.0
      %1951 = vmatpush1.msra.mxu0 0.0
      %1952 = vmatprep.subr.mxu0 0.0
      %1953 = vmatpush1.msra.mxu0 0.0
      %1954 = vmatprep.subr.mxu0 0.0
      %1955 = vmatpush1.msra.mxu0 0.0
      %1956 = vmatprep.subr.mxu0 0.0
      %1957 = vmatpush1.msra.mxu0 0.0
      %1958 = vmatprep.subr.mxu0 0.0
      %1959 = vmatpush1.msra.mxu0 0.0
      %1960 = vmatprep.subr.mxu0 0.0
      %1961 = vmatpush1.msra.mxu0 0.0
      %1962 = vmatprep.subr.mxu0 0.0
      %1963 = vmatpush1.msra.mxu0 0.0
      %1964 = vmatprep.subr.mxu0 0.0
      %1965 = vmatpush1.msra.mxu0 0.0
      %1966 = vmatprep.subr.mxu0 0.0
      %1967 = vmatpush1.msra.mxu0 0.0
      %1968 = vmatprep.subr.mxu0 0.0
      %1969 = vmatpush1.msra.mxu0 0.0
      %1970 = vmatprep.subr.mxu0 0.0
      %1971 = vmatpush1.msra.mxu0 0.0
      %1972 = vmatprep.subr.mxu0 0.0
      %1973 = vmatpush1.msra.mxu0 0.0
      %1974 = vmatprep.subr.mxu0 0.0
      %1975 = vmatpush1.msra.mxu0 0.0
      %1976 = vmatprep.subr.mxu0 0.0
      %1977 = vmatpush1.msra.mxu0 0.0
      %1978 = vmatprep.subr.mxu0 0.0
      %1979 = vmatpush1.msra.mxu0 0.0
      %1980 = vmatprep.subr.mxu0 0.0
      %1981 = vmatpush1.msra.mxu0 0.0
      %1982 = vmatprep.subr.mxu0 0.0
      %1983 = vmatpush1.msra.mxu0 0.0
      %1984 = vmatprep.subr.mxu0 0.0
      %1985 = vmatpush1.msra.mxu0 0.0
      %1986 = vmatprep.subr.mxu0 0.0
      %1987 = vmatpush1.msra.mxu0 0.0
      %1988 = vmatprep.subr.mxu0 0.0
      %1989 = vmatpush1.msra.mxu0 0.0
      %1990 = vmatprep.subr.mxu0 0.0
      %1991 = vmatpush1.msra.mxu0 0.0
      %1992 = vmatprep.subr.mxu0 0.0
      %1993 = vmatpush1.msra.mxu0 0.0
      %1994 = vmatprep.mubr.f32.mxu0 0.0
      %1995 = vmatmul.mubr.f32.gmra.mrb[0].mxu0 %v1925
      %v1996 = vpop.f32.mrb[0].mxu0
      %v1997 = vadd.f32 0.0, %v1996
      %v1998 = vpop.f32.mrb[0].mxu0
      %1999 = vdwg.mxu0
      %v2000 = vadd.f32 %v1806, %v1997
      %v2001 = vld [vmem:[%s2] sm:$0xff]
      %2003 = vset.pattern.permute.xlu0 0
      %2004 = vperm.xlu0 %2003, %v2001
      %v2005 = vpop.permute.xlu0 %2004
      %v2007 = vadd.f32 %v2000, %v2005
      %vm2008 = vcmask 523264
      %2009 = vst.msk [vmem:[%s235] sm:$0xff] %vm2008, %v2007
      %v2010 = vsel %vm2008, %v2007, 0.0
      %2011 = vadd.xlane.f32.xlu0 %v2010
      %v2012 = vpop.xlane.xlu0 %2011
      %vm2013 = vcmask 7168
      %2014 = vst.msk [vmem:[%s239] sm:$0xff] %vm2013, %v2012
      %v2015 = vmul.f32 %v2007, %v2007
      %v2016 = vsel %vm2008, %v2015, 0.0
      %2017 = vadd.xlane.f32.xlu0 %v2016
      %v2018 = vpop.xlane.xlu0 %2017
      %2019 = vst.msk [vmem:[%s243] sm:$0xff] %vm2013, %v2018
      %p2020 = scmp.lt.s32.totalorder %s17, 1
      %s2021 = scalar_select %p2020, %s17, 1
      %s2022 = smul.addr %s2021, 8
      %s2023 = scalar_lea.vmem %s3, %s2022
      %p2024 = scmp.lt.s32.totalorder %s17, 1
      %s2025 = scalar_select %p2024, %s17, 1
      %s2026 = smul.addr %s2025, 8
      %s2027 = scalar_lea.vmem %s4, %s2026
      %p2028 = scmp.lt.s32.totalorder %s17, 1
      %s2029 = scalar_select %p2028, %s17, 1
      %s2030 = smul.addr %s2029, 8
      %s2031 = scalar_lea.vmem %s5, %s2030
      // Predicated region
      $region33: #{plain_encoder_block.3} parent=31 // pred_check
        %p2032 = pneg %p103
      $region34: #{plain_encoder_block.3} parent=31 // pred_check_branch
        %2034 = sbr.rel (%p2032) target = $region36
      $region35: #{plain_encoder_block.3} parent=31 // pred_region
        _
      $region36: #{plain_encoder_block.3} parent=31 // pred_fallthru
        _
      // Predicated region
      $region37: #{plain_encoder_block.3} parent=31 // pred_check
        %p2035 = pneg %p129
      $region38: #{plain_encoder_block.3} parent=31 // pred_check_branch
        %2037 = sbr.rel (%p2035) target = $region40
      $region39: #{plain_encoder_block.3} parent=31 // pred_region
        _
      $region40: #{plain_encoder_block.3} parent=31 // pred_fallthru
        _
      // Predicated region
      $region41: #{plain_encoder_block.3} parent=31 // pred_check
        %p2038 = pneg %p155
      $region42: #{plain_encoder_block.3} parent=31 // pred_check_branch
        %2040 = sbr.rel (%p2038) target = $region44
      $region43: #{plain_encoder_block.3} parent=31 // pred_region
        _
      $region44: #{plain_encoder_block.3} parent=31 // pred_fallthru
        _
    $region32: #{plain_encoder_block.3} parent=5 // pred_fallthru
      _
    %p2041 = scmp.le.s32.totalorder 2, %s12
    // Predicated region
    $region45: #{plain_encoder_block.3} parent=5 // pred_check
      %p2042 = pneg %p2041
    $region46: #{plain_encoder_block.3} parent=5 // pred_check_branch
      %2044 = sbr.rel (%p2042) target = $region48
    $region47: #{plain_encoder_block.3} parent=5 // pred_region
      %s2045 = ssub.s32 %s12, 2
      // Predicated region
      $region49: #{plain_encoder_block.3} parent=47 // pred_check
        %p2046 = pneg %p109
      $region50: #{plain_encoder_block.3} parent=47 // pred_check_branch
        %2048 = sbr.rel (%p2046) target = $region52
      $region51: #{plain_encoder_block.3} parent=47 // pred_region
        %p2049 = scmp.lt.s32.totalorder %s18, 1
        %s2050 = scalar_select %p2049, %s18, 1
        %s2051 = smul.addr %s2050, 8
        %s2052 = scalar_lea.vmem %s3, %s2051
      $region52: #{plain_encoder_block.3} parent=47 // pred_fallthru
        _
      // Predicated region
      $region53: #{plain_encoder_block.3} parent=47 // pred_check
        %p2053 = pneg %p135
      $region54: #{plain_encoder_block.3} parent=47 // pred_check_branch
        %2055 = sbr.rel (%p2053) target = $region56
      $region55: #{plain_encoder_block.3} parent=47 // pred_region
        %p2056 = scmp.lt.s32.totalorder %s18, 1
        %s2057 = scalar_select %p2056, %s18, 1
        %s2058 = smul.addr %s2057, 8
        %s2059 = scalar_lea.vmem %s4, %s2058
      $region56: #{plain_encoder_block.3} parent=47 // pred_fallthru
        _
      // Predicated region
      $region57: #{plain_encoder_block.3} parent=47 // pred_check
        %p2060 = pneg %p161
      $region58: #{plain_encoder_block.3} parent=47 // pred_check_branch
        %2062 = sbr.rel (%p2060) target = $region60
      $region59: #{plain_encoder_block.3} parent=47 // pred_region
        %p2063 = scmp.lt.s32.totalorder %s18, 1
        %s2064 = scalar_select %p2063, %s18, 1
        %s2065 = smul.addr %s2064, 8
        %s2066 = scalar_lea.vmem %s5, %s2065
      $region60: #{plain_encoder_block.3} parent=47 // pred_fallthru
        _
    $region48: #{plain_encoder_block.3} parent=5 // pred_fallthru
      _
  $region6: #{plain_encoder_block.3} parent=0 // loop_footer
    %s16 = sadd.s32 1, %s12
  $region7: #{plain_encoder_block.3} parent=0 // loop_footer_branch
    %11 = sbr.rel target = $region3
  $region8: #{plain_encoder_block.3} parent=0 // loop_exit
    _

// kernel: plain_encoder_block.4
$region0: #{plain_encoder_block.4}
  #allocation0 [shape = 'u32[]', space=smem, size = 0x4, offset = 0x4, fixed_abs, tag = 'smem constant byte address 0x4 - core index']
  #allocation1 [shape = 'u32[144,128]{1,0:T(1,128)}', space=vmem, size = 0x12000, scoped, tag = 'internal scratch']
  #allocation2 [shape = 'f32[8,10,10]{2,1,0:T(8,128)}', space=vmem, size = 0x10000, scoped, tag = 'scratch operand']
  %s0 = inlined_call_operand.vmem [shape: f32[2,8,64], index: 0, kind: input, shape index: {}]
  %s1 = inlined_call_operand.vmem [shape: f32[8,1], index: 1, kind: input, shape index: {}]
  %s2 = inlined_call_operand.vmem [shape: f32[8,1], index: 2, kind: input, shape index: {}]
  %s3 = inlined_call_operand.vmem [shape: f32[3,3,8,8], index: 3, kind: input, shape index: {}]
  %s4 = inlined_call_operand.vmem [shape: f32[8,1], index: 4, kind: input, shape index: {}]
  %s5 = inlined_call_operand.vmem [shape: f32[2,8,64], index: 5, kind: output, shape index: {0}]
  %s6 = inlined_call_operand.vmem [shape: f32[2,8,1], index: 6, kind: output, shape index: {1}]
  %s7 = inlined_call_operand.vmem [shape: f32[2,8,1], index: 7, kind: output, shape index: {2}]
  %8 = xla_tuple %s5, %s6, %s7
  %s9 = sld [smem:[#allocation0]]
  $region69: #{plain_encoder_block.4} parent=0
    _
  %s11 = ssub.s32 1, %s9
  %s12 = scalar_select 0, %s11, %s9
  loop: start=0, step=1, limit=4
  $region2: #{plain_encoder_block.4} parent=0 // loop_pre_header
    _
  $region3: #{plain_encoder_block.4} parent=0 // loop_header
    %s14 = sphi 0, %s18
    %p15 = scmp.ge.s32.totalorder %s14, 4
    %s24 = sphi 0, %s26
    %s27 = sphi 0, %s24
    %s28 = sphi 0, %s27
    %s44 = sphi 0, %s28
    %s48 = sphi 0, %s48
    %s50 = sphi 0, %s48
    %s51 = sphi 0, %s50
    %s65 = sphi 0, %s51
    %s69 = sphi 0, %s69
    %s71 = sphi 0, %s69
    %s72 = sphi 0, %s71
    %s86 = sphi 0, %s72
    %s90 = sphi 0, %s90
    %s92 = sphi 0, %s90
    %s93 = sphi 0, %s92
    %s107 = sphi 0, %s93
    %s111 = sphi 0, %s111
    %s113 = sphi 0, %s111
    %s114 = sphi 0, %s113
    %s128 = sphi 0, %s114
    %s134 = sphi 0, %s136
    %s137 = sphi 0, %s134
    %s138 = sphi 0, %s137
    %s154 = sphi 0, %s138
    %s160 = sphi 0, %s162
    %s163 = sphi 0, %s160
    %s164 = sphi 0, %s163
    %s180 = sphi 0, %s164
    %s186 = sphi 0, %s188
    %s189 = sphi 0, %s186
    %s190 = sphi 0, %s189
    %s206 = sphi 0, %s190
  $region4: #{plain_encoder_block.4} parent=0 // loop_header_branch
    %17 = sbr.rel (%p15) target = $region8
  $region5: #{plain_encoder_block.4} parent=0 // loop_body
    %s19 = ssub.s32 %s14, 1
    %s20 = ssub.s32 %s14, 2
    %s21 = sadd.s32 %s14, 1
    %s22 = ssub.s32 %s14, %s21
    %p23 = scmp.eq.s32.totalorder %s22, 0
    %s25 = sadd.s32 %s24, 1
    %s26 = scalar_select %p23, %s24, %s25
    %p29 = pneg %p23
    %p30 = scmp.eq.s32.totalorder %s14, 1
    %p31 = por %p29, %p30
    %p32 = scmp.ne.s32.totalorder %s24, %s27
    %p33 = scmp.eq.s32.totalorder %s14, 0
    %p34 = por %p32, %p33
    %p35 = scmp.ne.s32.totalorder %s24, %s27
    %p36 = scmp.eq.s32.totalorder %s19, 1
    %p37 = por %p35, %p36
    %p38 = scmp.ne.s32.totalorder %s27, %s28
    %p39 = scmp.eq.s32.totalorder %s19, 0
    %p40 = por %p38, %p39
    %p41 = scmp.ne.s32.totalorder %s27, %s28
    %p42 = scmp.eq.s32.totalorder %s20, 1
    %p43 = por %p41, %p42
    %p45 = scmp.ne.s32.totalorder %s28, %s44
    %p46 = scmp.eq.s32.totalorder %s20, 0
    %p47 = por %p45, %p46
    %s49 = sadd.s32 %s48, 1
    %p52 = scmp.eq.s32.totalorder %s14, 1
    %p53 = scmp.ne.s32.totalorder %s48, %s50
    %p54 = scmp.eq.s32.totalorder %s14, 0
    %p55 = por %p53, %p54
    %p56 = scmp.ne.s32.totalorder %s48, %s50
    %p57 = scmp.eq.s32.totalorder %s19, 1
    %p58 = por %p56, %p57
    %p59 = scmp.ne.s32.totalorder %s50, %s51
    %p60 = scmp.eq.s32.totalorder %s19, 0
    %p61 = por %p59, %p60
    %p62 = scmp.ne.s32.totalorder %s50, %s51
    %p63 = scmp.eq.s32.totalorder %s20, 1
    %p64 = por %p62, %p63
    %p66 = scmp.ne.s32.totalorder %s51, %s65
    %p67 = scmp.eq.s32.totalorder %s20, 0
    %p68 = por %p66, %p67
    %s70 = sadd.s32 %s69, 1
    %p73 = scmp.eq.s32.totalorder %s14, 1
    %p74 = scmp.ne.s32.totalorder %s69, %s71
    %p75 = scmp.eq.s32.totalorder %s14, 0
    %p76 = por %p74, %p75
    %p77 = scmp.ne.s32.totalorder %s69, %s71
    %p78 = scmp.eq.s32.totalorder %s19, 1
    %p79 = por %p77, %p78
    %p80 = scmp.ne.s32.totalorder %s71, %s72
    %p81 = scmp.eq.s32.totalorder %s19, 0
    %p82 = por %p80, %p81
    %p83 = scmp.ne.s32.totalorder %s71, %s72
    %p84 = scmp.eq.s32.totalorder %s20, 1
    %p85 = por %p83, %p84
    %p87 = scmp.ne.s32.totalorder %s72, %s86
    %p88 = scmp.eq.s32.totalorder %s20, 0
    %p89 = por %p87, %p88
    %s91 = sadd.s32 %s90, 1
    %p94 = scmp.eq.s32.totalorder %s14, 1
    %p95 = scmp.ne.s32.totalorder %s90, %s92
    %p96 = scmp.eq.s32.totalorder %s14, 0
    %p97 = por %p95, %p96
    %p98 = scmp.ne.s32.totalorder %s90, %s92
    %p99 = scmp.eq.s32.totalorder %s19, 1
    %p100 = por %p98, %p99
    %p101 = scmp.ne.s32.totalorder %s92, %s93
    %p102 = scmp.eq.s32.totalorder %s19, 0
    %p103 = por %p101, %p102
    %p104 = scmp.ne.s32.totalorder %s92, %s93
    %p105 = scmp.eq.s32.totalorder %s20, 1
    %p106 = por %p104, %p105
    %p108 = scmp.ne.s32.totalorder %s93, %s107
    %p109 = scmp.eq.s32.totalorder %s20, 0
    %p110 = por %p108, %p109
    %s112 = sadd.s32 %s111, 1
    %p115 = scmp.eq.s32.totalorder %s14, 1
    %p116 = scmp.ne.s32.totalorder %s111, %s113
    %p117 = scmp.eq.s32.totalorder %s14, 0
    %p118 = por %p116, %p117
    %p119 = scmp.ne.s32.totalorder %s111, %s113
    %p120 = scmp.eq.s32.totalorder %s19, 1
    %p121 = por %p119, %p120
    %p122 = scmp.ne.s32.totalorder %s113, %s114
    %p123 = scmp.eq.s32.totalorder %s19, 0
    %p124 = por %p122, %p123
    %p125 = scmp.ne.s32.totalorder %s113, %s114
    %p126 = scmp.eq.s32.totalorder %s20, 1
    %p127 = por %p125, %p126
    %p129 = scmp.ne.s32.totalorder %s114, %s128
    %p130 = scmp.eq.s32.totalorder %s20, 0
    %p131 = por %p129, %p130
    %s132 = ssub.s32 %s14, %s21
    %p133 = scmp.eq.s32.totalorder %s132, 0
    %s135 = sadd.s32 %s134, 1
    %s136 = scalar_select %p133, %s134, %s135
    %p139 = pneg %p133
    %p140 = scmp.eq.s32.totalorder %s14, 1
    %p141 = por %p139, %p140
    %p142 = scmp.ne.s32.totalorder %s134, %s137
    %p143 = scmp.eq.s32.totalorder %s14, 0
    %p144 = por %p142, %p143
    %p145 = scmp.ne.s32.totalorder %s134, %s137
    %p146 = scmp.eq.s32.totalorder %s19, 1
    %p147 = por %p145, %p146
    %p148 = scmp.ne.s32.totalorder %s137, %s138
    %p149 = scmp.eq.s32.totalorder %s19, 0
    %p150 = por %p148, %p149
    %p151 = scmp.ne.s32.totalorder %s137, %s138
    %p152 = scmp.eq.s32.totalorder %s20, 1
    %p153 = por %p151, %p152
    %p155 = scmp.ne.s32.totalorder %s138, %s154
    %p156 = scmp.eq.s32.totalorder %s20, 0
    %p157 = por %p155, %p156
    %s158 = ssub.s32 %s14, %s21
    %p159 = scmp.eq.s32.totalorder %s158, 0
    %s161 = sadd.s32 %s160, 1
    %s162 = scalar_select %p159, %s160, %s161
    %p165 = pneg %p159
    %p166 = scmp.eq.s32.totalorder %s14, 1
    %p167 = por %p165, %p166
    %p168 = scmp.ne.s32.totalorder %s160, %s163
    %p169 = scmp.eq.s32.totalorder %s14, 0
    %p170 = por %p168, %p169
    %p171 = scmp.ne.s32.totalorder %s160, %s163
    %p172 = scmp.eq.s32.totalorder %s19, 1
    %p173 = por %p171, %p172
    %p174 = scmp.ne.s32.totalorder %s163, %s164
    %p175 = scmp.eq.s32.totalorder %s19, 0
    %p176 = por %p174, %p175
    %p177 = scmp.ne.s32.totalorder %s163, %s164
    %p178 = scmp.eq.s32.totalorder %s20, 1
    %p179 = por %p177, %p178
    %p181 = scmp.ne.s32.totalorder %s164, %s180
    %p182 = scmp.eq.s32.totalorder %s20, 0
    %p183 = por %p181, %p182
    %s184 = ssub.s32 %s14, %s21
    %p185 = scmp.eq.s32.totalorder %s184, 0
    %s187 = sadd.s32 %s186, 1
    %s188 = scalar_select %p185, %s186, %s187
    %p191 = pneg %p185
    %p192 = scmp.eq.s32.totalorder %s14, 1
    %p193 = por %p191, %p192
    %p194 = scmp.ne.s32.totalorder %s186, %s189
    %p195 = scmp.eq.s32.totalorder %s14, 0
    %p196 = por %p194, %p195
    %p197 = scmp.ne.s32.totalorder %s186, %s189
    %p198 = scmp.eq.s32.totalorder %s19, 1
    %p199 = por %p197, %p198
    %p200 = scmp.ne.s32.totalorder %s189, %s190
    %p201 = scmp.eq.s32.totalorder %s19, 0
    %p202 = por %p200, %p201
    %p203 = scmp.ne.s32.totalorder %s189, %s190
    %p204 = scmp.eq.s32.totalorder %s20, 1
    %p205 = por %p203, %p204
    %p207 = scmp.ne.s32.totalorder %s190, %s206
    %p208 = scmp.eq.s32.totalorder %s20, 0
    %p209 = por %p207, %p208
    %p210 = scmp.le.s32.totalorder 1, %s14
    %p211 = scmp.lt.s32.totalorder %s14, 3
    %p212 = pnand %p210, %p211
    %p213 = pneg %p212
    // Predicated region
    $region9: #{plain_encoder_block.4} parent=5 // pred_check
      _
    $region10: #{plain_encoder_block.4} parent=5 // pred_check_branch
      %215 = sbr.rel (%p212) target = $region12
    $region11: #{plain_encoder_block.4} parent=5 // pred_region
      %s216 = ssub.s32 %s14, 1
      // Predicated region
      $region13: #{plain_encoder_block.4} parent=11 // pred_check
        %p217 = pneg %p61
      $region14: #{plain_encoder_block.4} parent=11 // pred_check_branch
        %219 = sbr.rel (%p217) target = $region16
      $region15: #{plain_encoder_block.4} parent=11 // pred_region
        _
      $region16: #{plain_encoder_block.4} parent=11 // pred_fallthru
        _
      // Predicated region
      $region17: #{plain_encoder_block.4} parent=11 // pred_check
        %p220 = pneg %p82
      $region18: #{plain_encoder_block.4} parent=11 // pred_check_branch
        %222 = sbr.rel (%p220) target = $region20
      $region19: #{plain_encoder_block.4} parent=11 // pred_region
        _
      $region20: #{plain_encoder_block.4} parent=11 // pred_fallthru
        _
      // Predicated region
      $region21: #{plain_encoder_block.4} parent=11 // pred_check
        %p223 = pneg %p103
      $region22: #{plain_encoder_block.4} parent=11 // pred_check_branch
        %225 = sbr.rel (%p223) target = $region24
      $region23: #{plain_encoder_block.4} parent=11 // pred_region
        _
      $region24: #{plain_encoder_block.4} parent=11 // pred_fallthru
        _
      // Predicated region
      $region25: #{plain_encoder_block.4} parent=11 // pred_check
        %p226 = pneg %p124
      $region26: #{plain_encoder_block.4} parent=11 // pred_check_branch
        %228 = sbr.rel (%p226) target = $region28
      $region27: #{plain_encoder_block.4} parent=11 // pred_region
        _
      $region28: #{plain_encoder_block.4} parent=11 // pred_fallthru
        _
    $region12: #{plain_encoder_block.4} parent=5 // pred_fallthru
      _
    %p229 = scmp.lt.s32.totalorder %s14, 2
    // Predicated region
    $region29: #{plain_encoder_block.4} parent=5 // pred_check
      %p230 = pneg %p229
    $region30: #{plain_encoder_block.4} parent=5 // pred_check_branch
      %232 = sbr.rel (%p230) target = $region32
    $region31: #{plain_encoder_block.4} parent=5 // pred_region
      // Predicated region
      $region33: #{plain_encoder_block.4} parent=31 // pred_check
        %p233 = pneg %p34
      $region34: #{plain_encoder_block.4} parent=31 // pred_check_branch
        %235 = sbr.rel (%p233) target = $region36
      $region35: #{plain_encoder_block.4} parent=31 // pred_region
        %p236 = scmp.lt.s32.totalorder %s14, 1
        %s237 = scalar_select %p236, %s14, 1
        %s238 = smul.addr %s237, 8
        %s239 = scalar_lea.vmem %s0, %s238
      $region36: #{plain_encoder_block.4} parent=31 // pred_fallthru
        _
    $region32: #{plain_encoder_block.4} parent=5 // pred_fallthru
      _
    %p240 = scmp.le.s32.totalorder 1, %s14
    %p241 = scmp.lt.s32.totalorder %s14, 3
    %p242 = pnand %p240, %p241
    %p243 = pneg %p242
    // Predicated region
    $region37: #{plain_encoder_block.4} parent=5 // pred_check
      _
    $region38: #{plain_encoder_block.4} parent=5 // pred_check_branch
      %245 = sbr.rel (%p242) target = $region40
    $region39: #{plain_encoder_block.4} parent=5 // pred_region
      %s246 = ssub.s32 %s14, 1
      %p247 = scmp.lt.s32.totalorder %s19, 1
      %s248 = scalar_select %p247, %s19, 1
      %s249 = smul.addr %s248, 8
      %s250 = scalar_lea.vmem %s0, %s249
      %p251 = pneg %p40
      %p252 = pneg %p37
      %p253 = pneg %p61
      %p254 = pneg %p58
      %p255 = pneg %p82
      %p256 = pneg %p79
      %p257 = pneg %p103
      %p258 = pneg %p100
      %p259 = pneg %p124
      %p260 = pneg %p121
      %p261 = pneg %p150
      %p262 = pneg %p147
      %p263 = scmp.lt.s32.totalorder %s19, 1
      %s264 = scalar_select %p263, %s19, 1
      %s265 = smul.addr %s264, 8
      %s266 = scalar_lea.vmem %s5, %s265
      %p267 = pneg %p176
      %p268 = pneg %p173
      %p269 = scmp.lt.s32.totalorder %s19, 1
      %s270 = scalar_select %p269, %s19, 1
      %s271 = smul.addr %s270, 8
      %s272 = scalar_lea.vmem %s6, %s271
      %p273 = pneg %p202
      %p274 = pneg %p199
      %p275 = scmp.lt.s32.totalorder %s19, 1
      %s276 = scalar_select %p275, %s19, 1
      %s277 = smul.addr %s276, 8
      %s278 = scalar_lea.vmem %s7, %s277
      %p279 = scmp.lt.s32.totalorder %s19, 1
      %s280 = scalar_select %p279, %s19, 1
      %s281 = smul.addr %s280, 8
      %s282 = scalar_lea.vmem %s0, %s281
      %p283 = scmp.lt.s32.totalorder %s19, 1
      %s284 = scalar_select %p283, %s19, 1
      %s285 = smul.addr %s284, 8
      %s286 = scalar_lea.vmem %s5, %s285
      %p287 = scmp.lt.s32.totalorder %s19, 1
      %s288 = scalar_select %p287, %s19, 1
      %s289 = smul.addr %s288, 8
      %s290 = scalar_lea.vmem %s6, %s289
      %p291 = scmp.lt.s32.totalorder %s19, 1
      %s292 = scalar_select %p291, %s19, 1
      %s293 = smul.addr %s292, 8
      %s294 = scalar_lea.vmem %s7, %s293
      %v295 = vld [vmem:[%s282] sm:$0xff]
      %v296 = vld [vmem:[%s1] sm:$0xff]
      %298 = vset.pattern.permute.xlu0 0
      %299 = vperm.xlu0 %298, %v296
      %v300 = vpop.permute.xlu0 %299
      %v302 = vmul.f32 %v295, %v300
      %v303 = vld [vmem:[%s2] sm:$0xff]
      %305 = vset.pattern.permute.xlu0 0
      %306 = vperm.xlu0 %305, %v303
      %v307 = vpop.permute.xlu0 %306
      %v309 = vadd.f32 %v302, %v307
      %v310 = vmax.f32 %v309, 0.0
      %vm311 = vcmask 80896
      %312 = vst.msk [vmem:[#allocation2] sm:$0xff] %vm311, 0.0
      %vm313 = vcmask 74752
      %314 = vst.msk [vmem:[#allocation2 + $0x8] sm:$0x3] %vm313, 0.0
      %315 = vst.msk [vmem:[#allocation2 + $0x10] sm:$0xff] %vm311, 0.0
      %316 = vst.msk [vmem:[#allocation2 + $0x18] sm:$0x3] %vm313, 0.0
      %317 = vst.msk [vmem:[#allocation2 + $0x20] sm:$0xff] %vm311, 0.0
      %318 = vst.msk [vmem:[#allocation2 + $0x28] sm:$0x3] %vm313, 0.0
      %319 = vst.msk [vmem:[#allocation2 + $0x30] sm:$0xff] %vm311, 0.0
      %320 = vst.msk [vmem:[#allocation2 + $0x38] sm:$0x3] %vm313, 0.0
      %321 = vst.msk [vmem:[#allocation2 + $0x40] sm:$0xff] %vm311, 0.0
      %322 = vst.msk [vmem:[#allocation2 + $0x48] sm:$0x3] %vm313, 0.0
      %323 = vst.msk [vmem:[#allocation2 + $0x50] sm:$0xff] %vm311, 0.0
      %324 = vst.msk [vmem:[#allocation2 + $0x58] sm:$0x3] %vm313, 0.0
      %325 = vst.msk [vmem:[#allocation2 + $0x60] sm:$0xff] %vm311, 0.0
      %326 = vst.msk [vmem:[#allocation2 + $0x68] sm:$0x3] %vm313, 0.0
      %327 = vst.msk [vmem:[#allocation2 + $0x70] sm:$0xff] %vm311, 0.0
      %328 = vst.msk [vmem:[#allocation2 + $0x78] sm:$0x3] %vm313, 0.0
      %330 = vrot.lane.b32.xlu0 %v310, 120
      %v331 = vpop.permute.xlu0 %330
      %333 = vrot.lane.b32.xlu0 %v310, 112
      %v334 = vpop.permute.xlu0 %333
      %336 = vrot.lane.b32.xlu0 %v310, 104
      %v337 = vpop.permute.xlu0 %336
      %339 = vrot.lane.b32.xlu0 %v310, 96
      %v340 = vpop.permute.xlu0 %339
      %342 = vrot.lane.b32.xlu0 %v310, 88
      %v343 = vpop.permute.xlu0 %342
      %345 = vrot.lane.b32.xlu0 %v310, 80
      %v346 = vpop.permute.xlu0 %345
      %348 = vrot.lane.b32.xlu0 %v310, 72
      %v349 = vpop.permute.xlu0 %348
      %v351 = vcombine.low %v310, %v334
      %v352 = vcombine.high %v310, %v334
      %v354 = vunpack.c.l.s4 1983009808
      %v355 = vunpack.c.0.s8 %v354
      %v356 = vlaneseq
      %v357 = vshrl.u32 %v356, 7
      %v358 = vsub.s32 %v355, %v357
      %v359 = vrot.slane %v351, %v358
      %v361 = vunpack.c.l.s4 1983009808
      %v362 = vunpack.c.0.s8 %v361
      %v363 = vlaneseq
      %v364 = vshrl.u32 %v363, 7
      %v365 = vsub.s32 %v362, %v364
      %v366 = vrot.slane %v352, %v365
      %v367 = vcombine.low %v331, %v337
      %v368 = vcombine.high %v331, %v337
      %v370 = vunpack.c.l.s4 1983009808
      %v371 = vunpack.c.0.s8 %v370
      %v372 = vlaneseq
      %v373 = vshrl.u32 %v372, 7
      %v374 = vsub.s32 %v371, %v373
      %v375 = vrot.slane %v367, %v374
      %v377 = vunpack.c.l.s4 1983009808
      %v378 = vunpack.c.0.s8 %v377
      %v379 = vlaneseq
      %v380 = vshrl.u32 %v379, 7
      %v381 = vsub.s32 %v378, %v380
      %v382 = vrot.slane %v368, %v381
      %v383 = vcombine.low %v340, %v346
      %v384 = vcombine.high %v340, %v346
      %v386 = vunpack.c.l.s4 1983009808
      %v387 = vunpack.c.0.s8 %v386
      %v388 = vlaneseq
      %v389 = vshrl.u32 %v388, 7
      %v390 = vsub.s32 %v387, %v389
      %v391 = vrot.slane %v383, %v390
      %v393 = vunpack.c.l.s4 1983009808
      %v394 = vunpack.c.0.s8 %v393
      %v395 = vlaneseq
      %v396 = vshrl.u32 %v395, 7
      %v397 = vsub.s32 %v394, %v396
      %v398 = vrot.slane %v384, %v397
      %v399 = vcombine.low %v343, %v349
      %v400 = vcombine.high %v343, %v349
      %v402 = vunpack.c.l.s4 1983009808
      %v403 = vunpack.c.0.s8 %v402
      %v404 = vlaneseq
      %v405 = vshrl.u32 %v404, 7
      %v406 = vsub.s32 %v403, %v405
      %v407 = vrot.slane %v399, %v406
      %v409 = vunpack.c.l.s4 1983009808
      %v410 = vunpack.c.0.s8 %v409
      %v411 = vlaneseq
      %v412 = vshrl.u32 %v411, 7
      %v413 = vsub.s32 %v410, %v412
      %v414 = vrot.slane %v400, %v413
      %v415 = vcombine.low %v359, %v375
      %v416 = vcombine.high %v359, %v375
      %v418 = vunpack.c.l.s4 1934713408
      %v419 = vunpack.c.0.s8 %v418
      %v420 = vlaneseq
      %v421 = vshrl.u32 %v420, 7
      %v422 = vsub.s32 %v419, %v421
      %v423 = vrot.slane %v415, %v422
      %v425 = vunpack.c.l.s4 1934713408
      %v426 = vunpack.c.0.s8 %v425
      %v427 = vlaneseq
      %v428 = vshrl.u32 %v427, 7
      %v429 = vsub.s32 %v426, %v428
      %v430 = vrot.slane %v416, %v429
      %v431 = vcombine.low %v366, %v382
      %v432 = vcombine.high %v366, %v382
      %v434 = vunpack.c.l.s4 1934713408
      %v435 = vunpack.c.0.s8 %v434
      %v436 = vlaneseq
      %v437 = vshrl.u32 %v436, 7
      %v438 = vsub.s32 %v435, %v437
      %v439 = vrot.slane %v431, %v438
      %v441 = vunpack.c.l.s4 1934713408
      %v442 = vunpack.c.0.s8 %v441
      %v443 = vlaneseq
      %v444 = vshrl.u32 %v443, 7
      %v445 = vsub.s32 %v442, %v444
      %v446 = vrot.slane %v432, %v445
      %v447 = vcombine.low %v391, %v407
      %v448 = vcombine.high %v391, %v407
      %v450 = vunpack.c.l.s4 1934713408
      %v451 = vunpack.c.0.s8 %v450
      %v452 = vlaneseq
      %v453 = vshrl.u32 %v452, 7
      %v454 = vsub.s32 %v451, %v453
      %v455 = vrot.slane %v447, %v454
      %v457 = vunpack.c.l.s4 1934713408
      %v458 = vunpack.c.0.s8 %v457
      %v459 = vlaneseq
      %v460 = vshrl.u32 %v459, 7
      %v461 = vsub.s32 %v458, %v460
      %v462 = vrot.slane %v448, %v461
      %v463 = vcombine.low %v398, %v414
      %v464 = vcombine.high %v398, %v414
      %v466 = vunpack.c.l.s4 1934713408
      %v467 = vunpack.c.0.s8 %v466
      %v468 = vlaneseq
      %v469 = vshrl.u32 %v468, 7
      %v470 = vsub.s32 %v467, %v469
      %v471 = vrot.slane %v463, %v470
      %v473 = vunpack.c.l.s4 1934713408
      %v474 = vunpack.c.0.s8 %v473
      %v475 = vlaneseq
      %v476 = vshrl.u32 %v475, 7
      %v477 = vsub.s32 %v474, %v476
      %v478 = vrot.slane %v464, %v477
      %v479 = vcombine.low %v423, %v455
      %v480 = vcombine.high %v423, %v455
      %v481 = vcombine.low %v430, %v462
      %v482 = vcombine.high %v430, %v462
      %v483 = vcombine.low %v439, %v471
      %v484 = vcombine.high %v439, %v471
      %v485 = vcombine.low %v446, %v478
      %v486 = vcombine.high %v446, %v478
      %495 = vrot.lane.b32.xlu0 %v479, 1
      %v496 = vpop.permute.xlu0 %495
      %497 = vrot.lane.b32.xlu0 %v480, 1
      %v498 = vpop.permute.xlu0 %497
      %499 = vrot.lane.b32.xlu0 %v481, 1
      %v500 = vpop.permute.xlu0 %499
      %501 = vrot.lane.b32.xlu0 %v482, 1
      %v502 = vpop.permute.xlu0 %501
      %503 = vrot.lane.b32.xlu0 %v483, 1
      %v504 = vpop.permute.xlu0 %503
      %505 = vrot.lane.b32.xlu0 %v484, 1
      %v506 = vpop.permute.xlu0 %505
      %507 = vrot.lane.b32.xlu0 %v485, 1
      %v508 = vpop.permute.xlu0 %507
      %509 = vrot.lane.b32.xlu0 %v486, 1
      %v510 = vpop.permute.xlu0 %509
      %vm519 = vcmask 72712
      %520 = vst.msk [vmem:[#allocation2 + $0x1] sm:$0xff] %vm519, %v496
      %521 = vst.msk [vmem:[#allocation2 + $0x11] sm:$0xff] %vm519, %v498
      %522 = vst.msk [vmem:[#allocation2 + $0x21] sm:$0xff] %vm519, %v500
      %523 = vst.msk [vmem:[#allocation2 + $0x31] sm:$0xff] %vm519, %v502
      %524 = vst.msk [vmem:[#allocation2 + $0x41] sm:$0xff] %vm519, %v504
      %525 = vst.msk [vmem:[#allocation2 + $0x51] sm:$0xff] %vm519, %v506
      %526 = vst.msk [vmem:[#allocation2 + $0x61] sm:$0xff] %vm519, %v508
      %527 = vst.msk [vmem:[#allocation2 + $0x71] sm:$0xff] %vm519, %v510
      %v528 = vld [vmem:[#allocation2] sm:$0xff]
      %v529 = vld [vmem:[#allocation2 + $0x8] sm:$0x3]
      %v530 = vld [vmem:[#allocation2 + $0x10] sm:$0xff]
      %v531 = vld [vmem:[#allocation2 + $0x18] sm:$0x3]
      %v532 = vld [vmem:[#allocation2 + $0x20] sm:$0xff]
      %v533 = vld [vmem:[#allocation2 + $0x28] sm:$0x3]
      %v534 = vld [vmem:[#allocation2 + $0x30] sm:$0xff]
      %v535 = vld [vmem:[#allocation2 + $0x38] sm:$0x3]
      %v536 = vld [vmem:[#allocation2 + $0x40] sm:$0xff]
      %v537 = vld [vmem:[#allocation2 + $0x48] sm:$0x3]
      %v538 = vld [vmem:[#allocation2 + $0x50] sm:$0xff]
      %v539 = vld [vmem:[#allocation2 + $0x58] sm:$0x3]
      %v540 = vld [vmem:[#allocation2 + $0x60] sm:$0xff]
      %v541 = vld [vmem:[#allocation2 + $0x68] sm:$0x3]
      %v542 = vld [vmem:[#allocation2 + $0x70] sm:$0xff]
      %v543 = vld [vmem:[#allocation2 + $0x78] sm:$0x3]
      %v544 = vcombine.low %v528, %v532
      %v545 = vcombine.high %v528, %v532
      %v547 = vunpack.c.l.s4 1983009808
      %v548 = vunpack.c.0.s8 %v547
      %v549 = vlaneseq
      %v550 = vshrl.u32 %v549, 7
      %v551 = vsub.s32 %v548, %v550
      %v552 = vrot.slane %v544, %v551
      %v554 = vunpack.c.l.s4 1983009808
      %v555 = vunpack.c.0.s8 %v554
      %v556 = vlaneseq
      %v557 = vshrl.u32 %v556, 7
      %v558 = vsub.s32 %v555, %v557
      %v559 = vrot.slane %v545, %v558
      %v560 = vcombine.low %v530, %v534
      %v561 = vcombine.high %v530, %v534
      %v563 = vunpack.c.l.s4 1983009808
      %v564 = vunpack.c.0.s8 %v563
      %v565 = vlaneseq
      %v566 = vshrl.u32 %v565, 7
      %v567 = vsub.s32 %v564, %v566
      %v568 = vrot.slane %v560, %v567
      %v570 = vunpack.c.l.s4 1983009808
      %v571 = vunpack.c.0.s8 %v570
      %v572 = vlaneseq
      %v573 = vshrl.u32 %v572, 7
      %v574 = vsub.s32 %v571, %v573
      %v575 = vrot.slane %v561, %v574
      %v576 = vcombine.low %v536, %v540
      %v577 = vcombine.high %v536, %v540
      %v579 = vunpack.c.l.s4 1983009808
      %v580 = vunpack.c.0.s8 %v579
      %v581 = vlaneseq
      %v582 = vshrl.u32 %v581, 7
      %v583 = vsub.s32 %v580, %v582
      %v584 = vrot.slane %v576, %v583
      %v586 = vunpack.c.l.s4 1983009808
      %v587 = vunpack.c.0.s8 %v586
      %v588 = vlaneseq
      %v589 = vshrl.u32 %v588, 7
      %v590 = vsub.s32 %v587, %v589
      %v591 = vrot.slane %v577, %v590
      %v592 = vcombine.low %v538, %v542
      %v593 = vcombine.high %v538, %v542
      %v595 = vunpack.c.l.s4 1983009808
      %v596 = vunpack.c.0.s8 %v595
      %v597 = vlaneseq
      %v598 = vshrl.u32 %v597, 7
      %v599 = vsub.s32 %v596, %v598
      %v600 = vrot.slane %v592, %v599
      %v602 = vunpack.c.l.s4 1983009808
      %v603 = vunpack.c.0.s8 %v602
      %v604 = vlaneseq
      %v605 = vshrl.u32 %v604, 7
      %v606 = vsub.s32 %v603, %v605
      %v607 = vrot.slane %v593, %v606
      %v608 = vcombine.low %v552, %v568
      %v609 = vcombine.high %v552, %v568
      %v611 = vunpack.c.l.s4 1934713408
      %v612 = vunpack.c.0.s8 %v611
      %v613 = vlaneseq
      %v614 = vshrl.u32 %v613, 7
      %v615 = vsub.s32 %v612, %v614
      %v616 = vrot.slane %v608, %v615
      %v618 = vunpack.c.l.s4 1934713408
      %v619 = vunpack.c.0.s8 %v618
      %v620 = vlaneseq
      %v621 = vshrl.u32 %v620, 7
      %v622 = vsub.s32 %v619, %v621
      %v623 = vrot.slane %v609, %v622
      %v624 = vcombine.low %v559, %v575
      %v625 = vcombine.high %v559, %v575
      %v627 = vunpack.c.l.s4 1934713408
      %v628 = vunpack.c.0.s8 %v627
      %v629 = vlaneseq
      %v630 = vshrl.u32 %v629, 7
      %v631 = vsub.s32 %v628, %v630
      %v632 = vrot.slane %v624, %v631
      %v634 = vunpack.c.l.s4 1934713408
      %v635 = vunpack.c.0.s8 %v634
      %v636 = vlaneseq
      %v637 = vshrl.u32 %v636, 7
      %v638 = vsub.s32 %v635, %v637
      %v639 = vrot.slane %v625, %v638
      %v640 = vcombine.low %v584, %v600
      %v641 = vcombine.high %v584, %v600
      %v643 = vunpack.c.l.s4 1934713408
      %v644 = vunpack.c.0.s8 %v643
      %v645 = vlaneseq
      %v646 = vshrl.u32 %v645, 7
      %v647 = vsub.s32 %v644, %v646
      %v648 = vrot.slane %v640, %v647
      %v650 = vunpack.c.l.s4 1934713408
      %v651 = vunpack.c.0.s8 %v650
      %v652 = vlaneseq
      %v653 = vshrl.u32 %v652, 7
      %v654 = vsub.s32 %v651, %v653
      %v655 = vrot.slane %v641, %v654
      %v656 = vcombine.low %v591, %v607
      %v657 = vcombine.high %v591, %v607
      %v659 = vunpack.c.l.s4 1934713408
      %v660 = vunpack.c.0.s8 %v659
      %v661 = vlaneseq
      %v662 = vshrl.u32 %v661, 7
      %v663 = vsub.s32 %v660, %v662
      %v664 = vrot.slane %v656, %v663
      %v666 = vunpack.c.l.s4 1934713408
      %v667 = vunpack.c.0.s8 %v666
      %v668 = vlaneseq
      %v669 = vshrl.u32 %v668, 7
      %v670 = vsub.s32 %v667, %v669
      %v671 = vrot.slane %v657, %v670
      %v672 = vcombine.low %v616, %v648
      %v673 = vcombine.high %v616, %v648
      %v674 = vcombine.low %v623, %v655
      %v675 = vcombine.high %v623, %v655
      %v676 = vcombine.low %v632, %v664
      %v677 = vcombine.high %v632, %v664
      %v678 = vcombine.low %v639, %v671
      %v679 = vcombine.high %v639, %v671
      %681 = vrot.lane.b32.xlu0 %v673, 8
      %v682 = vpop.permute.xlu0 %681
      %685 = vrot.lane.b32.xlu0 %v674, 16
      %v686 = vpop.permute.xlu0 %685
      %689 = vrot.lane.b32.xlu0 %v675, 24
      %v690 = vpop.permute.xlu0 %689
      %693 = vrot.lane.b32.xlu0 %v676, 32
      %v694 = vpop.permute.xlu0 %693
      %697 = vrot.lane.b32.xlu0 %v677, 40
      %v698 = vpop.permute.xlu0 %697
      %701 = vrot.lane.b32.xlu0 %v678, 48
      %v702 = vpop.permute.xlu0 %701
      %705 = vrot.lane.b32.xlu0 %v679, 56
      %v706 = vpop.permute.xlu0 %705
      %vm708 = vcmask 64512
      %v709 = vsel %vm708, %v672, %v682
      %vm710 = vcmask 130048
      %v711 = vsel %vm710, %v709, %v686
      %vm712 = vcmask 195584
      %v713 = vsel %vm712, %v711, %v690
      %vm714 = vcmask 261120
      %v715 = vsel %vm714, %v713, %v694
      %vm716 = vcmask 326656
      %v717 = vsel %vm716, %v715, %v698
      %vm718 = vcmask 392192
      %v719 = vsel %vm718, %v717, %v702
      %vm720 = vcmask 457728
      %v721 = vsel %vm720, %v719, %v706
      %v722 = vld [vmem:[%s3] sm:$0xff]
      %731 = vrot.lane.b32.xlu0 %v528, 127
      %v732 = vpop.permute.xlu0 %731
      %733 = vrot.lane.b32.xlu0 %v530, 127
      %v734 = vpop.permute.xlu0 %733
      %735 = vrot.lane.b32.xlu0 %v532, 127
      %v736 = vpop.permute.xlu0 %735
      %737 = vrot.lane.b32.xlu0 %v534, 127
      %v738 = vpop.permute.xlu0 %737
      %739 = vrot.lane.b32.xlu0 %v536, 127
      %v740 = vpop.permute.xlu0 %739
      %741 = vrot.lane.b32.xlu0 %v538, 127
      %v742 = vpop.permute.xlu0 %741
      %743 = vrot.lane.b32.xlu0 %v540, 127
      %v744 = vpop.permute.xlu0 %743
      %745 = vrot.lane.b32.xlu0 %v542, 127
      %v746 = vpop.permute.xlu0 %745
      %v755 = vcombine.low %v732, %v736
      %v756 = vcombine.high %v732, %v736
      %v758 = vunpack.c.l.s4 1983009808
      %v759 = vunpack.c.0.s8 %v758
      %v760 = vlaneseq
      %v761 = vshrl.u32 %v760, 7
      %v762 = vsub.s32 %v759, %v761
      %v763 = vrot.slane %v755, %v762
      %v765 = vunpack.c.l.s4 1983009808
      %v766 = vunpack.c.0.s8 %v765
      %v767 = vlaneseq
      %v768 = vshrl.u32 %v767, 7
      %v769 = vsub.s32 %v766, %v768
      %v770 = vrot.slane %v756, %v769
      %v771 = vcombine.low %v734, %v738
      %v772 = vcombine.high %v734, %v738
      %v774 = vunpack.c.l.s4 1983009808
      %v775 = vunpack.c.0.s8 %v774
      %v776 = vlaneseq
      %v777 = vshrl.u32 %v776, 7
      %v778 = vsub.s32 %v775, %v777
      %v779 = vrot.slane %v771, %v778
      %v781 = vunpack.c.l.s4 1983009808
      %v782 = vunpack.c.0.s8 %v781
      %v783 = vlaneseq
      %v784 = vshrl.u32 %v783, 7
      %v785 = vsub.s32 %v782, %v784
      %v786 = vrot.slane %v772, %v785
      %v787 = vcombine.low %v740, %v744
      %v788 = vcombine.high %v740, %v744
      %v790 = vunpack.c.l.s4 1983009808
      %v791 = vunpack.c.0.s8 %v790
      %v792 = vlaneseq
      %v793 = vshrl.u32 %v792, 7
      %v794 = vsub.s32 %v791, %v793
      %v795 = vrot.slane %v787, %v794
      %v797 = vunpack.c.l.s4 1983009808
      %v798 = vunpack.c.0.s8 %v797
      %v799 = vlaneseq
      %v800 = vshrl.u32 %v799, 7
      %v801 = vsub.s32 %v798, %v800
      %v802 = vrot.slane %v788, %v801
      %v803 = vcombine.low %v742, %v746
      %v804 = vcombine.high %v742, %v746
      %v806 = vunpack.c.l.s4 1983009808
      %v807 = vunpack.c.0.s8 %v806
      %v808 = vlaneseq
      %v809 = vshrl.u32 %v808, 7
      %v810 = vsub.s32 %v807, %v809
      %v811 = vrot.slane %v803, %v810
      %v813 = vunpack.c.l.s4 1983009808
      %v814 = vunpack.c.0.s8 %v813
      %v815 = vlaneseq
      %v816 = vshrl.u32 %v815, 7
      %v817 = vsub.s32 %v814, %v816
      %v818 = vrot.slane %v804, %v817
      %v819 = vcombine.low %v763, %v779
      %v820 = vcombine.high %v763, %v779
      %v822 = vunpack.c.l.s4 1934713408
      %v823 = vunpack.c.0.s8 %v822
      %v824 = vlaneseq
      %v825 = vshrl.u32 %v824, 7
      %v826 = vsub.s32 %v823, %v825
      %v827 = vrot.slane %v819, %v826
      %v829 = vunpack.c.l.s4 1934713408
      %v830 = vunpack.c.0.s8 %v829
      %v831 = vlaneseq
      %v832 = vshrl.u32 %v831, 7
      %v833 = vsub.s32 %v830, %v832
      %v834 = vrot.slane %v820, %v833
      %v835 = vcombine.low %v770, %v786
      %v836 = vcombine.high %v770, %v786
      %v838 = vunpack.c.l.s4 1934713408
      %v839 = vunpack.c.0.s8 %v838
      %v840 = vlaneseq
      %v841 = vshrl.u32 %v840, 7
      %v842 = vsub.s32 %v839, %v841
      %v843 = vrot.slane %v835, %v842
      %v845 = vunpack.c.l.s4 1934713408
      %v846 = vunpack.c.0.s8 %v845
      %v847 = vlaneseq
      %v848 = vshrl.u32 %v847, 7
      %v849 = vsub.s32 %v846, %v848
      %v850 = vrot.slane %v836, %v849
      %v851 = vcombine.low %v795, %v811
      %v852 = vcombine.high %v795, %v811
      %v854 = vunpack.c.l.s4 1934713408
      %v855 = vunpack.c.0.s8 %v854
      %v856 = vlaneseq
      %v857 = vshrl.u32 %v856, 7
      %v858 = vsub.s32 %v855, %v857
      %v859 = vrot.slane %v851, %v858
      %v861 = vunpack.c.l.s4 1934713408
      %v862 = vunpack.c.0.s8 %v861
      %v863 = vlaneseq
      %v864 = vshrl.u32 %v863, 7
      %v865 = vsub.s32 %v862, %v864
      %v866 = vrot.slane %v852, %v865
      %v867 = vcombine.low %v802, %v818
      %v868 = vcombine.high %v802, %v818
      %v870 = vunpack.c.l.s4 1934713408
      %v871 = vunpack.c.0.s8 %v870
      %v872 = vlaneseq
      %v873 = vshrl.u32 %v872, 7
      %v874 = vsub.s32 %v871, %v873
      %v875 = vrot.slane %v867, %v874
      %v877 = vunpack.c.l.s4 1934713408
      %v878 = vunpack.c.0.s8 %v877
      %v879 = vlaneseq
      %v880 = vshrl.u32 %v879, 7
      %v881 = vsub.s32 %v878, %v880
      %v882 = vrot.slane %v868, %v881
      %v883 = vcombine.low %v827, %v859
      %v884 = vcombine.high %v827, %v859
      %v885 = vcombine.low %v834, %v866
      %v886 = vcombine.high %v834, %v866
      %v887 = vcombine.low %v843, %v875
      %v888 = vcombine.high %v843, %v875
      %v889 = vcombine.low %v850, %v882
      %v890 = vcombine.high %v850, %v882
      %892 = vrot.lane.b32.xlu0 %v884, 8
      %v893 = vpop.permute.xlu0 %892
      %896 = vrot.lane.b32.xlu0 %v885, 16
      %v897 = vpop.permute.xlu0 %896
      %900 = vrot.lane.b32.xlu0 %v886, 24
      %v901 = vpop.permute.xlu0 %900
      %904 = vrot.lane.b32.xlu0 %v887, 32
      %v905 = vpop.permute.xlu0 %904
      %908 = vrot.lane.b32.xlu0 %v888, 40
      %v909 = vpop.permute.xlu0 %908
      %912 = vrot.lane.b32.xlu0 %v889, 48
      %v913 = vpop.permute.xlu0 %912
      %916 = vrot.lane.b32.xlu0 %v890, 56
      %v917 = vpop.permute.xlu0 %916
      %v919 = vsel %vm708, %v883, %v893
      %v920 = vsel %vm710, %v919, %v897
      %v921 = vsel %vm712, %v920, %v901
      %v922 = vsel %vm714, %v921, %v905
      %v923 = vsel %vm716, %v922, %v909
      %v924 = vsel %vm718, %v923, %v913
      %v925 = vsel %vm720, %v924, %v917
      %s926 = scalar_lea.vmem %s3, 8
      %v927 = vld [vmem:[%s926] sm:$0xff]
      %v929 = vsel %vm708, %v927, 0
      %931 = vmatprep.subr.mxu0 0.0
      %932 = vmatpush1.msra.mxu0 %v925
      %933 = vmatprep.subr.mxu0 0.0
      %934 = vmatpush1.msra.mxu0 0.0
      %935 = vmatprep.subr.mxu0 0.0
      %936 = vmatpush1.msra.mxu0 0.0
      %937 = vmatprep.subr.mxu0 0.0
      %938 = vmatpush1.msra.mxu0 0.0
      %939 = vmatprep.subr.mxu0 0.0
      %940 = vmatpush1.msra.mxu0 0.0
      %941 = vmatprep.subr.mxu0 0.0
      %942 = vmatpush1.msra.mxu0 0.0
      %943 = vmatprep.subr.mxu0 0.0
      %944 = vmatpush1.msra.mxu0 0.0
      %945 = vmatprep.subr.mxu0 0.0
      %946 = vmatpush1.msra.mxu0 0.0
      %947 = vmatprep.subr.mxu0 0.0
      %948 = vmatpush1.msra.mxu0 0.0
      %949 = vmatprep.subr.mxu0 0.0
      %950 = vmatpush1.msra.mxu0 0.0
      %951 = vmatprep.subr.mxu0 0.0
      %952 = vmatpush1.msra.mxu0 0.0
      %953 = vmatprep.subr.mxu0 0.0
      %954 = vmatpush1.msra.mxu0 0.0
      %955 = vmatprep.subr.mxu0 0.0
      %956 = vmatpush1.msra.mxu0 0.0
      %957 = vmatprep.subr.mxu0 0.0
      %958 = vmatpush1.msra.mxu0 0.0
      %959 = vmatprep.subr.mxu0 0.0
      %960 = vmatpush1.msra.mxu0 0.0
      %961 = vmatprep.subr.mxu0 0.0
      %962 = vmatpush1.msra.mxu0 0.0
      %963 = vmatprep.subr.mxu0 0.0
      %964 = vmatpush1.msra.mxu0 0.0
      %965 = vmatprep.subr.mxu0 0.0
      %966 = vmatpush1.msra.mxu0 0.0
      %967 = vmatprep.subr.mxu0 0.0
      %968 = vmatpush1.msra.mxu0 0.0
      %969 = vmatprep.subr.mxu0 0.0
      %970 = vmatpush1.msra.mxu0 0.0
      %971 = vmatprep.subr.mxu0 0.0
      %972 = vmatpush1.msra.mxu0 0.0
      %973 = vmatprep.subr.mxu0 0.0
      %974 = vmatpush1.msra.mxu0 0.0
      %975 = vmatprep.subr.mxu0 0.0
      %976 = vmatpush1.msra.mxu0 0.0
      %977 = vmatprep.subr.mxu0 0.0
      %978 = vmatpush1.msra.mxu0 0.0
      %979 = vmatprep.subr.mxu0 0.0
      %980 = vmatpush1.msra.mxu0 0.0
      %981 = vmatprep.subr.mxu0 0.0
      %982 = vmatpush1.msra.mxu0 0.0
      %983 = vmatprep.subr.mxu0 0.0
      %984 = vmatpush1.msra.mxu0 0.0
      %985 = vmatprep.subr.mxu0 0.0
      %986 = vmatpush1.msra.mxu0 0.0
      %987 = vmatprep.subr.mxu0 0.0
      %988 = vmatpush1.msra.mxu0 0.0
      %989 = vmatprep.subr.mxu0 0.0
      %990 = vmatpush1.msra.mxu0 0.0
      %991 = vmatprep.subr.mxu0 0.0
      %992 = vmatpush1.msra.mxu0 0.0
      %993 = vmatprep.subr.mxu0 0.0
      %994 = vmatpush1.msra.mxu0 0.0
      %995 = vmatprep.mubr.f32.mxu0 0.0
      %996 = vmatmul.mubr.f32.gmra.mrb[0].mxu0 %v929
      %v997 = vpop.f32.mrb[0].mxu0
      %v998 = vadd.f32 0.0, %v997
      %v999 = vpop.f32.mrb[0].mxu0
      %1000 = vdwg.mxu0
      %v1002 = vsel %vm708, %v722, 0
      %1004 = vmatprep.subr.mxu0 0.0
      %1005 = vmatpush1.msra.mxu0 %v721
      %1006 = vmatprep.subr.mxu0 0.0
      %1007 = vmatpush1.msra.mxu0 0.0
      %1008 = vmatprep.subr.mxu0 0.0
      %1009 = vmatpush1.msra.mxu0 0.0
      %1010 = vmatprep.subr.mxu0 0.0
      %1011 = vmatpush1.msra.mxu0 0.0
      %1012 = vmatprep.subr.mxu0 0.0
      %1013 = vmatpush1.msra.mxu0 0.0
      %1014 = vmatprep.subr.mxu0 0.0
      %1015 = vmatpush1.msra.mxu0 0.0
      %1016 = vmatprep.subr.mxu0 0.0
      %1017 = vmatpush1.msra.mxu0 0.0
      %1018 = vmatprep.subr.mxu0 0.0
      %1019 = vmatpush1.msra.mxu0 0.0
      %1020 = vmatprep.subr.mxu0 0.0
      %1021 = vmatpush1.msra.mxu0 0.0
      %1022 = vmatprep.subr.mxu0 0.0
      %1023 = vmatpush1.msra.mxu0 0.0
      %1024 = vmatprep.subr.mxu0 0.0
      %1025 = vmatpush1.msra.mxu0 0.0
      %1026 = vmatprep.subr.mxu0 0.0
      %1027 = vmatpush1.msra.mxu0 0.0
      %1028 = vmatprep.subr.mxu0 0.0
      %1029 = vmatpush1.msra.mxu0 0.0
      %1030 = vmatprep.subr.mxu0 0.0
      %1031 = vmatpush1.msra.mxu0 0.0
      %1032 = vmatprep.subr.mxu0 0.0
      %1033 = vmatpush1.msra.mxu0 0.0
      %1034 = vmatprep.subr.mxu0 0.0
      %1035 = vmatpush1.msra.mxu0 0.0
      %1036 = vmatprep.subr.mxu0 0.0
      %1037 = vmatpush1.msra.mxu0 0.0
      %1038 = vmatprep.subr.mxu0 0.0
      %1039 = vmatpush1.msra.mxu0 0.0
      %1040 = vmatprep.subr.mxu0 0.0
      %1041 = vmatpush1.msra.mxu0 0.0
      %1042 = vmatprep.subr.mxu0 0.0
      %1043 = vmatpush1.msra.mxu0 0.0
      %1044 = vmatprep.subr.mxu0 0.0
      %1045 = vmatpush1.msra.mxu0 0.0
      %1046 = vmatprep.subr.mxu0 0.0
      %1047 = vmatpush1.msra.mxu0 0.0
      %1048 = vmatprep.subr.mxu0 0.0
      %1049 = vmatpush1.msra.mxu0 0.0
      %1050 = vmatprep.subr.mxu0 0.0
      %1051 = vmatpush1.msra.mxu0 0.0
      %1052 = vmatprep.subr.mxu0 0.0
      %1053 = vmatpush1.msra.mxu0 0.0
      %1054 = vmatprep.subr.mxu0 0.0
      %1055 = vmatpush1.msra.mxu0 0.0
      %1056 = vmatprep.subr.mxu0 0.0
      %1057 = vmatpush1.msra.mxu0 0.0
      %1058 = vmatprep.subr.mxu0 0.0
      %1059 = vmatpush1.msra.mxu0 0.0
      %1060 = vmatprep.subr.mxu0 0.0
      %1061 = vmatpush1.msra.mxu0 0.0
      %1062 = vmatprep.subr.mxu0 0.0
      %1063 = vmatpush1.msra.mxu0 0.0
      %1064 = vmatprep.subr.mxu0 0.0
      %1065 = vmatpush1.msra.mxu0 0.0
      %1066 = vmatprep.subr.mxu0 0.0
      %1067 = vmatpush1.msra.mxu0 0.0
      %1068 = vmatprep.mubr.f32.mxu0 0.0
      %1069 = vmatmul.mubr.f32.gmra.mrb[0].mxu0 %v1002
      %v1070 = vpop.f32.mrb[0].mxu0
      %v1071 = vadd.f32 %v998, %v1070
      %v1072 = vpop.f32.mrb[0].mxu0
      %1073 = vdwg.mxu0
      %1074 = vrot.lane.b32.xlu0 %v528, 126
      %v1075 = vpop.permute.xlu0 %1074
      %1076 = vrot.lane.b32.xlu0 %v530, 126
      %v1077 = vpop.permute.xlu0 %1076
      %1078 = vrot.lane.b32.xlu0 %v532, 126
      %v1079 = vpop.permute.xlu0 %1078
      %1080 = vrot.lane.b32.xlu0 %v534, 126
      %v1081 = vpop.permute.xlu0 %1080
      %1082 = vrot.lane.b32.xlu0 %v536, 126
      %v1083 = vpop.permute.xlu0 %1082
      %1084 = vrot.lane.b32.xlu0 %v538, 126
      %v1085 = vpop.permute.xlu0 %1084
      %1086 = vrot.lane.b32.xlu0 %v540, 126
      %v1087 = vpop.permute.xlu0 %1086
      %1088 = vrot.lane.b32.xlu0 %v542, 126
      %v1089 = vpop.permute.xlu0 %1088
      %v1098 = vcombine.low %v1075, %v1079
      %v1099 = vcombine.high %v1075, %v1079
      %v1101 = vunpack.c.l.s4 1983009808
      %v1102 = vunpack.c.0.s8 %v1101
      %v1103 = vlaneseq
      %v1104 = vshrl.u32 %v1103, 7
      %v1105 = vsub.s32 %v1102, %v1104
      %v1106 = vrot.slane %v1098, %v1105
      %v1108 = vunpack.c.l.s4 1983009808
      %v1109 = vunpack.c.0.s8 %v1108
      %v1110 = vlaneseq
      %v1111 = vshrl.u32 %v1110, 7
      %v1112 = vsub.s32 %v1109, %v1111
      %v1113 = vrot.slane %v1099, %v1112
      %v1114 = vcombine.low %v1077, %v1081
      %v1115 = vcombine.high %v1077, %v1081
      %v1117 = vunpack.c.l.s4 1983009808
      %v1118 = vunpack.c.0.s8 %v1117
      %v1119 = vlaneseq
      %v1120 = vshrl.u32 %v1119, 7
      %v1121 = vsub.s32 %v1118, %v1120
      %v1122 = vrot.slane %v1114, %v1121
      %v1124 = vunpack.c.l.s4 1983009808
      %v1125 = vunpack.c.0.s8 %v1124
      %v1126 = vlaneseq
      %v1127 = vshrl.u32 %v1126, 7
      %v1128 = vsub.s32 %v1125, %v1127
      %v1129 = vrot.slane %v1115, %v1128
      %v1130 = vcombine.low %v1083, %v1087
      %v1131 = vcombine.high %v1083, %v1087
      %v1133 = vunpack.c.l.s4 1983009808
      %v1134 = vunpack.c.0.s8 %v1133
      %v1135 = vlaneseq
      %v1136 = vshrl.u32 %v1135, 7
      %v1137 = vsub.s32 %v1134, %v1136
      %v1138 = vrot.slane %v1130, %v1137
      %v1140 = vunpack.c.l.s4 1983009808
      %v1141 = vunpack.c.0.s8 %v1140
      %v1142 = vlaneseq
      %v1143 = vshrl.u32 %v1142, 7
      %v1144 = vsub.s32 %v1141, %v1143
      %v1145 = vrot.slane %v1131, %v1144
      %v1146 = vcombine.low %v1085, %v1089
      %v1147 = vcombine.high %v1085, %v1089
      %v1149 = vunpack.c.l.s4 1983009808
      %v1150 = vunpack.c.0.s8 %v1149
      %v1151 = vlaneseq
      %v1152 = vshrl.u32 %v1151, 7
      %v1153 = vsub.s32 %v1150, %v1152
      %v1154 = vrot.slane %v1146, %v1153
      %v1156 = vunpack.c.l.s4 1983009808
      %v1157 = vunpack.c.0.s8 %v1156
      %v1158 = vlaneseq
      %v1159 = vshrl.u32 %v1158, 7
      %v1160 = vsub.s32 %v1157, %v1159
      %v1161 = vrot.slane %v1147, %v1160
      %v1162 = vcombine.low %v1106, %v1122
      %v1163 = vcombine.high %v1106, %v1122
      %v1165 = vunpack.c.l.s4 1934713408
      %v1166 = vunpack.c.0.s8 %v1165
      %v1167 = vlaneseq
      %v1168 = vshrl.u32 %v1167, 7
      %v1169 = vsub.s32 %v1166, %v1168
      %v1170 = vrot.slane %v1162, %v1169
      %v1172 = vunpack.c.l.s4 1934713408
      %v1173 = vunpack.c.0.s8 %v1172
      %v1174 = vlaneseq
      %v1175 = vshrl.u32 %v1174, 7
      %v1176 = vsub.s32 %v1173, %v1175
      %v1177 = vrot.slane %v1163, %v1176
      %v1178 = vcombine.low %v1113, %v1129
      %v1179 = vcombine.high %v1113, %v1129
      %v1181 = vunpack.c.l.s4 1934713408
      %v1182 = vunpack.c.0.s8 %v1181
      %v1183 = vlaneseq
      %v1184 = vshrl.u32 %v1183, 7
      %v1185 = vsub.s32 %v1182, %v1184
      %v1186 = vrot.slane %v1178, %v1185
      %v1188 = vunpack.c.l.s4 1934713408
      %v1189 = vunpack.c.0.s8 %v1188
      %v1190 = vlaneseq
      %v1191 = vshrl.u32 %v1190, 7
      %v1192 = vsub.s32 %v1189, %v1191
      %v1193 = vrot.slane %v1179, %v1192
      %v1194 = vcombine.low %v1138, %v1154
      %v1195 = vcombine.high %v1138, %v1154
      %v1197 = vunpack.c.l.s4 1934713408
      %v1198 = vunpack.c.0.s8 %v1197
      %v1199 = vlaneseq
      %v1200 = vshrl.u32 %v1199, 7
      %v1201 = vsub.s32 %v1198, %v1200
      %v1202 = vrot.slane %v1194, %v1201
      %v1204 = vunpack.c.l.s4 1934713408
      %v1205 = vunpack.c.0.s8 %v1204
      %v1206 = vlaneseq
      %v1207 = vshrl.u32 %v1206, 7
      %v1208 = vsub.s32 %v1205, %v1207
      %v1209 = vrot.slane %v1195, %v1208
      %v1210 = vcombine.low %v1145, %v1161
      %v1211 = vcombine.high %v1145, %v1161
      %v1213 = vunpack.c.l.s4 1934713408
      %v1214 = vunpack.c.0.s8 %v1213
      %v1215 = vlaneseq
      %v1216 = vshrl.u32 %v1215, 7
      %v1217 = vsub.s32 %v1214, %v1216
      %v1218 = vrot.slane %v1210, %v1217
      %v1220 = vunpack.c.l.s4 1934713408
      %v1221 = vunpack.c.0.s8 %v1220
      %v1222 = vlaneseq
      %v1223 = vshrl.u32 %v1222, 7
      %v1224 = vsub.s32 %v1221, %v1223
      %v1225 = vrot.slane %v1211, %v1224
      %v1226 = vcombine.low %v1170, %v1202
      %v1227 = vcombine.high %v1170, %v1202
      %v1228 = vcombine.low %v1177, %v1209
      %v1229 = vcombine.high %v1177, %v1209
      %v1230 = vcombine.low %v1186, %v1218
      %v1231 = vcombine.high %v1186, %v1218
      %v1232 = vcombine.low %v1193, %v1225
      %v1233 = vcombine.high %v1193, %v1225
      %1235 = vrot.lane.b32.xlu0 %v1227, 8
      %v1236 = vpop.permute.xlu0 %1235
      %1239 = vrot.lane.b32.xlu0 %v1228, 16
      %v1240 = vpop.permute.xlu0 %1239
      %1243 = vrot.lane.b32.xlu0 %v1229, 24
      %v1244 = vpop.permute.xlu0 %1243
      %1247 = vrot.lane.b32.xlu0 %v1230, 32
      %v1248 = vpop.permute.xlu0 %1247
      %1251 = vrot.lane.b32.xlu0 %v1231, 40
      %v1252 = vpop.permute.xlu0 %1251
      %1255 = vrot.lane.b32.xlu0 %v1232, 48
      %v1256 = vpop.permute.xlu0 %1255
      %1259 = vrot.lane.b32.xlu0 %v1233, 56
      %v1260 = vpop.permute.xlu0 %1259
      %v1262 = vsel %vm708, %v1226, %v1236
      %v1263 = vsel %vm710, %v1262, %v1240
      %v1264 = vsel %vm712, %v1263, %v1244
      %v1265 = vsel %vm714, %v1264, %v1248
      %v1266 = vsel %vm716, %v1265, %v1252
      %v1267 = vsel %vm718, %v1266, %v1256
      %v1268 = vsel %vm720, %v1267, %v1260
      %s1269 = scalar_lea.vmem %s3, 16
      %v1270 = vld [vmem:[%s1269] sm:$0xff]
      %v1272 = vsel %vm708, %v1270, 0
      %1274 = vmatprep.subr.mxu0 0.0
      %1275 = vmatpush1.msra.mxu0 %v1268
      %1276 = vmatprep.subr.mxu0 0.0
      %1277 = vmatpush1.msra.mxu0 0.0
      %1278 = vmatprep.subr.mxu0 0.0
      %1279 = vmatpush1.msra.mxu0 0.0
      %1280 = vmatprep.subr.mxu0 0.0
      %1281 = vmatpush1.msra.mxu0 0.0
      %1282 = vmatprep.subr.mxu0 0.0
      %1283 = vmatpush1.msra.mxu0 0.0
      %1284 = vmatprep.subr.mxu0 0.0
      %1285 = vmatpush1.msra.mxu0 0.0
      %1286 = vmatprep.subr.mxu0 0.0
      %1287 = vmatpush1.msra.mxu0 0.0
      %1288 = vmatprep.subr.mxu0 0.0
      %1289 = vmatpush1.msra.mxu0 0.0
      %1290 = vmatprep.subr.mxu0 0.0
      %1291 = vmatpush1.msra.mxu0 0.0
      %1292 = vmatprep.subr.mxu0 0.0
      %1293 = vmatpush1.msra.mxu0 0.0
      %1294 = vmatprep.subr.mxu0 0.0
      %1295 = vmatpush1.msra.mxu0 0.0
      %1296 = vmatprep.subr.mxu0 0.0
      %1297 = vmatpush1.msra.mxu0 0.0
      %1298 = vmatprep.subr.mxu0 0.0
      %1299 = vmatpush1.msra.mxu0 0.0
      %1300 = vmatprep.subr.mxu0 0.0
      %1301 = vmatpush1.msra.mxu0 0.0
      %1302 = vmatprep.subr.mxu0 0.0
      %1303 = vmatpush1.msra.mxu0 0.0
      %1304 = vmatprep.subr.mxu0 0.0
      %1305 = vmatpush1.msra.mxu0 0.0
      %1306 = vmatprep.subr.mxu0 0.0
      %1307 = vmatpush1.msra.mxu0 0.0
      %1308 = vmatprep.subr.mxu0 0.0
      %1309 = vmatpush1.msra.mxu0 0.0
      %1310 = vmatprep.subr.mxu0 0.0
      %1311 = vmatpush1.msra.mxu0 0.0
      %1312 = vmatprep.subr.mxu0 0.0
      %1313 = vmatpush1.msra.mxu0 0.0
      %1314 = vmatprep.subr.mxu0 0.0
      %1315 = vmatpush1.msra.mxu0 0.0
      %1316 = vmatprep.subr.mxu0 0.0
      %1317 = vmatpush1.msra.mxu0 0.0
      %1318 = vmatprep.subr.mxu0 0.0
      %1319 = vmatpush1.msra.mxu0 0.0
      %1320 = vmatprep.subr.mxu0 0.0
      %1321 = vmatpush1.msra.mxu0 0.0
      %1322 = vmatprep.subr.mxu0 0.0
      %1323 = vmatpush1.msra.mxu0 0.0
      %1324 = vmatprep.subr.mxu0 0.0
      %1325 = vmatpush1.msra.mxu0 0.0
      %1326 = vmatprep.subr.mxu0 0.0
      %1327 = vmatpush1.msra.mxu0 0.0
      %1328 = vmatprep.subr.mxu0 0.0
      %1329 = vmatpush1.msra.mxu0 0.0
      %1330 = vmatprep.subr.mxu0 0.0
      %1331 = vmatpush1.msra.mxu0 0.0
      %1332 = vmatprep.subr.mxu0 0.0
      %1333 = vmatpush1.msra.mxu0 0.0
      %1334 = vmatprep.subr.mxu0 0.0
      %1335 = vmatpush1.msra.mxu0 0.0
      %1336 = vmatprep.subr.mxu0 0.0
      %1337 = vmatpush1.msra.mxu0 0.0
      %1338 = vmatprep.mubr.f32.mxu0 0.0
      %1339 = vmatmul.mubr.f32.gmra.mrb[0].mxu0 %v1272
      %v1340 = vpop.f32.mrb[0].mxu0
      %v1341 = vadd.f32 0.0, %v1340
      %v1342 = vpop.f32.mrb[0].mxu0
      %1343 = vdwg.mxu0
      %v1344 = vadd.f32 %v1071, %v1341
      %vm1353 = vcmask 1046528
      %v1354 = vrot.slane %v528, 1
      %v1355 = vrot.slane %v529, 1
      %v1356 = vsel %vm1353, %v1354, %v1355
      %v1357 = vrot.slane %v530, 1
      %v1358 = vrot.slane %v531, 1
      %v1359 = vsel %vm1353, %v1357, %v1358
      %v1360 = vrot.slane %v532, 1
      %v1361 = vrot.slane %v533, 1
      %v1362 = vsel %vm1353, %v1360, %v1361
      %v1363 = vrot.slane %v534, 1
      %v1364 = vrot.slane %v535, 1
      %v1365 = vsel %vm1353, %v1363, %v1364
      %v1366 = vrot.slane %v536, 1
      %v1367 = vrot.slane %v537, 1
      %v1368 = vsel %vm1353, %v1366, %v1367
      %v1369 = vrot.slane %v538, 1
      %v1370 = vrot.slane %v539, 1
      %v1371 = vsel %vm1353, %v1369, %v1370
      %v1372 = vrot.slane %v540, 1
      %v1373 = vrot.slane %v541, 1
      %v1374 = vsel %vm1353, %v1372, %v1373
      %v1375 = vrot.slane %v542, 1
      %v1376 = vrot.slane %v543, 1
      %v1377 = vsel %vm1353, %v1375, %v1376
      %v1386 = vcombine.low %v1356, %v1362
      %v1387 = vcombine.high %v1356, %v1362
      %v1389 = vunpack.c.l.s4 1983009808
      %v1390 = vunpack.c.0.s8 %v1389
      %v1391 = vlaneseq
      %v1392 = vshrl.u32 %v1391, 7
      %v1393 = vsub.s32 %v1390, %v1392
      %v1394 = vrot.slane %v1386, %v1393
      %v1396 = vunpack.c.l.s4 1983009808
      %v1397 = vunpack.c.0.s8 %v1396
      %v1398 = vlaneseq
      %v1399 = vshrl.u32 %v1398, 7
      %v1400 = vsub.s32 %v1397, %v1399
      %v1401 = vrot.slane %v1387, %v1400
      %v1402 = vcombine.low %v1359, %v1365
      %v1403 = vcombine.high %v1359, %v1365
      %v1405 = vunpack.c.l.s4 1983009808
      %v1406 = vunpack.c.0.s8 %v1405
      %v1407 = vlaneseq
      %v1408 = vshrl.u32 %v1407, 7
      %v1409 = vsub.s32 %v1406, %v1408
      %v1410 = vrot.slane %v1402, %v1409
      %v1412 = vunpack.c.l.s4 1983009808
      %v1413 = vunpack.c.0.s8 %v1412
      %v1414 = vlaneseq
      %v1415 = vshrl.u32 %v1414, 7
      %v1416 = vsub.s32 %v1413, %v1415
      %v1417 = vrot.slane %v1403, %v1416
      %v1418 = vcombine.low %v1368, %v1374
      %v1419 = vcombine.high %v1368, %v1374
      %v1421 = vunpack.c.l.s4 1983009808
      %v1422 = vunpack.c.0.s8 %v1421
      %v1423 = vlaneseq
      %v1424 = vshrl.u32 %v1423, 7
      %v1425 = vsub.s32 %v1422, %v1424
      %v1426 = vrot.slane %v1418, %v1425
      %v1428 = vunpack.c.l.s4 1983009808
      %v1429 = vunpack.c.0.s8 %v1428
      %v1430 = vlaneseq
      %v1431 = vshrl.u32 %v1430, 7
      %v1432 = vsub.s32 %v1429, %v1431
      %v1433 = vrot.slane %v1419, %v1432
      %v1434 = vcombine.low %v1371, %v1377
      %v1435 = vcombine.high %v1371, %v1377
      %v1437 = vunpack.c.l.s4 1983009808
      %v1438 = vunpack.c.0.s8 %v1437
      %v1439 = vlaneseq
      %v1440 = vshrl.u32 %v1439, 7
      %v1441 = vsub.s32 %v1438, %v1440
      %v1442 = vrot.slane %v1434, %v1441
      %v1444 = vunpack.c.l.s4 1983009808
      %v1445 = vunpack.c.0.s8 %v1444
      %v1446 = vlaneseq
      %v1447 = vshrl.u32 %v1446, 7
      %v1448 = vsub.s32 %v1445, %v1447
      %v1449 = vrot.slane %v1435, %v1448
      %v1450 = vcombine.low %v1394, %v1410
      %v1451 = vcombine.high %v1394, %v1410
      %v1453 = vunpack.c.l.s4 1934713408
      %v1454 = vunpack.c.0.s8 %v1453
      %v1455 = vlaneseq
      %v1456 = vshrl.u32 %v1455, 7
      %v1457 = vsub.s32 %v1454, %v1456
      %v1458 = vrot.slane %v1450, %v1457
      %v1460 = vunpack.c.l.s4 1934713408
      %v1461 = vunpack.c.0.s8 %v1460
      %v1462 = vlaneseq
      %v1463 = vshrl.u32 %v1462, 7
      %v1464 = vsub.s32 %v1461, %v1463
      %v1465 = vrot.slane %v1451, %v1464
      %v1466 = vcombine.low %v1401, %v1417
      %v1467 = vcombine.high %v1401, %v1417
      %v1469 = vunpack.c.l.s4 1934713408
      %v1470 = vunpack.c.0.s8 %v1469
      %v1471 = vlaneseq
      %v1472 = vshrl.u32 %v1471, 7
      %v1473 = vsub.s32 %v1470, %v1472
      %v1474 = vrot.slane %v1466, %v1473
      %v1476 = vunpack.c.l.s4 1934713408
      %v1477 = vunpack.c.0.s8 %v1476
      %v1478 = vlaneseq
      %v1479 = vshrl.u32 %v1478, 7
      %v1480 = vsub.s32 %v1477, %v1479
      %v1481 = vrot.slane %v1467, %v1480
      %v1482 = vcombine.low %v1426, %v1442
      %v1483 = vcombine.high %v1426, %v1442
      %v1485 = vunpack.c.l.s4 1934713408
      %v1486 = vunpack.c.0.s8 %v1485
      %v1487 = vlaneseq
      %v1488 = vshrl.u32 %v1487, 7
      %v1489 = vsub.s32 %v1486, %v1488
      %v1490 = vrot.slane %v1482, %v1489
      %v1492 = vunpack.c.l.s4 1934713408
      %v1493 = vunpack.c.0.s8 %v1492
      %v1494 = vlaneseq
      %v1495 = vshrl.u32 %v1494, 7
      %v1496 = vsub.s32 %v1493, %v1495
      %v1497 = vrot.slane %v1483, %v1496
      %v1498 = vcombine.low %v1433, %v1449
      %v1499 = vcombine.high %v1433, %v1449
      %v1501 = vunpack.c.l.s4 1934713408
      %v1502 = vunpack.c.0.s8 %v1501
      %v1503 = vlaneseq
      %v1504 = vshrl.u32 %v1503, 7
      %v1505 = vsub.s32 %v1502, %v1504
      %v1506 = vrot.slane %v1498, %v1505
      %v1508 = vunpack.c.l.s4 1934713408
      %v1509 = vunpack.c.0.s8 %v1508
      %v1510 = vlaneseq
      %v1511 = vshrl.u32 %v1510, 7
      %v1512 = vsub.s32 %v1509, %v1511
      %v1513 = vrot.slane %v1499, %v1512
      %v1514 = vcombine.low %v1458, %v1490
      %v1515 = vcombine.high %v1458, %v1490
      %v1516 = vcombine.low %v1465, %v1497
      %v1517 = vcombine.high %v1465, %v1497
      %v1518 = vcombine.low %v1474, %v1506
      %v1519 = vcombine.high %v1474, %v1506
      %v1520 = vcombine.low %v1481, %v1513
      %v1521 = vcombine.high %v1481, %v1513
      %1523 = vrot.lane.b32.xlu0 %v1515, 8
      %v1524 = vpop.permute.xlu0 %1523
      %1527 = vrot.lane.b32.xlu0 %v1516, 16
      %v1528 = vpop.permute.xlu0 %1527
      %1531 = vrot.lane.b32.xlu0 %v1517, 24
      %v1532 = vpop.permute.xlu0 %1531
      %1535 = vrot.lane.b32.xlu0 %v1518, 32
      %v1536 = vpop.permute.xlu0 %1535
      %1539 = vrot.lane.b32.xlu0 %v1519, 40
      %v1540 = vpop.permute.xlu0 %1539
      %1543 = vrot.lane.b32.xlu0 %v1520, 48
      %v1544 = vpop.permute.xlu0 %1543
      %1547 = vrot.lane.b32.xlu0 %v1521, 56
      %v1548 = vpop.permute.xlu0 %1547
      %v1550 = vsel %vm708, %v1514, %v1524
      %v1551 = vsel %vm710, %v1550, %v1528
      %v1552 = vsel %vm712, %v1551, %v1532
      %v1553 = vsel %vm714, %v1552, %v1536
      %v1554 = vsel %vm716, %v1553, %v1540
      %v1555 = vsel %vm718, %v1554, %v1544
      %v1556 = vsel %vm720, %v1555, %v1548
      %s1557 = scalar_lea.vmem %s3, 24
      %v1558 = vld [vmem:[%s1557] sm:$0xff]
      %v1560 = vsel %vm708, %v1558, 0
      %1562 = vmatprep.subr.mxu0 0.0
      %1563 = vmatpush1.msra.mxu0 %v1556
      %1564 = vmatprep.subr.mxu0 0.0
      %1565 = vmatpush1.msra.mxu0 0.0
      %1566 = vmatprep.subr.mxu0 0.0
      %1567 = vmatpush1.msra.mxu0 0.0
      %1568 = vmatprep.subr.mxu0 0.0
      %1569 = vmatpush1.msra.mxu0 0.0
      %1570 = vmatprep.subr.mxu0 0.0
      %1571 = vmatpush1.msra.mxu0 0.0
      %1572 = vmatprep.subr.mxu0 0.0
      %1573 = vmatpush1.msra.mxu0 0.0
      %1574 = vmatprep.subr.mxu0 0.0
      %1575 = vmatpush1.msra.mxu0 0.0
      %1576 = vmatprep.subr.mxu0 0.0
      %1577 = vmatpush1.msra.mxu0 0.0
      %1578 = vmatprep.subr.mxu0 0.0
      %1579 = vmatpush1.msra.mxu0 0.0
      %1580 = vmatprep.subr.mxu0 0.0
      %1581 = vmatpush1.msra.mxu0 0.0
      %1582 = vmatprep.subr.mxu0 0.0
      %1583 = vmatpush1.msra.mxu0 0.0
      %1584 = vmatprep.subr.mxu0 0.0
      %1585 = vmatpush1.msra.mxu0 0.0
      %1586 = vmatprep.subr.mxu0 0.0
      %1587 = vmatpush1.msra.mxu0 0.0
      %1588 = vmatprep.subr.mxu0 0.0
      %1589 = vmatpush1.msra.mxu0 0.0
      %1590 = vmatprep.subr.mxu0 0.0
      %1591 = vmatpush1.msra.mxu0 0.0
      %1592 = vmatprep.subr.mxu0 0.0
      %1593 = vmatpush1.msra.mxu0 0.0
      %1594 = vmatprep.subr.mxu0 0.0
      %1595 = vmatpush1.msra.mxu0 0.0
      %1596 = vmatprep.subr.mxu0 0.0
      %1597 = vmatpush1.msra.mxu0 0.0
      %1598 = vmatprep.subr.mxu0 0.0
      %1599 = vmatpush1.msra.mxu0 0.0
      %1600 = vmatprep.subr.mxu0 0.0
      %1601 = vmatpush1.msra.mxu0 0.0
      %1602 = vmatprep.subr.mxu0 0.0
      %1603 = vmatpush1.msra.mxu0 0.0
      %1604 = vmatprep.subr.mxu0 0.0
      %1605 = vmatpush1.msra.mxu0 0.0
      %1606 = vmatprep.subr.mxu0 0.0
      %1607 = vmatpush1.msra.mxu0 0.0
      %1608 = vmatprep.subr.mxu0 0.0
      %1609 = vmatpush1.msra.mxu0 0.0
      %1610 = vmatprep.subr.mxu0 0.0
      %1611 = vmatpush1.msra.mxu0 0.0
      %1612 = vmatprep.subr.mxu0 0.0
      %1613 = vmatpush1.msra.mxu0 0.0
      %1614 = vmatprep.subr.mxu0 0.0
      %1615 = vmatpush1.msra.mxu0 0.0
      %1616 = vmatprep.subr.mxu0 0.0
      %1617 = vmatpush1.msra.mxu0 0.0
      %1618 = vmatprep.subr.mxu0 0.0
      %1619 = vmatpush1.msra.mxu0 0.0
      %1620 = vmatprep.subr.mxu0 0.0
      %1621 = vmatpush1.msra.mxu0 0.0
      %1622 = vmatprep.subr.mxu0 0.0
      %1623 = vmatpush1.msra.mxu0 0.0
      %1624 = vmatprep.subr.mxu0 0.0
      %1625 = vmatpush1.msra.mxu0 0.0
      %1626 = vmatprep.mubr.f32.mxu0 0.0
      %1627 = vmatmul.mubr.f32.gmra.mrb[0].mxu0 %v1560
      %v1628 = vpop.f32.mrb[0].mxu0
      %v1629 = vadd.f32 0.0, %v1628
      %v1630 = vpop.f32.mrb[0].mxu0
      %1631 = vdwg.mxu0
      %v1632 = vadd.f32 %v1344, %v1629
      %1633 = vrot.lane.b32.xlu0 %v1356, 127
      %v1634 = vpop.permute.xlu0 %1633
      %1635 = vrot.lane.b32.xlu0 %v1359, 127
      %v1636 = vpop.permute.xlu0 %1635
      %1637 = vrot.lane.b32.xlu0 %v1362, 127
      %v1638 = vpop.permute.xlu0 %1637
      %1639 = vrot.lane.b32.xlu0 %v1365, 127
      %v1640 = vpop.permute.xlu0 %1639
      %1641 = vrot.lane.b32.xlu0 %v1368, 127
      %v1642 = vpop.permute.xlu0 %1641
      %1643 = vrot.lane.b32.xlu0 %v1371, 127
      %v1644 = vpop.permute.xlu0 %1643
      %1645 = vrot.lane.b32.xlu0 %v1374, 127
      %v1646 = vpop.permute.xlu0 %1645
      %1647 = vrot.lane.b32.xlu0 %v1377, 127
      %v1648 = vpop.permute.xlu0 %1647
      %v1657 = vcombine.low %v1634, %v1638
      %v1658 = vcombine.high %v1634, %v1638
      %v1660 = vunpack.c.l.s4 1983009808
      %v1661 = vunpack.c.0.s8 %v1660
      %v1662 = vlaneseq
      %v1663 = vshrl.u32 %v1662, 7
      %v1664 = vsub.s32 %v1661, %v1663
      %v1665 = vrot.slane %v1657, %v1664
      %v1667 = vunpack.c.l.s4 1983009808
      %v1668 = vunpack.c.0.s8 %v1667
      %v1669 = vlaneseq
      %v1670 = vshrl.u32 %v1669, 7
      %v1671 = vsub.s32 %v1668, %v1670
      %v1672 = vrot.slane %v1658, %v1671
      %v1673 = vcombine.low %v1636, %v1640
      %v1674 = vcombine.high %v1636, %v1640
      %v1676 = vunpack.c.l.s4 1983009808
      %v1677 = vunpack.c.0.s8 %v1676
      %v1678 = vlaneseq
      %v1679 = vshrl.u32 %v1678, 7
      %v1680 = vsub.s32 %v1677, %v1679
      %v1681 = vrot.slane %v1673, %v1680
      %v1683 = vunpack.c.l.s4 1983009808
      %v1684 = vunpack.c.0.s8 %v1683
      %v1685 = vlaneseq
      %v1686 = vshrl.u32 %v1685, 7
      %v1687 = vsub.s32 %v1684, %v1686
      %v1688 = vrot.slane %v1674, %v1687
      %v1689 = vcombine.low %v1642, %v1646
      %v1690 = vcombine.high %v1642, %v1646
      %v1692 = vunpack.c.l.s4 1983009808
      %v1693 = vunpack.c.0.s8 %v1692
      %v1694 = vlaneseq
      %v1695 = vshrl.u32 %v1694, 7
      %v1696 = vsub.s32 %v1693, %v1695
      %v1697 = vrot.slane %v1689, %v1696
      %v1699 = vunpack.c.l.s4 1983009808
      %v1700 = vunpack.c.0.s8 %v1699
      %v1701 = vlaneseq
      %v1702 = vshrl.u32 %v1701, 7
      %v1703 = vsub.s32 %v1700, %v1702
      %v1704 = vrot.slane %v1690, %v1703
      %v1705 = vcombine.low %v1644, %v1648
      %v1706 = vcombine.high %v1644, %v1648
      %v1708 = vunpack.c.l.s4 1983009808
      %v1709 = vunpack.c.0.s8 %v1708
      %v1710 = vlaneseq
      %v1711 = vshrl.u32 %v1710, 7
      %v1712 = vsub.s32 %v1709, %v1711
      %v1713 = vrot.slane %v1705, %v1712
      %v1715 = vunpack.c.l.s4 1983009808
      %v1716 = vunpack.c.0.s8 %v1715
      %v1717 = vlaneseq
      %v1718 = vshrl.u32 %v1717, 7
      %v1719 = vsub.s32 %v1716, %v1718
      %v1720 = vrot.slane %v1706, %v1719
      %v1721 = vcombine.low %v1665, %v1681
      %v1722 = vcombine.high %v1665, %v1681
      %v1724 = vunpack.c.l.s4 1934713408
      %v1725 = vunpack.c.0.s8 %v1724
      %v1726 = vlaneseq
      %v1727 = vshrl.u32 %v1726, 7
      %v1728 = vsub.s32 %v1725, %v1727
      %v1729 = vrot.slane %v1721, %v1728
      %v1731 = vunpack.c.l.s4 1934713408
      %v1732 = vunpack.c.0.s8 %v1731
      %v1733 = vlaneseq
      %v1734 = vshrl.u32 %v1733, 7
      %v1735 = vsub.s32 %v1732, %v1734
      %v1736 = vrot.slane %v1722, %v1735
      %v1737 = vcombine.low %v1672, %v1688
      %v1738 = vcombine.high %v1672, %v1688
      %v1740 = vunpack.c.l.s4 1934713408
      %v1741 = vunpack.c.0.s8 %v1740
      %v1742 = vlaneseq
      %v1743 = vshrl.u32 %v1742, 7
      %v1744 = vsub.s32 %v1741, %v1743
      %v1745 = vrot.slane %v1737, %v1744
      %v1747 = vunpack.c.l.s4 1934713408
      %v1748 = vunpack.c.0.s8 %v1747
      %v1749 = vlaneseq
      %v1750 = vshrl.u32 %v1749, 7
      %v1751 = vsub.s32 %v1748, %v1750
      %v1752 = vrot.slane %v1738, %v1751
      %v1753 = vcombine.low %v1697, %v1713
      %v1754 = vcombine.high %v1697, %v1713
      %v1756 = vunpack.c.l.s4 1934713408
      %v1757 = vunpack.c.0.s8 %v1756
      %v1758 = vlaneseq
      %v1759 = vshrl.u32 %v1758, 7
      %v1760 = vsub.s32 %v1757, %v1759
      %v1761 = vrot.slane %v1753, %v1760
      %v1763 = vunpack.c.l.s4 1934713408
      %v1764 = vunpack.c.0.s8 %v1763
      %v1765 = vlaneseq
      %v1766 = vshrl.u32 %v1765, 7
      %v1767 = vsub.s32 %v1764, %v1766
      %v1768 = vrot.slane %v1754, %v1767
      %v1769 = vcombine.low %v1704, %v1720
      %v1770 = vcombine.high %v1704, %v1720
      %v1772 = vunpack.c.l.s4 1934713408
      %v1773 = vunpack.c.0.s8 %v1772
      %v1774 = vlaneseq
      %v1775 = vshrl.u32 %v1774, 7
      %v1776 = vsub.s32 %v1773, %v1775
      %v1777 = vrot.slane %v1769, %v1776
      %v1779 = vunpack.c.l.s4 1934713408
      %v1780 = vunpack.c.0.s8 %v1779
      %v1781 = vlaneseq
      %v1782 = vshrl.u32 %v1781, 7
      %v1783 = vsub.s32 %v1780, %v1782
      %v1784 = vrot.slane %v1770, %v1783
      %v1785 = vcombine.low %v1729, %v1761
      %v1786 = vcombine.high %v1729, %v1761
      %v1787 = vcombine.low %v1736, %v1768
      %v1788 = vcombine.high %v1736, %v1768
      %v1789 = vcombine.low %v1745, %v1777
      %v1790 = vcombine.high %v1745, %v1777
      %v1791 = vcombine.low %v1752, %v1784
      %v1792 = vcombine.high %v1752, %v1784
      %1794 = vrot.lane.b32.xlu0 %v1786, 8
      %v1795 = vpop.permute.xlu0 %1794
      %1798 = vrot.lane.b32.xlu0 %v1787, 16
      %v1799 = vpop.permute.xlu0 %1798
      %1802 = vrot.lane.b32.xlu0 %v1788, 24
      %v1803 = vpop.permute.xlu0 %1802
      %1806 = vrot.lane.b32.xlu0 %v1789, 32
      %v1807 = vpop.permute.xlu0 %1806
      %1810 = vrot.lane.b32.xlu0 %v1790, 40
      %v1811 = vpop.permute.xlu0 %1810
      %1814 = vrot.lane.b32.xlu0 %v1791, 48
      %v1815 = vpop.permute.xlu0 %1814
      %1818 = vrot.lane.b32.xlu0 %v1792, 56
      %v1819 = vpop.permute.xlu0 %1818
      %v1821 = vsel %vm708, %v1785, %v1795
      %v1822 = vsel %vm710, %v1821, %v1799
      %v1823 = vsel %vm712, %v1822, %v1803
      %v1824 = vsel %vm714, %v1823, %v1807
      %v1825 = vsel %vm716, %v1824, %v1811
      %v1826 = vsel %vm718, %v1825, %v1815
      %v1827 = vsel %vm720, %v1826, %v1819
      %s1828 = scalar_lea.vmem %s3, 32
      %v1829 = vld [vmem:[%s1828] sm:$0xff]
      %v1831 = vsel %vm708, %v1829, 0
      %1833 = vmatprep.subr.mxu0 0.0
      %1834 = vmatpush1.msra.mxu0 %v1827
      %1835 = vmatprep.subr.mxu0 0.0
      %1836 = vmatpush1.msra.mxu0 0.0
      %1837 = vmatprep.subr.mxu0 0.0
      %1838 = vmatpush1.msra.mxu0 0.0
      %1839 = vmatprep.subr.mxu0 0.0
      %1840 = vmatpush1.msra.mxu0 0.0
      %1841 = vmatprep.subr.mxu0 0.0
      %1842 = vmatpush1.msra.mxu0 0.0
      %1843 = vmatprep.subr.mxu0 0.0
      %1844 = vmatpush1.msra.mxu0 0.0
      %1845 = vmatprep.subr.mxu0 0.0
      %1846 = vmatpush1.msra.mxu0 0.0
      %1847 = vmatprep.subr.mxu0 0.0
      %1848 = vmatpush1.msra.mxu0 0.0
      %1849 = vmatprep.subr.mxu0 0.0
      %1850 = vmatpush1.msra.mxu0 0.0
      %1851 = vmatprep.subr.mxu0 0.0
      %1852 = vmatpush1.msra.mxu0 0.0
      %1853 = vmatprep.subr.mxu0 0.0
      %1854 = vmatpush1.msra.mxu0 0.0
      %1855 = vmatprep.subr.mxu0 0.0
      %1856 = vmatpush1.msra.mxu0 0.0
      %1857 = vmatprep.subr.mxu0 0.0
      %1858 = vmatpush1.msra.mxu0 0.0
      %1859 = vmatprep.subr.mxu0 0.0
      %1860 = vmatpush1.msra.mxu0 0.0
      %1861 = vmatprep.subr.mxu0 0.0
      %1862 = vmatpush1.msra.mxu0 0.0
      %1863 = vmatprep.subr.mxu0 0.0
      %1864 = vmatpush1.msra.mxu0 0.0
      %1865 = vmatprep.subr.mxu0 0.0
      %1866 = vmatpush1.msra.mxu0 0.0
      %1867 = vmatprep.subr.mxu0 0.0
      %1868 = vmatpush1.msra.mxu0 0.0
      %1869 = vmatprep.subr.mxu0 0.0
      %1870 = vmatpush1.msra.mxu0 0.0
      %1871 = vmatprep.subr.mxu0 0.0
      %1872 = vmatpush1.msra.mxu0 0.0
      %1873 = vmatprep.subr.mxu0 0.0
      %1874 = vmatpush1.msra.mxu0 0.0
      %1875 = vmatprep.subr.mxu0 0.0
      %1876 = vmatpush1.msra.mxu0 0.0
      %1877 = vmatprep.subr.mxu0 0.0
      %1878 = vmatpush1.msra.mxu0 0.0
      %1879 = vmatprep.subr.mxu0 0.0
      %1880 = vmatpush1.msra.mxu0 0.0
      %1881 = vmatprep.subr.mxu0 0.0
      %1882 = vmatpush1.msra.mxu0 0.0
      %1883 = vmatprep.subr.mxu0 0.0
      %1884 = vmatpush1.msra.mxu0 0.0
      %1885 = vmatprep.subr.mxu0 0.0
      %1886 = vmatpush1.msra.mxu0 0.0
      %1887 = vmatprep.subr.mxu0 0.0
      %1888 = vmatpush1.msra.mxu0 0.0
      %1889 = vmatprep.subr.mxu0 0.0
      %1890 = vmatpush1.msra.mxu0 0.0
      %1891 = vmatprep.subr.mxu0 0.0
      %1892 = vmatpush1.msra.mxu0 0.0
      %1893 = vmatprep.subr.mxu0 0.0
      %1894 = vmatpush1.msra.mxu0 0.0
      %1895 = vmatprep.subr.mxu0 0.0
      %1896 = vmatpush1.msra.mxu0 0.0
      %1897 = vmatprep.mubr.f32.mxu0 0.0
      %1898 = vmatmul.mubr.f32.gmra.mrb[0].mxu0 %v1831
      %v1899 = vpop.f32.mrb[0].mxu0
      %v1900 = vadd.f32 0.0, %v1899
      %v1901 = vpop.f32.mrb[0].mxu0
      %1902 = vdwg.mxu0
      %v1903 = vadd.f32 %v1632, %v1900
      %1904 = vrot.lane.b32.xlu0 %v1356, 126
      %v1905 = vpop.permute.xlu0 %1904
      %1906 = vrot.lane.b32.xlu0 %v1359, 126
      %v1907 = vpop.permute.xlu0 %1906
      %1908 = vrot.lane.b32.xlu0 %v1362, 126
      %v1909 = vpop.permute.xlu0 %1908
      %1910 = vrot.lane.b32.xlu0 %v1365, 126
      %v1911 = vpop.permute.xlu0 %1910
      %1912 = vrot.lane.b32.xlu0 %v1368, 126
      %v1913 = vpop.permute.xlu0 %1912
      %1914 = vrot.lane.b32.xlu0 %v1371, 126
      %v1915 = vpop.permute.xlu0 %1914
      %1916 = vrot.lane.b32.xlu0 %v1374, 126
      %v1917 = vpop.permute.xlu0 %1916
      %1918 = vrot.lane.b32.xlu0 %v1377, 126
      %v1919 = vpop.permute.xlu0 %1918
      %v1928 = vcombine.low %v1905, %v1909
      %v1929 = vcombine.high %v1905, %v1909
      %v1931 = vunpack.c.l.s4 1983009808
      %v1932 = vunpack.c.0.s8 %v1931
      %v1933 = vlaneseq
      %v1934 = vshrl.u32 %v1933, 7
      %v1935 = vsub.s32 %v1932, %v1934
      %v1936 = vrot.slane %v1928, %v1935
      %v1938 = vunpack.c.l.s4 1983009808
      %v1939 = vunpack.c.0.s8 %v1938
      %v1940 = vlaneseq
      %v1941 = vshrl.u32 %v1940, 7
      %v1942 = vsub.s32 %v1939, %v1941
      %v1943 = vrot.slane %v1929, %v1942
      %v1944 = vcombine.low %v1907, %v1911
      %v1945 = vcombine.high %v1907, %v1911
      %v1947 = vunpack.c.l.s4 1983009808
      %v1948 = vunpack.c.0.s8 %v1947
      %v1949 = vlaneseq
      %v1950 = vshrl.u32 %v1949, 7
      %v1951 = vsub.s32 %v1948, %v1950
      %v1952 = vrot.slane %v1944, %v1951
      %v1954 = vunpack.c.l.s4 1983009808
      %v1955 = vunpack.c.0.s8 %v1954
      %v1956 = vlaneseq
      %v1957 = vshrl.u32 %v1956, 7
      %v1958 = vsub.s32 %v1955, %v1957
      %v1959 = vrot.slane %v1945, %v1958
      %v1960 = vcombine.low %v1913, %v1917
      %v1961 = vcombine.high %v1913, %v1917
      %v1963 = vunpack.c.l.s4 1983009808
      %v1964 = vunpack.c.0.s8 %v1963
      %v1965 = vlaneseq
      %v1966 = vshrl.u32 %v1965, 7
      %v1967 = vsub.s32 %v1964, %v1966
      %v1968 = vrot.slane %v1960, %v1967
      %v1970 = vunpack.c.l.s4 1983009808
      %v1971 = vunpack.c.0.s8 %v1970
      %v1972 = vlaneseq
      %v1973 = vshrl.u32 %v1972, 7
      %v1974 = vsub.s32 %v1971, %v1973
      %v1975 = vrot.slane %v1961, %v1974
      %v1976 = vcombine.low %v1915, %v1919
      %v1977 = vcombine.high %v1915, %v1919
      %v1979 = vunpack.c.l.s4 1983009808
      %v1980 = vunpack.c.0.s8 %v1979
      %v1981 = vlaneseq
      %v1982 = vshrl.u32 %v1981, 7
      %v1983 = vsub.s32 %v1980, %v1982
      %v1984 = vrot.slane %v1976, %v1983
      %v1986 = vunpack.c.l.s4 1983009808
      %v1987 = vunpack.c.0.s8 %v1986
      %v1988 = vlaneseq
      %v1989 = vshrl.u32 %v1988, 7
      %v1990 = vsub.s32 %v1987, %v1989
      %v1991 = vrot.slane %v1977, %v1990
      %v1992 = vcombine.low %v1936, %v1952
      %v1993 = vcombine.high %v1936, %v1952
      %v1995 = vunpack.c.l.s4 1934713408
      %v1996 = vunpack.c.0.s8 %v1995
      %v1997 = vlaneseq
      %v1998 = vshrl.u32 %v1997, 7
      %v1999 = vsub.s32 %v1996, %v1998
      %v2000 = vrot.slane %v1992, %v1999
      %v2002 = vunpack.c.l.s4 1934713408
      %v2003 = vunpack.c.0.s8 %v2002
      %v2004 = vlaneseq
      %v2005 = vshrl.u32 %v2004, 7
      %v2006 = vsub.s32 %v2003, %v2005
      %v2007 = vrot.slane %v1993, %v2006
      %v2008 = vcombine.low %v1943, %v1959
      %v2009 = vcombine.high %v1943, %v1959
      %v2011 = vunpack.c.l.s4 1934713408
      %v2012 = vunpack.c.0.s8 %v2011
      %v2013 = vlaneseq
      %v2014 = vshrl.u32 %v2013, 7
      %v2015 = vsub.s32 %v2012, %v2014
      %v2016 = vrot.slane %v2008, %v2015
      %v2018 = vunpack.c.l.s4 1934713408
      %v2019 = vunpack.c.0.s8 %v2018
      %v2020 = vlaneseq
      %v2021 = vshrl.u32 %v2020, 7
      %v2022 = vsub.s32 %v2019, %v2021
      %v2023 = vrot.slane %v2009, %v2022
      %v2024 = vcombine.low %v1968, %v1984
      %v2025 = vcombine.high %v1968, %v1984
      %v2027 = vunpack.c.l.s4 1934713408
      %v2028 = vunpack.c.0.s8 %v2027
      %v2029 = vlaneseq
      %v2030 = vshrl.u32 %v2029, 7
      %v2031 = vsub.s32 %v2028, %v2030
      %v2032 = vrot.slane %v2024, %v2031
      %v2034 = vunpack.c.l.s4 1934713408
      %v2035 = vunpack.c.0.s8 %v2034
      %v2036 = vlaneseq
      %v2037 = vshrl.u32 %v2036, 7
      %v2038 = vsub.s32 %v2035, %v2037
      %v2039 = vrot.slane %v2025, %v2038
      %v2040 = vcombine.low %v1975, %v1991
      %v2041 = vcombine.high %v1975, %v1991
      %v2043 = vunpack.c.l.s4 1934713408
      %v2044 = vunpack.c.0.s8 %v2043
      %v2045 = vlaneseq
      %v2046 = vshrl.u32 %v2045, 7
      %v2047 = vsub.s32 %v2044, %v2046
      %v2048 = vrot.slane %v2040, %v2047
      %v2050 = vunpack.c.l.s4 1934713408
      %v2051 = vunpack.c.0.s8 %v2050
      %v2052 = vlaneseq
      %v2053 = vshrl.u32 %v2052, 7
      %v2054 = vsub.s32 %v2051, %v2053
      %v2055 = vrot.slane %v2041, %v2054
      %v2056 = vcombine.low %v2000, %v2032
      %v2057 = vcombine.high %v2000, %v2032
      %v2058 = vcombine.low %v2007, %v2039
      %v2059 = vcombine.high %v2007, %v2039
      %v2060 = vcombine.low %v2016, %v2048
      %v2061 = vcombine.high %v2016, %v2048
      %v2062 = vcombine.low %v2023, %v2055
      %v2063 = vcombine.high %v2023, %v2055
      %2065 = vrot.lane.b32.xlu0 %v2057, 8
      %v2066 = vpop.permute.xlu0 %2065
      %2069 = vrot.lane.b32.xlu0 %v2058, 16
      %v2070 = vpop.permute.xlu0 %2069
      %2073 = vrot.lane.b32.xlu0 %v2059, 24
      %v2074 = vpop.permute.xlu0 %2073
      %2077 = vrot.lane.b32.xlu0 %v2060, 32
      %v2078 = vpop.permute.xlu0 %2077
      %2081 = vrot.lane.b32.xlu0 %v2061, 40
      %v2082 = vpop.permute.xlu0 %2081
      %2085 = vrot.lane.b32.xlu0 %v2062, 48
      %v2086 = vpop.permute.xlu0 %2085
      %2089 = vrot.lane.b32.xlu0 %v2063, 56
      %v2090 = vpop.permute.xlu0 %2089
      %v2092 = vsel %vm708, %v2056, %v2066
      %v2093 = vsel %vm710, %v2092, %v2070
      %v2094 = vsel %vm712, %v2093, %v2074
      %v2095 = vsel %vm714, %v2094, %v2078
      %v2096 = vsel %vm716, %v2095, %v2082
      %v2097 = vsel %vm718, %v2096, %v2086
      %v2098 = vsel %vm720, %v2097, %v2090
      %s2099 = scalar_lea.vmem %s3, 40
      %v2100 = vld [vmem:[%s2099] sm:$0xff]
      %v2102 = vsel %vm708, %v2100, 0
      %2104 = vmatprep.subr.mxu0 0.0
      %2105 = vmatpush1.msra.mxu0 %v2098
      %2106 = vmatprep.subr.mxu0 0.0
      %2107 = vmatpush1.msra.mxu0 0.0
      %2108 = vmatprep.subr.mxu0 0.0
      %2109 = vmatpush1.msra.mxu0 0.0
      %2110 = vmatprep.subr.mxu0 0.0
      %2111 = vmatpush1.msra.mxu0 0.0
      %2112 = vmatprep.subr.mxu0 0.0
      %2113 = vmatpush1.msra.mxu0 0.0
      %2114 = vmatprep.subr.mxu0 0.0
      %2115 = vmatpush1.msra.mxu0 0.0
      %2116 = vmatprep.subr.mxu0 0.0
      %2117 = vmatpush1.msra.mxu0 0.0
      %2118 = vmatprep.subr.mxu0 0.0
      %2119 = vmatpush1.msra.mxu0 0.0
      %2120 = vmatprep.subr.mxu0 0.0
      %2121 = vmatpush1.msra.mxu0 0.0
      %2122 = vmatprep.subr.mxu0 0.0
      %2123 = vmatpush1.msra.mxu0 0.0
      %2124 = vmatprep.subr.mxu0 0.0
      %2125 = vmatpush1.msra.mxu0 0.0
      %2126 = vmatprep.subr.mxu0 0.0
      %2127 = vmatpush1.msra.mxu0 0.0
      %2128 = vmatprep.subr.mxu0 0.0
      %2129 = vmatpush1.msra.mxu0 0.0
      %2130 = vmatprep.subr.mxu0 0.0
      %2131 = vmatpush1.msra.mxu0 0.0
      %2132 = vmatprep.subr.mxu0 0.0
      %2133 = vmatpush1.msra.mxu0 0.0
      %2134 = vmatprep.subr.mxu0 0.0
      %2135 = vmatpush1.msra.mxu0 0.0
      %2136 = vmatprep.subr.mxu0 0.0
      %2137 = vmatpush1.msra.mxu0 0.0
      %2138 = vmatprep.subr.mxu0 0.0
      %2139 = vmatpush1.msra.mxu0 0.0
      %2140 = vmatprep.subr.mxu0 0.0
      %2141 = vmatpush1.msra.mxu0 0.0
      %2142 = vmatprep.subr.mxu0 0.0
      %2143 = vmatpush1.msra.mxu0 0.0
      %2144 = vmatprep.subr.mxu0 0.0
      %2145 = vmatpush1.msra.mxu0 0.0
      %2146 = vmatprep.subr.mxu0 0.0
      %2147 = vmatpush1.msra.mxu0 0.0
      %2148 = vmatprep.subr.mxu0 0.0
      %2149 = vmatpush1.msra.mxu0 0.0
      %2150 = vmatprep.subr.mxu0 0.0
      %2151 = vmatpush1.msra.mxu0 0.0
      %2152 = vmatprep.subr.mxu0 0.0
      %2153 = vmatpush1.msra.mxu0 0.0
      %2154 = vmatprep.subr.mxu0 0.0
      %2155 = vmatpush1.msra.mxu0 0.0
      %2156 = vmatprep.subr.mxu0 0.0
      %2157 = vmatpush1.msra.mxu0 0.0
      %2158 = vmatprep.subr.mxu0 0.0
      %2159 = vmatpush1.msra.mxu0 0.0
      %2160 = vmatprep.subr.mxu0 0.0
      %2161 = vmatpush1.msra.mxu0 0.0
      %2162 = vmatprep.subr.mxu0 0.0
      %2163 = vmatpush1.msra.mxu0 0.0
      %2164 = vmatprep.subr.mxu0 0.0
      %2165 = vmatpush1.msra.mxu0 0.0
      %2166 = vmatprep.subr.mxu0 0.0
      %2167 = vmatpush1.msra.mxu0 0.0
      %2168 = vmatprep.mubr.f32.mxu0 0.0
      %2169 = vmatmul.mubr.f32.gmra.mrb[0].mxu0 %v2102
      %v2170 = vpop.f32.mrb[0].mxu0
      %v2171 = vadd.f32 0.0, %v2170
      %v2172 = vpop.f32.mrb[0].mxu0
      %2173 = vdwg.mxu0
      %v2174 = vadd.f32 %v1903, %v2171
      %vm2175 = vcmask 1045504
      %v2176 = vrot.slane %v528, 2
      %v2177 = vrot.slane %v529, 2
      %v2178 = vsel %vm2175, %v2176, %v2177
      %v2179 = vrot.slane %v530, 2
      %v2180 = vrot.slane %v531, 2
      %v2181 = vsel %vm2175, %v2179, %v2180
      %v2182 = vrot.slane %v532, 2
      %v2183 = vrot.slane %v533, 2
      %v2184 = vsel %vm2175, %v2182, %v2183
      %v2185 = vrot.slane %v534, 2
      %v2186 = vrot.slane %v535, 2
      %v2187 = vsel %vm2175, %v2185, %v2186
      %v2188 = vrot.slane %v536, 2
      %v2189 = vrot.slane %v537, 2
      %v2190 = vsel %vm2175, %v2188, %v2189
      %v2191 = vrot.slane %v538, 2
      %v2192 = vrot.slane %v539, 2
      %v2193 = vsel %vm2175, %v2191, %v2192
      %v2194 = vrot.slane %v540, 2
      %v2195 = vrot.slane %v541, 2
      %v2196 = vsel %vm2175, %v2194, %v2195
      %v2197 = vrot.slane %v542, 2
      %v2198 = vrot.slane %v543, 2
      %v2199 = vsel %vm2175, %v2197, %v2198
      %v2208 = vcombine.low %v2178, %v2184
      %v2209 = vcombine.high %v2178, %v2184
      %v2211 = vunpack.c.l.s4 1983009808
      %v2212 = vunpack.c.0.s8 %v2211
      %v2213 = vlaneseq
      %v2214 = vshrl.u32 %v2213, 7
      %v2215 = vsub.s32 %v2212, %v2214
      %v2216 = vrot.slane %v2208, %v2215
      %v2218 = vunpack.c.l.s4 1983009808
      %v2219 = vunpack.c.0.s8 %v2218
      %v2220 = vlaneseq
      %v2221 = vshrl.u32 %v2220, 7
      %v2222 = vsub.s32 %v2219, %v2221
      %v2223 = vrot.slane %v2209, %v2222
      %v2224 = vcombine.low %v2181, %v2187
      %v2225 = vcombine.high %v2181, %v2187
      %v2227 = vunpack.c.l.s4 1983009808
      %v2228 = vunpack.c.0.s8 %v2227
      %v2229 = vlaneseq
      %v2230 = vshrl.u32 %v2229, 7
      %v2231 = vsub.s32 %v2228, %v2230
      %v2232 = vrot.slane %v2224, %v2231
      %v2234 = vunpack.c.l.s4 1983009808
      %v2235 = vunpack.c.0.s8 %v2234
      %v2236 = vlaneseq
      %v2237 = vshrl.u32 %v2236, 7
      %v2238 = vsub.s32 %v2235, %v2237
      %v2239 = vrot.slane %v2225, %v2238
      %v2240 = vcombine.low %v2190, %v2196
      %v2241 = vcombine.high %v2190, %v2196
      %v2243 = vunpack.c.l.s4 1983009808
      %v2244 = vunpack.c.0.s8 %v2243
      %v2245 = vlaneseq
      %v2246 = vshrl.u32 %v2245, 7
      %v2247 = vsub.s32 %v2244, %v2246
      %v2248 = vrot.slane %v2240, %v2247
      %v2250 = vunpack.c.l.s4 1983009808
      %v2251 = vunpack.c.0.s8 %v2250
      %v2252 = vlaneseq
      %v2253 = vshrl.u32 %v2252, 7
      %v2254 = vsub.s32 %v2251, %v2253
      %v2255 = vrot.slane %v2241, %v2254
      %v2256 = vcombine.low %v2193, %v2199
      %v2257 = vcombine.high %v2193, %v2199
      %v2259 = vunpack.c.l.s4 1983009808
      %v2260 = vunpack.c.0.s8 %v2259
      %v2261 = vlaneseq
      %v2262 = vshrl.u32 %v2261, 7
      %v2263 = vsub.s32 %v2260, %v2262
      %v2264 = vrot.slane %v2256, %v2263
      %v2266 = vunpack.c.l.s4 1983009808
      %v2267 = vunpack.c.0.s8 %v2266
      %v2268 = vlaneseq
      %v2269 = vshrl.u32 %v2268, 7
      %v2270 = vsub.s32 %v2267, %v2269
      %v2271 = vrot.slane %v2257, %v2270
      %v2272 = vcombine.low %v2216, %v2232
      %v2273 = vcombine.high %v2216, %v2232
      %v2275 = vunpack.c.l.s4 1934713408
      %v2276 = vunpack.c.0.s8 %v2275
      %v2277 = vlaneseq
      %v2278 = vshrl.u32 %v2277, 7
      %v2279 = vsub.s32 %v2276, %v2278
      %v2280 = vrot.slane %v2272, %v2279
      %v2282 = vunpack.c.l.s4 1934713408
      %v2283 = vunpack.c.0.s8 %v2282
      %v2284 = vlaneseq
      %v2285 = vshrl.u32 %v2284, 7
      %v2286 = vsub.s32 %v2283, %v2285
      %v2287 = vrot.slane %v2273, %v2286
      %v2288 = vcombine.low %v2223, %v2239
      %v2289 = vcombine.high %v2223, %v2239
      %v2291 = vunpack.c.l.s4 1934713408
      %v2292 = vunpack.c.0.s8 %v2291
      %v2293 = vlaneseq
      %v2294 = vshrl.u32 %v2293, 7
      %v2295 = vsub.s32 %v2292, %v2294
      %v2296 = vrot.slane %v2288, %v2295
      %v2298 = vunpack.c.l.s4 1934713408
      %v2299 = vunpack.c.0.s8 %v2298
      %v2300 = vlaneseq
      %v2301 = vshrl.u32 %v2300, 7
      %v2302 = vsub.s32 %v2299, %v2301
      %v2303 = vrot.slane %v2289, %v2302
      %v2304 = vcombine.low %v2248, %v2264
      %v2305 = vcombine.high %v2248, %v2264
      %v2307 = vunpack.c.l.s4 1934713408
      %v2308 = vunpack.c.0.s8 %v2307
      %v2309 = vlaneseq
      %v2310 = vshrl.u32 %v2309, 7
      %v2311 = vsub.s32 %v2308, %v2310
      %v2312 = vrot.slane %v2304, %v2311
      %v2314 = vunpack.c.l.s4 1934713408
      %v2315 = vunpack.c.0.s8 %v2314
      %v2316 = vlaneseq
      %v2317 = vshrl.u32 %v2316, 7
      %v2318 = vsub.s32 %v2315, %v2317
      %v2319 = vrot.slane %v2305, %v2318
      %v2320 = vcombine.low %v2255, %v2271
      %v2321 = vcombine.high %v2255, %v2271
      %v2323 = vunpack.c.l.s4 1934713408
      %v2324 = vunpack.c.0.s8 %v2323
      %v2325 = vlaneseq
      %v2326 = vshrl.u32 %v2325, 7
      %v2327 = vsub.s32 %v2324, %v2326
      %v2328 = vrot.slane %v2320, %v2327
      %v2330 = vunpack.c.l.s4 1934713408
      %v2331 = vunpack.c.0.s8 %v2330
      %v2332 = vlaneseq
      %v2333 = vshrl.u32 %v2332, 7
      %v2334 = vsub.s32 %v2331, %v2333
      %v2335 = vrot.slane %v2321, %v2334
      %v2336 = vcombine.low %v2280, %v2312
      %v2337 = vcombine.high %v2280, %v2312
      %v2338 = vcombine.low %v2287, %v2319
      %v2339 = vcombine.high %v2287, %v2319
      %v2340 = vcombine.low %v2296, %v2328
      %v2341 = vcombine.high %v2296, %v2328
      %v2342 = vcombine.low %v2303, %v2335
      %v2343 = vcombine.high %v2303, %v2335
      %2345 = vrot.lane.b32.xlu0 %v2337, 8
      %v2346 = vpop.permute.xlu0 %2345
      %2349 = vrot.lane.b32.xlu0 %v2338, 16
      %v2350 = vpop.permute.xlu0 %2349
      %2353 = vrot.lane.b32.xlu0 %v2339, 24
      %v2354 = vpop.permute.xlu0 %2353
      %2357 = vrot.lane.b32.xlu0 %v2340, 32
      %v2358 = vpop.permute.xlu0 %2357
      %2361 = vrot.lane.b32.xlu0 %v2341, 40
      %v2362 = vpop.permute.xlu0 %2361
      %2365 = vrot.lane.b32.xlu0 %v2342, 48
      %v2366 = vpop.permute.xlu0 %2365
      %2369 = vrot.lane.b32.xlu0 %v2343, 56
      %v2370 = vpop.permute.xlu0 %2369
      %v2372 = vsel %vm708, %v2336, %v2346
      %v2373 = vsel %vm710, %v2372, %v2350
      %v2374 = vsel %vm712, %v2373, %v2354
      %v2375 = vsel %vm714, %v2374, %v2358
      %v2376 = vsel %vm716, %v2375, %v2362
      %v2377 = vsel %vm718, %v2376, %v2366
      %v2378 = vsel %vm720, %v2377, %v2370
      %s2379 = scalar_lea.vmem %s3, 48
      %v2380 = vld [vmem:[%s2379] sm:$0xff]
      %v2382 = vsel %vm708, %v2380, 0
      %2384 = vmatprep.subr.mxu0 0.0
      %2385 = vmatpush1.msra.mxu0 %v2378
      %2386 = vmatprep.subr.mxu0 0.0
      %2387 = vmatpush1.msra.mxu0 0.0
      %2388 = vmatprep.subr.mxu0 0.0
      %2389 = vmatpush1.msra.mxu0 0.0
      %2390 = vmatprep.subr.mxu0 0.0
      %2391 = vmatpush1.msra.mxu0 0.0
      %2392 = vmatprep.subr.mxu0 0.0
      %2393 = vmatpush1.msra.mxu0 0.0
      %2394 = vmatprep.subr.mxu0 0.0
      %2395 = vmatpush1.msra.mxu0 0.0
      %2396 = vmatprep.subr.mxu0 0.0
      %2397 = vmatpush1.msra.mxu0 0.0
      %2398 = vmatprep.subr.mxu0 0.0
      %2399 = vmatpush1.msra.mxu0 0.0
      %2400 = vmatprep.subr.mxu0 0.0
      %2401 = vmatpush1.msra.mxu0 0.0
      %2402 = vmatprep.subr.mxu0 0.0
      %2403 = vmatpush1.msra.mxu0 0.0
      %2404 = vmatprep.subr.mxu0 0.0
      %2405 = vmatpush1.msra.mxu0 0.0
      %2406 = vmatprep.subr.mxu0 0.0
      %2407 = vmatpush1.msra.mxu0 0.0
      %2408 = vmatprep.subr.mxu0 0.0
      %2409 = vmatpush1.msra.mxu0 0.0
      %2410 = vmatprep.subr.mxu0 0.0
      %2411 = vmatpush1.msra.mxu0 0.0
      %2412 = vmatprep.subr.mxu0 0.0
      %2413 = vmatpush1.msra.mxu0 0.0
      %2414 = vmatprep.subr.mxu0 0.0
      %2415 = vmatpush1.msra.mxu0 0.0
      %2416 = vmatprep.subr.mxu0 0.0
      %2417 = vmatpush1.msra.mxu0 0.0
      %2418 = vmatprep.subr.mxu0 0.0
      %2419 = vmatpush1.msra.mxu0 0.0
      %2420 = vmatprep.subr.mxu0 0.0
      %2421 = vmatpush1.msra.mxu0 0.0
      %2422 = vmatprep.subr.mxu0 0.0
      %2423 = vmatpush1.msra.mxu0 0.0
      %2424 = vmatprep.subr.mxu0 0.0
      %2425 = vmatpush1.msra.mxu0 0.0
      %2426 = vmatprep.subr.mxu0 0.0
      %2427 = vmatpush1.msra.mxu0 0.0
      %2428 = vmatprep.subr.mxu0 0.0
      %2429 = vmatpush1.msra.mxu0 0.0
      %2430 = vmatprep.subr.mxu0 0.0
      %2431 = vmatpush1.msra.mxu0 0.0
      %2432 = vmatprep.subr.mxu0 0.0
      %2433 = vmatpush1.msra.mxu0 0.0
      %2434 = vmatprep.subr.mxu0 0.0
      %2435 = vmatpush1.msra.mxu0 0.0
      %2436 = vmatprep.subr.mxu0 0.0
      %2437 = vmatpush1.msra.mxu0 0.0
      %2438 = vmatprep.subr.mxu0 0.0
      %2439 = vmatpush1.msra.mxu0 0.0
      %2440 = vmatprep.subr.mxu0 0.0
      %2441 = vmatpush1.msra.mxu0 0.0
      %2442 = vmatprep.subr.mxu0 0.0
      %2443 = vmatpush1.msra.mxu0 0.0
      %2444 = vmatprep.subr.mxu0 0.0
      %2445 = vmatpush1.msra.mxu0 0.0
      %2446 = vmatprep.subr.mxu0 0.0
      %2447 = vmatpush1.msra.mxu0 0.0
      %2448 = vmatprep.mubr.f32.mxu0 0.0
      %2449 = vmatmul.mubr.f32.gmra.mrb[0].mxu0 %v2382
      %v2450 = vpop.f32.mrb[0].mxu0
      %v2451 = vadd.f32 0.0, %v2450
      %v2452 = vpop.f32.mrb[0].mxu0
      %2453 = vdwg.mxu0
      %v2454 = vadd.f32 %v2174, %v2451
      %2455 = vrot.lane.b32.xlu0 %v2178, 127
      %v2456 = vpop.permute.xlu0 %2455
      %2457 = vrot.lane.b32.xlu0 %v2181, 127
      %v2458 = vpop.permute.xlu0 %2457
      %2459 = vrot.lane.b32.xlu0 %v2184, 127
      %v2460 = vpop.permute.xlu0 %2459
      %2461 = vrot.lane.b32.xlu0 %v2187, 127
      %v2462 = vpop.permute.xlu0 %2461
      %2463 = vrot.lane.b32.xlu0 %v2190, 127
      %v2464 = vpop.permute.xlu0 %2463
      %2465 = vrot.lane.b32.xlu0 %v2193, 127
      %v2466 = vpop.permute.xlu0 %2465
      %2467 = vrot.lane.b32.xlu0 %v2196, 127
      %v2468 = vpop.permute.xlu0 %2467
      %2469 = vrot.lane.b32.xlu0 %v2199, 127
      %v2470 = vpop.permute.xlu0 %2469
      %v2479 = vcombine.low %v2456, %v2460
      %v2480 = vcombine.high %v2456, %v2460
      %v2482 = vunpack.c.l.s4 1983009808
      %v2483 = vunpack.c.0.s8 %v2482
      %v2484 = vlaneseq
      %v2485 = vshrl.u32 %v2484, 7
      %v2486 = vsub.s32 %v2483, %v2485
      %v2487 = vrot.slane %v2479, %v2486
      %v2489 = vunpack.c.l.s4 1983009808
      %v2490 = vunpack.c.0.s8 %v2489
      %v2491 = vlaneseq
      %v2492 = vshrl.u32 %v2491, 7
      %v2493 = vsub.s32 %v2490, %v2492
      %v2494 = vrot.slane %v2480, %v2493
      %v2495 = vcombine.low %v2458, %v2462
      %v2496 = vcombine.high %v2458, %v2462
      %v2498 = vunpack.c.l.s4 1983009808
      %v2499 = vunpack.c.0.s8 %v2498
      %v2500 = vlaneseq
      %v2501 = vshrl.u32 %v2500, 7
      %v2502 = vsub.s32 %v2499, %v2501
      %v2503 = vrot.slane %v2495, %v2502
      %v2505 = vunpack.c.l.s4 1983009808
      %v2506 = vunpack.c.0.s8 %v2505
      %v2507 = vlaneseq
      %v2508 = vshrl.u32 %v2507, 7
      %v2509 = vsub.s32 %v2506, %v2508
      %v2510 = vrot.slane %v2496, %v2509
      %v2511 = vcombine.low %v2464, %v2468
      %v2512 = vcombine.high %v2464, %v2468
      %v2514 = vunpack.c.l.s4 1983009808
      %v2515 = vunpack.c.0.s8 %v2514
      %v2516 = vlaneseq
      %v2517 = vshrl.u32 %v2516, 7
      %v2518 = vsub.s32 %v2515, %v2517
      %v2519 = vrot.slane %v2511, %v2518
      %v2521 = vunpack.c.l.s4 1983009808
      %v2522 = vunpack.c.0.s8 %v2521
      %v2523 = vlaneseq
      %v2524 = vshrl.u32 %v2523, 7
      %v2525 = vsub.s32 %v2522, %v2524
      %v2526 = vrot.slane %v2512, %v2525
      %v2527 = vcombine.low %v2466, %v2470
      %v2528 = vcombine.high %v2466, %v2470
      %v2530 = vunpack.c.l.s4 1983009808
      %v2531 = vunpack.c.0.s8 %v2530
      %v2532 = vlaneseq
      %v2533 = vshrl.u32 %v2532, 7
      %v2534 = vsub.s32 %v2531, %v2533
      %v2535 = vrot.slane %v2527, %v2534
      %v2537 = vunpack.c.l.s4 1983009808
      %v2538 = vunpack.c.0.s8 %v2537
      %v2539 = vlaneseq
      %v2540 = vshrl.u32 %v2539, 7
      %v2541 = vsub.s32 %v2538, %v2540
      %v2542 = vrot.slane %v2528, %v2541
      %v2543 = vcombine.low %v2487, %v2503
      %v2544 = vcombine.high %v2487, %v2503
      %v2546 = vunpack.c.l.s4 1934713408
      %v2547 = vunpack.c.0.s8 %v2546
      %v2548 = vlaneseq
      %v2549 = vshrl.u32 %v2548, 7
      %v2550 = vsub.s32 %v2547, %v2549
      %v2551 = vrot.slane %v2543, %v2550
      %v2553 = vunpack.c.l.s4 1934713408
      %v2554 = vunpack.c.0.s8 %v2553
      %v2555 = vlaneseq
      %v2556 = vshrl.u32 %v2555, 7
      %v2557 = vsub.s32 %v2554, %v2556
      %v2558 = vrot.slane %v2544, %v2557
      %v2559 = vcombine.low %v2494, %v2510
      %v2560 = vcombine.high %v2494, %v2510
      %v2562 = vunpack.c.l.s4 1934713408
      %v2563 = vunpack.c.0.s8 %v2562
      %v2564 = vlaneseq
      %v2565 = vshrl.u32 %v2564, 7
      %v2566 = vsub.s32 %v2563, %v2565
      %v2567 = vrot.slane %v2559, %v2566
      %v2569 = vunpack.c.l.s4 1934713408
      %v2570 = vunpack.c.0.s8 %v2569
      %v2571 = vlaneseq
      %v2572 = vshrl.u32 %v2571, 7
      %v2573 = vsub.s32 %v2570, %v2572
      %v2574 = vrot.slane %v2560, %v2573
      %v2575 = vcombine.low %v2519, %v2535
      %v2576 = vcombine.high %v2519, %v2535
      %v2578 = vunpack.c.l.s4 1934713408
      %v2579 = vunpack.c.0.s8 %v2578
      %v2580 = vlaneseq
      %v2581 = vshrl.u32 %v2580, 7
      %v2582 = vsub.s32 %v2579, %v2581
      %v2583 = vrot.slane %v2575, %v2582
      %v2585 = vunpack.c.l.s4 1934713408
      %v2586 = vunpack.c.0.s8 %v2585
      %v2587 = vlaneseq
      %v2588 = vshrl.u32 %v2587, 7
      %v2589 = vsub.s32 %v2586, %v2588
      %v2590 = vrot.slane %v2576, %v2589
      %v2591 = vcombine.low %v2526, %v2542
      %v2592 = vcombine.high %v2526, %v2542
      %v2594 = vunpack.c.l.s4 1934713408
      %v2595 = vunpack.c.0.s8 %v2594
      %v2596 = vlaneseq
      %v2597 = vshrl.u32 %v2596, 7
      %v2598 = vsub.s32 %v2595, %v2597
      %v2599 = vrot.slane %v2591, %v2598
      %v2601 = vunpack.c.l.s4 1934713408
      %v2602 = vunpack.c.0.s8 %v2601
      %v2603 = vlaneseq
      %v2604 = vshrl.u32 %v2603, 7
      %v2605 = vsub.s32 %v2602, %v2604
      %v2606 = vrot.slane %v2592, %v2605
      %v2607 = vcombine.low %v2551, %v2583
      %v2608 = vcombine.high %v2551, %v2583
      %v2609 = vcombine.low %v2558, %v2590
      %v2610 = vcombine.high %v2558, %v2590
      %v2611 = vcombine.low %v2567, %v2599
      %v2612 = vcombine.high %v2567, %v2599
      %v2613 = vcombine.low %v2574, %v2606
      %v2614 = vcombine.high %v2574, %v2606
      %2616 = vrot.lane.b32.xlu0 %v2608, 8
      %v2617 = vpop.permute.xlu0 %2616
      %2620 = vrot.lane.b32.xlu0 %v2609, 16
      %v2621 = vpop.permute.xlu0 %2620
      %2624 = vrot.lane.b32.xlu0 %v2610, 24
      %v2625 = vpop.permute.xlu0 %2624
      %2628 = vrot.lane.b32.xlu0 %v2611, 32
      %v2629 = vpop.permute.xlu0 %2628
      %2632 = vrot.lane.b32.xlu0 %v2612, 40
      %v2633 = vpop.permute.xlu0 %2632
      %2636 = vrot.lane.b32.xlu0 %v2613, 48
      %v2637 = vpop.permute.xlu0 %2636
      %2640 = vrot.lane.b32.xlu0 %v2614, 56
      %v2641 = vpop.permute.xlu0 %2640
      %v2643 = vsel %vm708, %v2607, %v2617
      %v2644 = vsel %vm710, %v2643, %v2621
      %v2645 = vsel %vm712, %v2644, %v2625
      %v2646 = vsel %vm714, %v2645, %v2629
      %v2647 = vsel %vm716, %v2646, %v2633
      %v2648 = vsel %vm718, %v2647, %v2637
      %v2649 = vsel %vm720, %v2648, %v2641
      %s2650 = scalar_lea.vmem %s3, 56
      %v2651 = vld [vmem:[%s2650] sm:$0xff]
      %v2653 = vsel %vm708, %v2651, 0
      %2655 = vmatprep.subr.mxu0 0.0
      %2656 = vmatpush1.msra.mxu0 %v2649
      %2657 = vmatprep.subr.mxu0 0.0
      %2658 = vmatpush1.msra.mxu0 0.0
      %2659 = vmatprep.subr.mxu0 0.0
      %2660 = vmatpush1.msra.mxu0 0.0
      %2661 = vmatprep.subr.mxu0 0.0
      %2662 = vmatpush1.msra.mxu0 0.0
      %2663 = vmatprep.subr.mxu0 0.0
      %2664 = vmatpush1.msra.mxu0 0.0
      %2665 = vmatprep.subr.mxu0 0.0
      %2666 = vmatpush1.msra.mxu0 0.0
      %2667 = vmatprep.subr.mxu0 0.0
      %2668 = vmatpush1.msra.mxu0 0.0
      %2669 = vmatprep.subr.mxu0 0.0
      %2670 = vmatpush1.msra.mxu0 0.0
      %2671 = vmatprep.subr.mxu0 0.0
      %2672 = vmatpush1.msra.mxu0 0.0
      %2673 = vmatprep.subr.mxu0 0.0
      %2674 = vmatpush1.msra.mxu0 0.0
      %2675 = vmatprep.subr.mxu0 0.0
      %2676 = vmatpush1.msra.mxu0 0.0
      %2677 = vmatprep.subr.mxu0 0.0
      %2678 = vmatpush1.msra.mxu0 0.0
      %2679 = vmatprep.subr.mxu0 0.0
      %2680 = vmatpush1.msra.mxu0 0.0
      %2681 = vmatprep.subr.mxu0 0.0
      %2682 = vmatpush1.msra.mxu0 0.0
      %2683 = vmatprep.subr.mxu0 0.0
      %2684 = vmatpush1.msra.mxu0 0.0
      %2685 = vmatprep.subr.mxu0 0.0
      %2686 = vmatpush1.msra.mxu0 0.0
      %2687 = vmatprep.subr.mxu0 0.0
      %2688 = vmatpush1.msra.mxu0 0.0
      %2689 = vmatprep.subr.mxu0 0.0
      %2690 = vmatpush1.msra.mxu0 0.0
      %2691 = vmatprep.subr.mxu0 0.0
      %2692 = vmatpush1.msra.mxu0 0.0
      %2693 = vmatprep.subr.mxu0 0.0
      %2694 = vmatpush1.msra.mxu0 0.0
      %2695 = vmatprep.subr.mxu0 0.0
      %2696 = vmatpush1.msra.mxu0 0.0
      %2697 = vmatprep.subr.mxu0 0.0
      %2698 = vmatpush1.msra.mxu0 0.0
      %2699 = vmatprep.subr.mxu0 0.0
      %2700 = vmatpush1.msra.mxu0 0.0
      %2701 = vmatprep.subr.mxu0 0.0
      %2702 = vmatpush1.msra.mxu0 0.0
      %2703 = vmatprep.subr.mxu0 0.0
      %2704 = vmatpush1.msra.mxu0 0.0
      %2705 = vmatprep.subr.mxu0 0.0
      %2706 = vmatpush1.msra.mxu0 0.0
      %2707 = vmatprep.subr.mxu0 0.0
      %2708 = vmatpush1.msra.mxu0 0.0
      %2709 = vmatprep.subr.mxu0 0.0
      %2710 = vmatpush1.msra.mxu0 0.0
      %2711 = vmatprep.subr.mxu0 0.0
      %2712 = vmatpush1.msra.mxu0 0.0
      %2713 = vmatprep.subr.mxu0 0.0
      %2714 = vmatpush1.msra.mxu0 0.0
      %2715 = vmatprep.subr.mxu0 0.0
      %2716 = vmatpush1.msra.mxu0 0.0
      %2717 = vmatprep.subr.mxu0 0.0
      %2718 = vmatpush1.msra.mxu0 0.0
      %2719 = vmatprep.mubr.f32.mxu0 0.0
      %2720 = vmatmul.mubr.f32.gmra.mrb[0].mxu0 %v2653
      %v2721 = vpop.f32.mrb[0].mxu0
      %v2722 = vadd.f32 0.0, %v2721
      %v2723 = vpop.f32.mrb[0].mxu0
      %2724 = vdwg.mxu0
      %v2725 = vadd.f32 %v2454, %v2722
      %2726 = vrot.lane.b32.xlu0 %v2178, 126
      %v2727 = vpop.permute.xlu0 %2726
      %2728 = vrot.lane.b32.xlu0 %v2181, 126
      %v2729 = vpop.permute.xlu0 %2728
      %2730 = vrot.lane.b32.xlu0 %v2184, 126
      %v2731 = vpop.permute.xlu0 %2730
      %2732 = vrot.lane.b32.xlu0 %v2187, 126
      %v2733 = vpop.permute.xlu0 %2732
      %2734 = vrot.lane.b32.xlu0 %v2190, 126
      %v2735 = vpop.permute.xlu0 %2734
      %2736 = vrot.lane.b32.xlu0 %v2193, 126
      %v2737 = vpop.permute.xlu0 %2736
      %2738 = vrot.lane.b32.xlu0 %v2196, 126
      %v2739 = vpop.permute.xlu0 %2738
      %2740 = vrot.lane.b32.xlu0 %v2199, 126
      %v2741 = vpop.permute.xlu0 %2740
      %v2750 = vcombine.low %v2727, %v2731
      %v2751 = vcombine.high %v2727, %v2731
      %v2753 = vunpack.c.l.s4 1983009808
      %v2754 = vunpack.c.0.s8 %v2753
      %v2755 = vlaneseq
      %v2756 = vshrl.u32 %v2755, 7
      %v2757 = vsub.s32 %v2754, %v2756
      %v2758 = vrot.slane %v2750, %v2757
      %v2760 = vunpack.c.l.s4 1983009808
      %v2761 = vunpack.c.0.s8 %v2760
      %v2762 = vlaneseq
      %v2763 = vshrl.u32 %v2762, 7
      %v2764 = vsub.s32 %v2761, %v2763
      %v2765 = vrot.slane %v2751, %v2764
      %v2766 = vcombine.low %v2729, %v2733
      %v2767 = vcombine.high %v2729, %v2733
      %v2769 = vunpack.c.l.s4 1983009808
      %v2770 = vunpack.c.0.s8 %v2769
      %v2771 = vlaneseq
      %v2772 = vshrl.u32 %v2771, 7
      %v2773 = vsub.s32 %v2770, %v2772
      %v2774 = vrot.slane %v2766, %v2773
      %v2776 = vunpack.c.l.s4 1983009808
      %v2777 = vunpack.c.0.s8 %v2776
      %v2778 = vlaneseq
      %v2779 = vshrl.u32 %v2778, 7
      %v2780 = vsub.s32 %v2777, %v2779
      %v2781 = vrot.slane %v2767, %v2780
      %v2782 = vcombine.low %v2735, %v2739
      %v2783 = vcombine.high %v2735, %v2739
      %v2785 = vunpack.c.l.s4 1983009808
      %v2786 = vunpack.c.0.s8 %v2785
      %v2787 = vlaneseq
      %v2788 = vshrl.u32 %v2787, 7
      %v2789 = vsub.s32 %v2786, %v2788
      %v2790 = vrot.slane %v2782, %v2789
      %v2792 = vunpack.c.l.s4 1983009808
      %v2793 = vunpack.c.0.s8 %v2792
      %v2794 = vlaneseq
      %v2795 = vshrl.u32 %v2794, 7
      %v2796 = vsub.s32 %v2793, %v2795
      %v2797 = vrot.slane %v2783, %v2796
      %v2798 = vcombine.low %v2737, %v2741
      %v2799 = vcombine.high %v2737, %v2741
      %v2801 = vunpack.c.l.s4 1983009808
      %v2802 = vunpack.c.0.s8 %v2801
      %v2803 = vlaneseq
      %v2804 = vshrl.u32 %v2803, 7
      %v2805 = vsub.s32 %v2802, %v2804
      %v2806 = vrot.slane %v2798, %v2805
      %v2808 = vunpack.c.l.s4 1983009808
      %v2809 = vunpack.c.0.s8 %v2808
      %v2810 = vlaneseq
      %v2811 = vshrl.u32 %v2810, 7
      %v2812 = vsub.s32 %v2809, %v2811
      %v2813 = vrot.slane %v2799, %v2812
      %v2814 = vcombine.low %v2758, %v2774
      %v2815 = vcombine.high %v2758, %v2774
      %v2817 = vunpack.c.l.s4 1934713408
      %v2818 = vunpack.c.0.s8 %v2817
      %v2819 = vlaneseq
      %v2820 = vshrl.u32 %v2819, 7
      %v2821 = vsub.s32 %v2818, %v2820
      %v2822 = vrot.slane %v2814, %v2821
      %v2824 = vunpack.c.l.s4 1934713408
      %v2825 = vunpack.c.0.s8 %v2824
      %v2826 = vlaneseq
      %v2827 = vshrl.u32 %v2826, 7
      %v2828 = vsub.s32 %v2825, %v2827
      %v2829 = vrot.slane %v2815, %v2828
      %v2830 = vcombine.low %v2765, %v2781
      %v2831 = vcombine.high %v2765, %v2781
      %v2833 = vunpack.c.l.s4 1934713408
      %v2834 = vunpack.c.0.s8 %v2833
      %v2835 = vlaneseq
      %v2836 = vshrl.u32 %v2835, 7
      %v2837 = vsub.s32 %v2834, %v2836
      %v2838 = vrot.slane %v2830, %v2837
      %v2840 = vunpack.c.l.s4 1934713408
      %v2841 = vunpack.c.0.s8 %v2840
      %v2842 = vlaneseq
      %v2843 = vshrl.u32 %v2842, 7
      %v2844 = vsub.s32 %v2841, %v2843
      %v2845 = vrot.slane %v2831, %v2844
      %v2846 = vcombine.low %v2790, %v2806
      %v2847 = vcombine.high %v2790, %v2806
      %v2849 = vunpack.c.l.s4 1934713408
      %v2850 = vunpack.c.0.s8 %v2849
      %v2851 = vlaneseq
      %v2852 = vshrl.u32 %v2851, 7
      %v2853 = vsub.s32 %v2850, %v2852
      %v2854 = vrot.slane %v2846, %v2853
      %v2856 = vunpack.c.l.s4 1934713408
      %v2857 = vunpack.c.0.s8 %v2856
      %v2858 = vlaneseq
      %v2859 = vshrl.u32 %v2858, 7
      %v2860 = vsub.s32 %v2857, %v2859
      %v2861 = vrot.slane %v2847, %v2860
      %v2862 = vcombine.low %v2797, %v2813
      %v2863 = vcombine.high %v2797, %v2813
      %v2865 = vunpack.c.l.s4 1934713408
      %v2866 = vunpack.c.0.s8 %v2865
      %v2867 = vlaneseq
      %v2868 = vshrl.u32 %v2867, 7
      %v2869 = vsub.s32 %v2866, %v2868
      %v2870 = vrot.slane %v2862, %v2869
      %v2872 = vunpack.c.l.s4 1934713408
      %v2873 = vunpack.c.0.s8 %v2872
      %v2874 = vlaneseq
      %v2875 = vshrl.u32 %v2874, 7
      %v2876 = vsub.s32 %v2873, %v2875
      %v2877 = vrot.slane %v2863, %v2876
      %v2878 = vcombine.low %v2822, %v2854
      %v2879 = vcombine.high %v2822, %v2854
      %v2880 = vcombine.low %v2829, %v2861
      %v2881 = vcombine.high %v2829, %v2861
      %v2882 = vcombine.low %v2838, %v2870
      %v2883 = vcombine.high %v2838, %v2870
      %v2884 = vcombine.low %v2845, %v2877
      %v2885 = vcombine.high %v2845, %v2877
      %2887 = vrot.lane.b32.xlu0 %v2879, 8
      %v2888 = vpop.permute.xlu0 %2887
      %2891 = vrot.lane.b32.xlu0 %v2880, 16
      %v2892 = vpop.permute.xlu0 %2891
      %2895 = vrot.lane.b32.xlu0 %v2881, 24
      %v2896 = vpop.permute.xlu0 %2895
      %2899 = vrot.lane.b32.xlu0 %v2882, 32
      %v2900 = vpop.permute.xlu0 %2899
      %2903 = vrot.lane.b32.xlu0 %v2883, 40
      %v2904 = vpop.permute.xlu0 %2903
      %2907 = vrot.lane.b32.xlu0 %v2884, 48
      %v2908 = vpop.permute.xlu0 %2907
      %2911 = vrot.lane.b32.xlu0 %v2885, 56
      %v2912 = vpop.permute.xlu0 %2911
      %v2914 = vsel %vm708, %v2878, %v2888
      %v2915 = vsel %vm710, %v2914, %v2892
      %v2916 = vsel %vm712, %v2915, %v2896
      %v2917 = vsel %vm714, %v2916, %v2900
      %v2918 = vsel %vm716, %v2917, %v2904
      %v2919 = vsel %vm718, %v2918, %v2908
      %v2920 = vsel %vm720, %v2919, %v2912
      %s2921 = scalar_lea.vmem %s3, 64
      %v2922 = vld [vmem:[%s2921] sm:$0xff]
      %v2924 = vsel %vm708, %v2922, 0
      %2926 = vmatprep.subr.mxu0 0.0
      %2927 = vmatpush1.msra.mxu0 %v2920
      %2928 = vmatprep.subr.mxu0 0.0
      %2929 = vmatpush1.msra.mxu0 0.0
      %2930 = vmatprep.subr.mxu0 0.0
      %2931 = vmatpush1.msra.mxu0 0.0
      %2932 = vmatprep.subr.mxu0 0.0
      %2933 = vmatpush1.msra.mxu0 0.0
      %2934 = vmatprep.subr.mxu0 0.0
      %2935 = vmatpush1.msra.mxu0 0.0
      %2936 = vmatprep.subr.mxu0 0.0
      %2937 = vmatpush1.msra.mxu0 0.0
      %2938 = vmatprep.subr.mxu0 0.0
      %2939 = vmatpush1.msra.mxu0 0.0
      %2940 = vmatprep.subr.mxu0 0.0
      %2941 = vmatpush1.msra.mxu0 0.0
      %2942 = vmatprep.subr.mxu0 0.0
      %2943 = vmatpush1.msra.mxu0 0.0
      %2944 = vmatprep.subr.mxu0 0.0
      %2945 = vmatpush1.msra.mxu0 0.0
      %2946 = vmatprep.subr.mxu0 0.0
      %2947 = vmatpush1.msra.mxu0 0.0
      %2948 = vmatprep.subr.mxu0 0.0
      %2949 = vmatpush1.msra.mxu0 0.0
      %2950 = vmatprep.subr.mxu0 0.0
      %2951 = vmatpush1.msra.mxu0 0.0
      %2952 = vmatprep.subr.mxu0 0.0
      %2953 = vmatpush1.msra.mxu0 0.0
      %2954 = vmatprep.subr.mxu0 0.0
      %2955 = vmatpush1.msra.mxu0 0.0
      %2956 = vmatprep.subr.mxu0 0.0
      %2957 = vmatpush1.msra.mxu0 0.0
      %2958 = vmatprep.subr.mxu0 0.0
      %2959 = vmatpush1.msra.mxu0 0.0
      %2960 = vmatprep.subr.mxu0 0.0
      %2961 = vmatpush1.msra.mxu0 0.0
      %2962 = vmatprep.subr.mxu0 0.0
      %2963 = vmatpush1.msra.mxu0 0.0
      %2964 = vmatprep.subr.mxu0 0.0
      %2965 = vmatpush1.msra.mxu0 0.0
      %2966 = vmatprep.subr.mxu0 0.0
      %2967 = vmatpush1.msra.mxu0 0.0
      %2968 = vmatprep.subr.mxu0 0.0
      %2969 = vmatpush1.msra.mxu0 0.0
      %2970 = vmatprep.subr.mxu0 0.0
      %2971 = vmatpush1.msra.mxu0 0.0
      %2972 = vmatprep.subr.mxu0 0.0
      %2973 = vmatpush1.msra.mxu0 0.0
      %2974 = vmatprep.subr.mxu0 0.0
      %2975 = vmatpush1.msra.mxu0 0.0
      %2976 = vmatprep.subr.mxu0 0.0
      %2977 = vmatpush1.msra.mxu0 0.0
      %2978 = vmatprep.subr.mxu0 0.0
      %2979 = vmatpush1.msra.mxu0 0.0
      %2980 = vmatprep.subr.mxu0 0.0
      %2981 = vmatpush1.msra.mxu0 0.0
      %2982 = vmatprep.subr.mxu0 0.0
      %2983 = vmatpush1.msra.mxu0 0.0
      %2984 = vmatprep.subr.mxu0 0.0
      %2985 = vmatpush1.msra.mxu0 0.0
      %2986 = vmatprep.subr.mxu0 0.0
      %2987 = vmatpush1.msra.mxu0 0.0
      %2988 = vmatprep.subr.mxu0 0.0
      %2989 = vmatpush1.msra.mxu0 0.0
      %2990 = vmatprep.mubr.f32.mxu0 0.0
      %2991 = vmatmul.mubr.f32.gmra.mrb[0].mxu0 %v2924
      %v2992 = vpop.f32.mrb[0].mxu0
      %v2993 = vadd.f32 0.0, %v2992
      %v2994 = vpop.f32.mrb[0].mxu0
      %2995 = vdwg.mxu0
      %v2996 = vadd.f32 %v2725, %v2993
      %v2997 = vld [vmem:[%s4] sm:$0xff]
      %2999 = vset.pattern.permute.xlu0 0
      %3000 = vperm.xlu0 %2999, %v2997
      %v3001 = vpop.permute.xlu0 %3000
      %v3003 = vadd.f32 %v2996, %v3001
      %vm3004 = vcmask 523264
      %3005 = vst.msk [vmem:[%s286] sm:$0xff] %vm3004, %v3003
      %v3006 = vsel %vm3004, %v3003, 0.0
      %3007 = vadd.xlane.f32.xlu0 %v3006
      %v3008 = vpop.xlane.xlu0 %3007
      %vm3009 = vcmask 7168
      %3010 = vst.msk [vmem:[%s290] sm:$0xff] %vm3009, %v3008
      %v3011 = vmul.f32 %v3003, %v3003
      %v3012 = vsel %vm3004, %v3011, 0.0
      %3013 = vadd.xlane.f32.xlu0 %v3012
      %v3014 = vpop.xlane.xlu0 %3013
      %3015 = vst.msk [vmem:[%s294] sm:$0xff] %vm3009, %v3014
      %p3016 = scmp.lt.s32.totalorder %s19, 1
      %s3017 = scalar_select %p3016, %s19, 1
      %s3018 = smul.addr %s3017, 8
      %s3019 = scalar_lea.vmem %s5, %s3018
      %p3020 = scmp.lt.s32.totalorder %s19, 1
      %s3021 = scalar_select %p3020, %s19, 1
      %s3022 = smul.addr %s3021, 8
      %s3023 = scalar_lea.vmem %s6, %s3022
      %p3024 = scmp.lt.s32.totalorder %s19, 1
      %s3025 = scalar_select %p3024, %s19, 1
      %s3026 = smul.addr %s3025, 8
      %s3027 = scalar_lea.vmem %s7, %s3026
      // Predicated region
      $region41: #{plain_encoder_block.4} parent=39 // pred_check
        %p3028 = pneg %p147
      $region42: #{plain_encoder_block.4} parent=39 // pred_check_branch
        %3030 = sbr.rel (%p3028) target = $region44
      $region43: #{plain_encoder_block.4} parent=39 // pred_region
        _
      $region44: #{plain_encoder_block.4} parent=39 // pred_fallthru
        _
      // Predicated region
      $region45: #{plain_encoder_block.4} parent=39 // pred_check
        %p3031 = pneg %p173
      $region46: #{plain_encoder_block.4} parent=39 // pred_check_branch
        %3033 = sbr.rel (%p3031) target = $region48
      $region47: #{plain_encoder_block.4} parent=39 // pred_region
        _
      $region48: #{plain_encoder_block.4} parent=39 // pred_fallthru
        _
      // Predicated region
      $region49: #{plain_encoder_block.4} parent=39 // pred_check
        %p3034 = pneg %p199
      $region50: #{plain_encoder_block.4} parent=39 // pred_check_branch
        %3036 = sbr.rel (%p3034) target = $region52
      $region51: #{plain_encoder_block.4} parent=39 // pred_region
        _
      $region52: #{plain_encoder_block.4} parent=39 // pred_fallthru
        _
    $region40: #{plain_encoder_block.4} parent=5 // pred_fallthru
      _
    %p3037 = scmp.le.s32.totalorder 2, %s14
    // Predicated region
    $region53: #{plain_encoder_block.4} parent=5 // pred_check
      %p3038 = pneg %p3037
    $region54: #{plain_encoder_block.4} parent=5 // pred_check_branch
      %3040 = sbr.rel (%p3038) target = $region56
    $region55: #{plain_encoder_block.4} parent=5 // pred_region
      %s3041 = ssub.s32 %s14, 2
      // Predicated region
      $region57: #{plain_encoder_block.4} parent=55 // pred_check
        %p3042 = pneg %p153
      $region58: #{plain_encoder_block.4} parent=55 // pred_check_branch
        %3044 = sbr.rel (%p3042) target = $region60
      $region59: #{plain_encoder_block.4} parent=55 // pred_region
        %p3045 = scmp.lt.s32.totalorder %s20, 1
        %s3046 = scalar_select %p3045, %s20, 1
        %s3047 = smul.addr %s3046, 8
        %s3048 = scalar_lea.vmem %s5, %s3047
      $region60: #{plain_encoder_block.4} parent=55 // pred_fallthru
        _
      // Predicated region
      $region61: #{plain_encoder_block.4} parent=55 // pred_check
        %p3049 = pneg %p179
      $region62: #{plain_encoder_block.4} parent=55 // pred_check_branch
        %3051 = sbr.rel (%p3049) target = $region64
      $region63: #{plain_encoder_block.4} parent=55 // pred_region
        %p3052 = scmp.lt.s32.totalorder %s20, 1
        %s3053 = scalar_select %p3052, %s20, 1
        %s3054 = smul.addr %s3053, 8
        %s3055 = scalar_lea.vmem %s6, %s3054
      $region64: #{plain_encoder_block.4} parent=55 // pred_fallthru
        _
      // Predicated region
      $region65: #{plain_encoder_block.4} parent=55 // pred_check
        %p3056 = pneg %p205
      $region66: #{plain_encoder_block.4} parent=55 // pred_check_branch
        %3058 = sbr.rel (%p3056) target = $region68
      $region67: #{plain_encoder_block.4} parent=55 // pred_region
        %p3059 = scmp.lt.s32.totalorder %s20, 1
        %s3060 = scalar_select %p3059, %s20, 1
        %s3061 = smul.addr %s3060, 8
        %s3062 = scalar_lea.vmem %s7, %s3061
      $region68: #{plain_encoder_block.4} parent=55 // pred_fallthru
        _
    $region56: #{plain_encoder_block.4} parent=5 // pred_fallthru
      _
  $region6: #{plain_encoder_block.4} parent=0 // loop_footer
    %s18 = sadd.s32 1, %s14
  $region7: #{plain_encoder_block.4} parent=0 // loop_footer_branch
    %13 = sbr.rel target = $region3
  $region8: #{plain_encoder_block.4} parent=0 // loop_exit
    _

</llo_original>
